<compile_context>
chip_gen: v7x
topology: tpu7x:2x2x1
jax: 0.10.0
libtpu: 0.0.40
codegen_flags: <defaults>
</compile_context>

<pallas_src>
import jax
import jax.numpy as jnp
from jax.experimental import pallas as pl
from jax.experimental.pallas import tpu as pltpu


# ---------------------------------------------------------------------------
# Helpers
# ---------------------------------------------------------------------------
def _round_up(n, m):
    return (n + m - 1) // m * m


def _pad_to(a, shape):
    return jnp.pad(a, [(0, s - d) for d, s in zip(a.shape, shape)])


def _layout_gates(a, H, GS, GW):
    """(..., 3*H) -> (..., GW): gate g occupies columns [g*GS, g*GS + H)."""
    nd = a.ndim
    pad_mid = [(0, 0)] * (nd - 1) + [(0, GS - H)]
    pad_end = [(0, 0)] * (nd - 1) + [(0, GW - 2 * GS - H)]
    parts = [jnp.pad(a[..., 0:H], pad_mid),
             jnp.pad(a[..., H:2 * H], pad_mid),
             jnp.pad(a[..., 2 * H:3 * H], pad_end)]
    return jnp.concatenate(parts, axis=-1)


# ---------------------------------------------------------------------------
# Forward pass (wrapper + Pallas kernel)
# ---------------------------------------------------------------------------
def odernn_forward(inputs_blc, params, *, time_block=None):
    """inputs_blc: (batch, length, input_dim), like the PyTorch module."""
    f32, bf16 = jnp.float32, jnp.bfloat16

    x = jnp.transpose(inputs_blc, (1, 0, 2)).astype(f32)        # time-major (L, B, D)
    L, B, _ = x.shape
    H = params["whh"].shape[0]
    HH = params["w1"].shape[1]

    # Hardware-tile padding: sublanes for batch, lanes for feature dims.
    Bp = _round_up(B, 8)
    Hp = _round_up(H, 128)
    HHp = _round_up(HH, 128)

    # Gate layout: pack all three GRU gates into one 128-lane tile when they fit
    # (1 MXU weight tile instead of 3 for the recurrent matmul); else 128-wide slots.
    packed = (3 * H) <= 128
    GS = H if packed else Hp            # gate stride (column offset between gates)
    GW = 128 if packed else 3 * Hp      # total (lane-aligned) gate width

    # Time blocking with tail masking (handles L not divisible by TB, incl. prime L).
    if time_block is None:
        time_block = 8
    TB = max(1, min(int(time_block), L))
    G = pl.cdiv(L, TB)
    Lp = G * TB
    needs_tail = (Lp != L)

    # --- Hoisted GRU input projection for ALL timesteps (off the serial chain). ---
    gi = jnp.einsum("lbd,dh->lbh", x, params["wih"]) + params["bih"]      # (L, B, 3H) f32
    gi_p = _pad_to(_layout_gates(gi, H, GS, GW), (Lp, Bp, GW)).astype(bf16)

    # --- Padded weights (bf16 MXU operands); biases pre-broadcast to (Bp, N) in f32. ---
    w1_p = _pad_to(params["w1"], (Hp, HHp)).astype(bf16)
    b1_p = jnp.broadcast_to(_pad_to(params["b1"], (1, HHp)), (Bp, HHp)).astype(f32)
    w2_p = _pad_to(params["w2"], (HHp, Hp)).astype(bf16)
    b2_p = jnp.broadcast_to(_pad_to(params["b2"], (1, Hp)), (Bp, Hp)).astype(f32)
    whh_p = _pad_to(_layout_gates(params["whh"], H, GS, GW), (Hp, GW)).astype(bf16)
    bhh_p = jnp.broadcast_to(_layout_gates(params["bhh"], H, GS, GW), (Bp, GW)).astype(f32)

    # -----------------------------------------------------------------------
    # Kernel (closes over the static layout parameters).
    # -----------------------------------------------------------------------
    def kernel(gi_ref, w1_ref, b1_ref, w2_ref, b2_ref, whh_ref, bhh_ref, h_ref):
        @pl.when(pl.program_id(0) == 0)
        def _init():
            h_ref[...] = jnp.zeros_like(h_ref)

        def ode_f(h):
            # Linear(H, HH) -> Tanh -> Linear(HH, H); bf16 matmul operands, f32 accumulate.
            z = jnp.tanh(jnp.dot(h.astype(bf16), w1_ref[...],
                                 preferred_element_type=f32) + b1_ref[...])
            return jnp.dot(z.astype(bf16), w2_ref[...],
                           preferred_element_type=f32) + b2_ref[...]

        def rk4_step(h):
            # torchdiffeq 'rk4' is the 3/8-rule variant; dt == 1 for every step.
            k1 = ode_f(h)
            k2 = ode_f(h + k1 * (1.0 / 3.0))
            k3 = ode_f(h + (k2 - k1 * (1.0 / 3.0)))
            k4 = ode_f(h + (k1 - k2 + k3))
            return h + (k1 + 3.0 * k2 + 3.0 * k3 + k4) * 0.125

        def gru_cell(gi, h):
            # PyTorch GRUCell gate equations, gate order (r, z, n).
            gh = jnp.dot(h.astype(bf16), whh_ref[...],
                         preferred_element_type=f32) + bhh_ref[...]
            if packed:
                # All three gates live in one 128-lane tile -> narrow (Bp, H) gate math,
                # then re-pad h back to the lane-tile width (padded lanes stay exactly 0).
                r = jax.nn.sigmoid(gi[:, 0:H] + gh[:, 0:H])
                z = jax.nn.sigmoid(gi[:, H:2 * H] + gh[:, H:2 * H])
                n = jnp.tanh(gi[:, 2 * H:3 * H] + r * gh[:, 2 * H:3 * H])
                hn = (1.0 - z) * n + z * h[:, 0:H]
                if Hp > H:
                    hn = jnp.concatenate(
                        [hn, jnp.zeros((hn.shape[0], Hp - H), f32)], axis=-1)
                return hn
            else:
                # Slot layout: one lane-aligned Hp-wide slot per gate, full-width math.
                r = jax.nn.sigmoid(gi[:, 0:Hp] + gh[:, 0:Hp])
                z = jax.nn.sigmoid(gi[:, Hp:2 * Hp] + gh[:, Hp:2 * Hp])
                n = jnp.tanh(gi[:, 2 * Hp:3 * Hp] + r * gh[:, 2 * Hp:3 * Hp])
                return (1.0 - z) * n + z * h

        # Statically unrolled loop over the TB timesteps of this time block.
        h = h_ref[...]
        t0 = pl.program_id(0) * TB
        for j in range(TB):
            gi_j = gi_ref[j].astype(f32)
            h_new = gru_cell(gi_j, rk4_step(h))
            if needs_tail:
                h = jnp.where(t0 + j < L, h_new, h)   # discard padded tail sub-steps
            else:
                h = h_new
        h_ref[...] = h

    # -----------------------------------------------------------------------
    # pallas_call
    # -----------------------------------------------------------------------
    grid_spec = pltpu.PrefetchScalarGridSpec(
        num_scalar_prefetch=0,
        grid=(G,),
        in_specs=[
            pl.BlockSpec((TB, Bp, GW), lambda t: (t, 0, 0)),   # GI time block (pipelined)
            pl.BlockSpec((Hp, HHp), lambda t: (0, 0)),          # w1 (resident)
            pl.BlockSpec((Bp, HHp), lambda t: (0, 0)),          # b1
            pl.BlockSpec((HHp, Hp), lambda t: (0, 0)),          # w2
            pl.BlockSpec((Bp, Hp), lambda t: (0, 0)),           # b2
            pl.BlockSpec((Hp, GW), lambda t: (0, 0)),           # whh
            pl.BlockSpec((Bp, GW), lambda t: (0, 0)),           # bhh
        ],
        out_specs=pl.BlockSpec((Bp, Hp), lambda t: (0, 0)),     # resident hidden state h
    )

    per_step_flops = 16 * Bp * Hp * HHp + 2 * Bp * Hp * GW
    cost = pl.CostEstimate(
        flops=L * per_step_flops,
        transcendentals=L * (4 * Bp * HHp + 3 * Bp * Hp),
        bytes_accessed=(gi_p.size * 2
                        + (w1_p.size + w2_p.size + whh_p.size) * 2
                        + (b1_p.size + b2_p.size + bhh_p.size) * 4
                        + Bp * Hp * 4),
    )

    h_out = pl.pallas_call(
        kernel,
        out_shape=jax.ShapeDtypeStruct((Bp, Hp), f32),
        grid_spec=grid_spec,
        compiler_params=pltpu.CompilerParams(
            dimension_semantics=("arbitrary",),      # serial time recurrence
            vmem_limit_bytes=16 * 1024 * 1024,       # explicit; actual use is < 1 MiB
        ),
        cost_estimate=cost,
    )(gi_p, w1_p, b1_p, w2_p, b2_p, whh_p, bhh_p)

    # Tiny final linear on the last hidden state, done in the wrapper (review item 5).
    h_final = h_out[:B, :H]
    return h_final @ params["wf"] + params["bf"]


# ---------------------------------------------------------------------------
# Pure-JAX f32 reference (matches the PyTorch module with default args)
# ---------------------------------------------------------------------------
def _reference_forward(inputs_blc, params):
    H = params["whh"].shape[0]

    def ode_f(h):
        z = jnp.tanh(h @ params["w1"] + params["b1"])
        return z @ params["w2"] + params["b2"]

    def rk4_step(h, dt):
        k1 = ode_f(h)
        k2 = ode_f(h + dt * k1 / 3.0)
        k3 = ode_f(h + dt * (k2 - k1 / 3.0))
        k4 = ode_f(h + dt * (k1 - k2 + k3))
        return h + dt * (k1 + 3.0 * k2 + 3.0 * k3 + k4) / 8.0

    def gru_cell(x, h):
        gi = x @ params["wih"] + params["bih"]
        gh = h @ params["whh"] + params["bhh"]
        r = jax.nn.sigmoid(gi[:, :H] + gh[:, :H])
        z = jax.nn.sigmoid(gi[:, H:2 * H] + gh[:, H:2 * H])
        n = jnp.tanh(gi[:, 2 * H:] + r * gh[:, 2 * H:])
        return (1.0 - z) * n + z * h

    B, L, _ = inputs_blc.shape
    h = jnp.zeros((B, H), jnp.float32)
    for t in range(L):
        h = rk4_step(h, 1.0)
        h = gru_cell(inputs_blc[:, t].astype(jnp.float32), h)
    return h @ params["wf"] + params["bf"]


def init_params(key, input_dim, hidden_dim, hidden_hidden_dim, output_dim):
    ks = jax.random.split(key, 10)
    s = 0.2

    def w(k, shape):
        return (s * jax.random.normal(k, shape)).astype(jnp.float32)

    return {
        # ODE func: Linear(H, HH) -> Tanh -> Linear(HH, H)
        "w1": w(ks[0], (hidden_dim, hidden_hidden_dim)),
        "b1": w(ks[1], (1, hidden_hidden_dim)),
        "w2": w(ks[2], (hidden_hidden_dim, hidden_dim)),
        "b2": w(ks[3], (1, hidden_dim)),
        # GRUCell(input_dim, hidden_dim): gates stacked (r, z, n)
        "wih": w(ks[4], (input_dim, 3 * hidden_dim)),
        "bih": w(ks[5], (1, 3 * hidden_dim)),
        "whh": w(ks[6], (hidden_dim, 3 * hidden_dim)),
        "bhh": w(ks[7], (1, 3 * hidden_dim)),
        # final linear
        "wf": w(ks[8], (hidden_dim, output_dim)),
        "bf": w(ks[9], (1, output_dim)),
    }


if __name__ == "__main__":
    batch, length = 2, 8
    input_dim, hidden_dim, hidden_hidden_dim, output_dim = 4, 32, 30, 4

    key = jax.random.PRNGKey(0)
    k_x, k_p = jax.random.split(key)
    inputs = jax.random.normal(k_x, (batch, length, input_dim), dtype=jnp.float32)
    params = init_params(k_p, input_dim, hidden_dim, hidden_hidden_dim, output_dim)

    out = jax.jit(odernn_forward)(inputs, params)
    out = jax.block_until_ready(out)

    ref = _reference_forward(inputs, params)
    assert out.shape == (batch, output_dim)
    # bf16 matmul operands introduce small recurrence drift vs. the f32 reference.
    assert jnp.allclose(out, ref, atol=5e-2, rtol=5e-2), (out, ref)

    print("KERNEL_OK")
</pallas_src>

<mosaic_0001>
module attributes {stable_mosaic.version = 11 : i64} {
  func.func @kernel(%arg0: i32, %arg1: memref<8x8x128xbf16, #tpu.memory_space<vmem>>, %arg2: memref<128x128xbf16, #tpu.memory_space<vmem>>, %arg3: memref<8x128xf32, #tpu.memory_space<vmem>>, %arg4: memref<128x128xbf16, #tpu.memory_space<vmem>>, %arg5: memref<8x128xf32, #tpu.memory_space<vmem>>, %arg6: memref<128x128xbf16, #tpu.memory_space<vmem>>, %arg7: memref<8x128xf32, #tpu.memory_space<vmem>>, %arg8: memref<8x128xf32, #tpu.memory_space<vmem>>) attributes {dimension_semantics = [#tpu.dimension_semantics<arbitrary>], iteration_bounds = array<i64: 1>, scalar_prefetch = 0 : i64, scratch_operands = 0 : i64, tpu.core_type = #tpu.core_type<tc>, window_params = [{transform_indices = @transform_0, window_bounds = array<i64: 8, 8, 128>}, {pipeline_mode = #tpu.pipeline_mode<synchronous>, transform_indices = @transform_1, window_bounds = array<i64: 128, 128>}, {pipeline_mode = #tpu.pipeline_mode<synchronous>, transform_indices = @transform_2, window_bounds = array<i64: 8, 128>}, {pipeline_mode = #tpu.pipeline_mode<synchronous>, transform_indices = @transform_3, window_bounds = array<i64: 128, 128>}, {pipeline_mode = #tpu.pipeline_mode<synchronous>, transform_indices = @transform_4, window_bounds = array<i64: 8, 128>}, {pipeline_mode = #tpu.pipeline_mode<synchronous>, transform_indices = @transform_5, window_bounds = array<i64: 128, 128>}, {pipeline_mode = #tpu.pipeline_mode<synchronous>, transform_indices = @transform_6, window_bounds = array<i64: 8, 128>}, {pipeline_mode = #tpu.pipeline_mode<synchronous>, transform_indices = @transform_7, window_bounds = array<i64: 8, 128>}]} {
    %c0_i32 = arith.constant 0 : i32
    %0 = arith.cmpi eq, %arg0, %c0_i32 : i32
    %1 = arith.extui %0 : i1 to i32
    %c0_i32_0 = arith.constant 0 : i32
    %2 = arith.cmpi ne, %1, %c0_i32_0 : i32
    scf.if %2 {
      %cst_452 = arith.constant 0.000000e+00 : f32
      %813 = vector.broadcast %cst_452 : f32 to vector<8x128xf32>
      %c0_453 = arith.constant 0 : index
      %c0_454 = arith.constant 0 : index
      %814 = vector.load %arg8[%c0_453, %c0_454] : memref<8x128xf32, #tpu.memory_space<vmem>>, vector<8x128xf32>
      tpu.vector_store %arg8[%c0_453, %c0_454], %813 {strides = array<i32>} : memref<8x128xf32, #tpu.memory_space<vmem>>, vector<8x128xf32>,
    } else {
    }
    %c0 = arith.constant 0 : index
    %c0_1 = arith.constant 0 : index
    %3 = vector.load %arg8[%c0, %c0_1] : memref<8x128xf32, #tpu.memory_space<vmem>>, vector<8x128xf32>
    %c0_2 = arith.constant 0 : index
    %c0_3 = arith.constant 0 : index
    %c0_4 = arith.constant 0 : index
    %4 = vector.load %arg1[%c0_2, %c0_3, %c0_4] : memref<8x8x128xbf16, #tpu.memory_space<vmem>>, vector<1x8x128xbf16>
    %5 = vector.shape_cast %4 : vector<1x8x128xbf16> to vector<8x128xbf16>
    %6 = arith.extf %5 : vector<8x128xbf16> to vector<8x128xf32>
    %7 = arith.truncf %3 : vector<8x128xf32> to vector<8x128xbf16>
    %c0_5 = arith.constant 0 : index
    %c0_6 = arith.constant 0 : index
    %8 = vector.load %arg2[%c0_5, %c0_6] : memref<128x128xbf16, #tpu.memory_space<vmem>>, vector<128x128xbf16>
    %cst = arith.constant dense<0.000000e+00> : vector<8x128xf32>
    %9 = tpu.matmul %7, %8, %cst {dimension_numbers = #tpu.dot_dimension_numbers<[1], [0], [0], [1], [0, 0, 1, 1], [], []>} : vector<8x128xbf16>, vector<128x128xbf16>, vector<8x128xf32> -> vector<8x128xf32>
    %c0_7 = arith.constant 0 : index
    %c0_8 = arith.constant 0 : index
    %10 = vector.load %arg3[%c0_7, %c0_8] : memref<8x128xf32, #tpu.memory_space<vmem>>, vector<8x128xf32>
    %11 = arith.addf %9, %10 : vector<8x128xf32>
    %12 = math.tanh %11 : vector<8x128xf32>
    %13 = arith.truncf %12 : vector<8x128xf32> to vector<8x128xbf16>
    %c0_9 = arith.constant 0 : index
    %c0_10 = arith.constant 0 : index
    %14 = vector.load %arg4[%c0_9, %c0_10] : memref<128x128xbf16, #tpu.memory_space<vmem>>, vector<128x128xbf16>
    %cst_11 = arith.constant dense<0.000000e+00> : vector<8x128xf32>
    %15 = tpu.matmul %13, %14, %cst_11 {dimension_numbers = #tpu.dot_dimension_numbers<[1], [0], [0], [1], [0, 0, 1, 1], [], []>} : vector<8x128xbf16>, vector<128x128xbf16>, vector<8x128xf32> -> vector<8x128xf32>
    %c0_12 = arith.constant 0 : index
    %c0_13 = arith.constant 0 : index
    %16 = vector.load %arg5[%c0_12, %c0_13] : memref<8x128xf32, #tpu.memory_space<vmem>>, vector<8x128xf32>
    %17 = arith.addf %15, %16 : vector<8x128xf32>
    %cst_14 = arith.constant 0.333333343 : f32
    %18 = vector.broadcast %cst_14 : f32 to vector<8x128xf32>
    %19 = arith.mulf %17, %18 : vector<8x128xf32>
    %20 = arith.addf %3, %19 : vector<8x128xf32>
    %21 = arith.truncf %20 : vector<8x128xf32> to vector<8x128xbf16>
    %c0_15 = arith.constant 0 : index
    %c0_16 = arith.constant 0 : index
    %22 = vector.load %arg2[%c0_15, %c0_16] : memref<128x128xbf16, #tpu.memory_space<vmem>>, vector<128x128xbf16>
    %cst_17 = arith.constant dense<0.000000e+00> : vector<8x128xf32>
    %23 = tpu.matmul %21, %22, %cst_17 {dimension_numbers = #tpu.dot_dimension_numbers<[1], [0], [0], [1], [0, 0, 1, 1], [], []>} : vector<8x128xbf16>, vector<128x128xbf16>, vector<8x128xf32> -> vector<8x128xf32>
    %c0_18 = arith.constant 0 : index
    %c0_19 = arith.constant 0 : index
    %24 = vector.load %arg3[%c0_18, %c0_19] : memref<8x128xf32, #tpu.memory_space<vmem>>, vector<8x128xf32>
    %25 = arith.addf %23, %24 : vector<8x128xf32>
    %26 = math.tanh %25 : vector<8x128xf32>
    %27 = arith.truncf %26 : vector<8x128xf32> to vector<8x128xbf16>
    %c0_20 = arith.constant 0 : index
    %c0_21 = arith.constant 0 : index
    %28 = vector.load %arg4[%c0_20, %c0_21] : memref<128x128xbf16, #tpu.memory_space<vmem>>, vector<128x128xbf16>
    %cst_22 = arith.constant dense<0.000000e+00> : vector<8x128xf32>
    %29 = tpu.matmul %27, %28, %cst_22 {dimension_numbers = #tpu.dot_dimension_numbers<[1], [0], [0], [1], [0, 0, 1, 1], [], []>} : vector<8x128xbf16>, vector<128x128xbf16>, vector<8x128xf32> -> vector<8x128xf32>
    %c0_23 = arith.constant 0 : index
    %c0_24 = arith.constant 0 : index
    %30 = vector.load %arg5[%c0_23, %c0_24] : memref<8x128xf32, #tpu.memory_space<vmem>>, vector<8x128xf32>
    %31 = arith.addf %29, %30 : vector<8x128xf32>
    %cst_25 = arith.constant 0.333333343 : f32
    %32 = vector.broadcast %cst_25 : f32 to vector<8x128xf32>
    %33 = arith.mulf %17, %32 : vector<8x128xf32>
    %34 = arith.subf %31, %33 : vector<8x128xf32>
    %35 = arith.addf %3, %34 : vector<8x128xf32>
    %36 = arith.truncf %35 : vector<8x128xf32> to vector<8x128xbf16>
    %c0_26 = arith.constant 0 : index
    %c0_27 = arith.constant 0 : index
    %37 = vector.load %arg2[%c0_26, %c0_27] : memref<128x128xbf16, #tpu.memory_space<vmem>>, vector<128x128xbf16>
    %cst_28 = arith.constant dense<0.000000e+00> : vector<8x128xf32>
    %38 = tpu.matmul %36, %37, %cst_28 {dimension_numbers = #tpu.dot_dimension_numbers<[1], [0], [0], [1], [0, 0, 1, 1], [], []>} : vector<8x128xbf16>, vector<128x128xbf16>, vector<8x128xf32> -> vector<8x128xf32>
    %c0_29 = arith.constant 0 : index
    %c0_30 = arith.constant 0 : index
    %39 = vector.load %arg3[%c0_29, %c0_30] : memref<8x128xf32, #tpu.memory_space<vmem>>, vector<8x128xf32>
    %40 = arith.addf %38, %39 : vector<8x128xf32>
    %41 = math.tanh %40 : vector<8x128xf32>
    %42 = arith.truncf %41 : vector<8x128xf32> to vector<8x128xbf16>
    %c0_31 = arith.constant 0 : index
    %c0_32 = arith.constant 0 : index
    %43 = vector.load %arg4[%c0_31, %c0_32] : memref<128x128xbf16, #tpu.memory_space<vmem>>, vector<128x128xbf16>
    %cst_33 = arith.constant dense<0.000000e+00> : vector<8x128xf32>
    %44 = tpu.matmul %42, %43, %cst_33 {dimension_numbers = #tpu.dot_dimension_numbers<[1], [0], [0], [1], [0, 0, 1, 1], [], []>} : vector<8x128xbf16>, vector<128x128xbf16>, vector<8x128xf32> -> vector<8x128xf32>
    %c0_34 = arith.constant 0 : index
    %c0_35 = arith.constant 0 : index
    %45 = vector.load %arg5[%c0_34, %c0_35] : memref<8x128xf32, #tpu.memory_space<vmem>>, vector<8x128xf32>
    %46 = arith.addf %44, %45 : vector<8x128xf32>
    %47 = arith.subf %17, %31 : vector<8x128xf32>
    %48 = arith.addf %47, %46 : vector<8x128xf32>
    %49 = arith.addf %3, %48 : vector<8x128xf32>
    %50 = arith.truncf %49 : vector<8x128xf32> to vector<8x128xbf16>
    %c0_36 = arith.constant 0 : index
    %c0_37 = arith.constant 0 : index
    %51 = vector.load %arg2[%c0_36, %c0_37] : memref<128x128xbf16, #tpu.memory_space<vmem>>, vector<128x128xbf16>
    %cst_38 = arith.constant dense<0.000000e+00> : vector<8x128xf32>
    %52 = tpu.matmul %50, %51, %cst_38 {dimension_numbers = #tpu.dot_dimension_numbers<[1], [0], [0], [1], [0, 0, 1, 1], [], []>} : vector<8x128xbf16>, vector<128x128xbf16>, vector<8x128xf32> -> vector<8x128xf32>
    %c0_39 = arith.constant 0 : index
    %c0_40 = arith.constant 0 : index
    %53 = vector.load %arg3[%c0_39, %c0_40] : memref<8x128xf32, #tpu.memory_space<vmem>>, vector<8x128xf32>
    %54 = arith.addf %52, %53 : vector<8x128xf32>
    %55 = math.tanh %54 : vector<8x128xf32>
    %56 = arith.truncf %55 : vector<8x128xf32> to vector<8x128xbf16>
    %c0_41 = arith.constant 0 : index
    %c0_42 = arith.constant 0 : index
    %57 = vector.load %arg4[%c0_41, %c0_42] : memref<128x128xbf16, #tpu.memory_space<vmem>>, vector<128x128xbf16>
    %cst_43 = arith.constant dense<0.000000e+00> : vector<8x128xf32>
    %58 = tpu.matmul %56, %57, %cst_43 {dimension_numbers = #tpu.dot_dimension_numbers<[1], [0], [0], [1], [0, 0, 1, 1], [], []>} : vector<8x128xbf16>, vector<128x128xbf16>, vector<8x128xf32> -> vector<8x128xf32>
    %c0_44 = arith.constant 0 : index
    %c0_45 = arith.constant 0 : index
    %59 = vector.load %arg5[%c0_44, %c0_45] : memref<8x128xf32, #tpu.memory_space<vmem>>, vector<8x128xf32>
    %60 = arith.addf %58, %59 : vector<8x128xf32>
    %cst_46 = arith.constant 3.000000e+00 : f32
    %61 = vector.broadcast %cst_46 : f32 to vector<8x128xf32>
    %62 = arith.mulf %61, %31 : vector<8x128xf32>
    %63 = arith.addf %17, %62 : vector<8x128xf32>
    %cst_47 = arith.constant 3.000000e+00 : f32
    %64 = vector.broadcast %cst_47 : f32 to vector<8x128xf32>
    %65 = arith.mulf %64, %46 : vector<8x128xf32>
    %66 = arith.addf %63, %65 : vector<8x128xf32>
    %67 = arith.addf %66, %60 : vector<8x128xf32>
    %cst_48 = arith.constant 1.250000e-01 : f32
    %68 = vector.broadcast %cst_48 : f32 to vector<8x128xf32>
    %69 = arith.mulf %67, %68 : vector<8x128xf32>
    %70 = arith.addf %3, %69 : vector<8x128xf32>
    %71 = arith.truncf %70 : vector<8x128xf32> to vector<8x128xbf16>
    %c0_49 = arith.constant 0 : index
    %c0_50 = arith.constant 0 : index
    %72 = vector.load %arg6[%c0_49, %c0_50] : memref<128x128xbf16, #tpu.memory_space<vmem>>, vector<128x128xbf16>
    %cst_51 = arith.constant dense<0.000000e+00> : vector<8x128xf32>
    %73 = tpu.matmul %71, %72, %cst_51 {dimension_numbers = #tpu.dot_dimension_numbers<[1], [0], [0], [1], [0, 0, 1, 1], [], []>} : vector<8x128xbf16>, vector<128x128xbf16>, vector<8x128xf32> -> vector<8x128xf32>
    %c0_52 = arith.constant 0 : index
    %c0_53 = arith.constant 0 : index
    %74 = vector.load %arg7[%c0_52, %c0_53] : memref<8x128xf32, #tpu.memory_space<vmem>>, vector<8x128xf32>
    %75 = arith.addf %73, %74 : vector<8x128xf32>
    %76 = vector.extract_strided_slice %6 {offsets = [0, 0], sizes = [8, 32], strides = [1, 1]} : vector<8x128xf32> to vector<8x32xf32>
    %77 = vector.extract_strided_slice %75 {offsets = [0, 0], sizes = [8, 32], strides = [1, 1]} : vector<8x128xf32> to vector<8x32xf32>
    %78 = arith.addf %76, %77 : vector<8x32xf32>
    %79 = arith.negf %78 : vector<8x32xf32>
    %80 = math.exp %79 : vector<8x32xf32>
    %cst_54 = arith.constant 1.000000e+00 : f32
    %81 = vector.broadcast %cst_54 : f32 to vector<8x32xf32>
    %82 = arith.addf %81, %80 : vector<8x32xf32>
    %83 = arith.divf %81, %82 : vector<8x32xf32>
    %84 = vector.extract_strided_slice %6 {offsets = [0, 32], sizes = [8, 32], strides = [1, 1]} : vector<8x128xf32> to vector<8x32xf32>
    %85 = vector.extract_strided_slice %75 {offsets = [0, 32], sizes = [8, 32], strides = [1, 1]} : vector<8x128xf32> to vector<8x32xf32>
    %86 = arith.addf %84, %85 : vector<8x32xf32>
    %87 = arith.negf %86 : vector<8x32xf32>
    %88 = math.exp %87 : vector<8x32xf32>
    %cst_55 = arith.constant 1.000000e+00 : f32
    %89 = vector.broadcast %cst_55 : f32 to vector<8x32xf32>
    %90 = arith.addf %89, %88 : vector<8x32xf32>
    %91 = arith.divf %89, %90 : vector<8x32xf32>
    %92 = vector.extract_strided_slice %6 {offsets = [0, 64], sizes = [8, 32], strides = [1, 1]} : vector<8x128xf32> to vector<8x32xf32>
    %93 = vector.extract_strided_slice %75 {offsets = [0, 64], sizes = [8, 32], strides = [1, 1]} : vector<8x128xf32> to vector<8x32xf32>
    %94 = arith.mulf %83, %93 : vector<8x32xf32>
    %95 = arith.addf %92, %94 : vector<8x32xf32>
    %96 = math.tanh %95 : vector<8x32xf32>
    %cst_56 = arith.constant 1.000000e+00 : f32
    %97 = vector.broadcast %cst_56 : f32 to vector<8x32xf32>
    %98 = arith.subf %97, %91 : vector<8x32xf32>
    %99 = arith.mulf %98, %96 : vector<8x32xf32>
    %100 = vector.extract_strided_slice %70 {offsets = [0, 0], sizes = [8, 32], strides = [1, 1]} : vector<8x128xf32> to vector<8x32xf32>
    %101 = arith.mulf %91, %100 : vector<8x32xf32>
    %102 = arith.addf %99, %101 : vector<8x32xf32>
    %cst_57 = arith.constant 0.000000e+00 : f32
    %103 = vector.broadcast %cst_57 : f32 to vector<8x96xf32>
    %104 = tpu.concatenate %102, %103 in 1 : vector<8x32xf32>, vector<8x96xf32> -> vector<8x128xf32>
    %c1 = arith.constant 1 : index
    %c0_58 = arith.constant 0 : index
    %c0_59 = arith.constant 0 : index
    %105 = vector.load %arg1[%c1, %c0_58, %c0_59] : memref<8x8x128xbf16, #tpu.memory_space<vmem>>, vector<1x8x128xbf16>
    %106 = vector.shape_cast %105 : vector<1x8x128xbf16> to vector<8x128xbf16>
    %107 = arith.extf %106 : vector<8x128xbf16> to vector<8x128xf32>
    %108 = arith.truncf %104 : vector<8x128xf32> to vector<8x128xbf16>
    %c0_60 = arith.constant 0 : index
    %c0_61 = arith.constant 0 : index
    %109 = vector.load %arg2[%c0_60, %c0_61] : memref<128x128xbf16, #tpu.memory_space<vmem>>, vector<128x128xbf16>
    %cst_62 = arith.constant dense<0.000000e+00> : vector<8x128xf32>
    %110 = tpu.matmul %108, %109, %cst_62 {dimension_numbers = #tpu.dot_dimension_numbers<[1], [0], [0], [1], [0, 0, 1, 1], [], []>} : vector<8x128xbf16>, vector<128x128xbf16>, vector<8x128xf32> -> vector<8x128xf32>
    %c0_63 = arith.constant 0 : index
    %c0_64 = arith.constant 0 : index
    %111 = vector.load %arg3[%c0_63, %c0_64] : memref<8x128xf32, #tpu.memory_space<vmem>>, vector<8x128xf32>
    %112 = arith.addf %110, %111 : vector<8x128xf32>
    %113 = math.tanh %112 : vector<8x128xf32>
    %114 = arith.truncf %113 : vector<8x128xf32> to vector<8x128xbf16>
    %c0_65 = arith.constant 0 : index
    %c0_66 = arith.constant 0 : index
    %115 = vector.load %arg4[%c0_65, %c0_66] : memref<128x128xbf16, #tpu.memory_space<vmem>>, vector<128x128xbf16>
    %cst_67 = arith.constant dense<0.000000e+00> : vector<8x128xf32>
    %116 = tpu.matmul %114, %115, %cst_67 {dimension_numbers = #tpu.dot_dimension_numbers<[1], [0], [0], [1], [0, 0, 1, 1], [], []>} : vector<8x128xbf16>, vector<128x128xbf16>, vector<8x128xf32> -> vector<8x128xf32>
    %c0_68 = arith.constant 0 : index
    %c0_69 = arith.constant 0 : index
    %117 = vector.load %arg5[%c0_68, %c0_69] : memref<8x128xf32, #tpu.memory_space<vmem>>, vector<8x128xf32>
    %118 = arith.addf %116, %117 : vector<8x128xf32>
    %cst_70 = arith.constant 0.333333343 : f32
    %119 = vector.broadcast %cst_70 : f32 to vector<8x128xf32>
    %120 = arith.mulf %118, %119 : vector<8x128xf32>
    %121 = arith.addf %104, %120 : vector<8x128xf32>
    %122 = arith.truncf %121 : vector<8x128xf32> to vector<8x128xbf16>
    %c0_71 = arith.constant 0 : index
    %c0_72 = arith.constant 0 : index
    %123 = vector.load %arg2[%c0_71, %c0_72] : memref<128x128xbf16, #tpu.memory_space<vmem>>, vector<128x128xbf16>
    %cst_73 = arith.constant dense<0.000000e+00> : vector<8x128xf32>
    %124 = tpu.matmul %122, %123, %cst_73 {dimension_numbers = #tpu.dot_dimension_numbers<[1], [0], [0], [1], [0, 0, 1, 1], [], []>} : vector<8x128xbf16>, vector<128x128xbf16>, vector<8x128xf32> -> vector<8x128xf32>
    %c0_74 = arith.constant 0 : index
    %c0_75 = arith.constant 0 : index
    %125 = vector.load %arg3[%c0_74, %c0_75] : memref<8x128xf32, #tpu.memory_space<vmem>>, vector<8x128xf32>
    %126 = arith.addf %124, %125 : vector<8x128xf32>
    %127 = math.tanh %126 : vector<8x128xf32>
    %128 = arith.truncf %127 : vector<8x128xf32> to vector<8x128xbf16>
    %c0_76 = arith.constant 0 : index
    %c0_77 = arith.constant 0 : index
    %129 = vector.load %arg4[%c0_76, %c0_77] : memref<128x128xbf16, #tpu.memory_space<vmem>>, vector<128x128xbf16>
    %cst_78 = arith.constant dense<0.000000e+00> : vector<8x128xf32>
    %130 = tpu.matmul %128, %129, %cst_78 {dimension_numbers = #tpu.dot_dimension_numbers<[1], [0], [0], [1], [0, 0, 1, 1], [], []>} : vector<8x128xbf16>, vector<128x128xbf16>, vector<8x128xf32> -> vector<8x128xf32>
    %c0_79 = arith.constant 0 : index
    %c0_80 = arith.constant 0 : index
    %131 = vector.load %arg5[%c0_79, %c0_80] : memref<8x128xf32, #tpu.memory_space<vmem>>, vector<8x128xf32>
    %132 = arith.addf %130, %131 : vector<8x128xf32>
    %cst_81 = arith.constant 0.333333343 : f32
    %133 = vector.broadcast %cst_81 : f32 to vector<8x128xf32>
    %134 = arith.mulf %118, %133 : vector<8x128xf32>
    %135 = arith.subf %132, %134 : vector<8x128xf32>
    %136 = arith.addf %104, %135 : vector<8x128xf32>
    %137 = arith.truncf %136 : vector<8x128xf32> to vector<8x128xbf16>
    %c0_82 = arith.constant 0 : index
    %c0_83 = arith.constant 0 : index
    %138 = vector.load %arg2[%c0_82, %c0_83] : memref<128x128xbf16, #tpu.memory_space<vmem>>, vector<128x128xbf16>
    %cst_84 = arith.constant dense<0.000000e+00> : vector<8x128xf32>
    %139 = tpu.matmul %137, %138, %cst_84 {dimension_numbers = #tpu.dot_dimension_numbers<[1], [0], [0], [1], [0, 0, 1, 1], [], []>} : vector<8x128xbf16>, vector<128x128xbf16>, vector<8x128xf32> -> vector<8x128xf32>
    %c0_85 = arith.constant 0 : index
    %c0_86 = arith.constant 0 : index
    %140 = vector.load %arg3[%c0_85, %c0_86] : memref<8x128xf32, #tpu.memory_space<vmem>>, vector<8x128xf32>
    %141 = arith.addf %139, %140 : vector<8x128xf32>
    %142 = math.tanh %141 : vector<8x128xf32>
    %143 = arith.truncf %142 : vector<8x128xf32> to vector<8x128xbf16>
    %c0_87 = arith.constant 0 : index
    %c0_88 = arith.constant 0 : index
    %144 = vector.load %arg4[%c0_87, %c0_88] : memref<128x128xbf16, #tpu.memory_space<vmem>>, vector<128x128xbf16>
    %cst_89 = arith.constant dense<0.000000e+00> : vector<8x128xf32>
    %145 = tpu.matmul %143, %144, %cst_89 {dimension_numbers = #tpu.dot_dimension_numbers<[1], [0], [0], [1], [0, 0, 1, 1], [], []>} : vector<8x128xbf16>, vector<128x128xbf16>, vector<8x128xf32> -> vector<8x128xf32>
    %c0_90 = arith.constant 0 : index
    %c0_91 = arith.constant 0 : index
    %146 = vector.load %arg5[%c0_90, %c0_91] : memref<8x128xf32, #tpu.memory_space<vmem>>, vector<8x128xf32>
    %147 = arith.addf %145, %146 : vector<8x128xf32>
    %148 = arith.subf %118, %132 : vector<8x128xf32>
    %149 = arith.addf %148, %147 : vector<8x128xf32>
    %150 = arith.addf %104, %149 : vector<8x128xf32>
    %151 = arith.truncf %150 : vector<8x128xf32> to vector<8x128xbf16>
    %c0_92 = arith.constant 0 : index
    %c0_93 = arith.constant 0 : index
    %152 = vector.load %arg2[%c0_92, %c0_93] : memref<128x128xbf16, #tpu.memory_space<vmem>>, vector<128x128xbf16>
    %cst_94 = arith.constant dense<0.000000e+00> : vector<8x128xf32>
    %153 = tpu.matmul %151, %152, %cst_94 {dimension_numbers = #tpu.dot_dimension_numbers<[1], [0], [0], [1], [0, 0, 1, 1], [], []>} : vector<8x128xbf16>, vector<128x128xbf16>, vector<8x128xf32> -> vector<8x128xf32>
    %c0_95 = arith.constant 0 : index
    %c0_96 = arith.constant 0 : index
    %154 = vector.load %arg3[%c0_95, %c0_96] : memref<8x128xf32, #tpu.memory_space<vmem>>, vector<8x128xf32>
    %155 = arith.addf %153, %154 : vector<8x128xf32>
    %156 = math.tanh %155 : vector<8x128xf32>
    %157 = arith.truncf %156 : vector<8x128xf32> to vector<8x128xbf16>
    %c0_97 = arith.constant 0 : index
    %c0_98 = arith.constant 0 : index
    %158 = vector.load %arg4[%c0_97, %c0_98] : memref<128x128xbf16, #tpu.memory_space<vmem>>, vector<128x128xbf16>
    %cst_99 = arith.constant dense<0.000000e+00> : vector<8x128xf32>
    %159 = tpu.matmul %157, %158, %cst_99 {dimension_numbers = #tpu.dot_dimension_numbers<[1], [0], [0], [1], [0, 0, 1, 1], [], []>} : vector<8x128xbf16>, vector<128x128xbf16>, vector<8x128xf32> -> vector<8x128xf32>
    %c0_100 = arith.constant 0 : index
    %c0_101 = arith.constant 0 : index
    %160 = vector.load %arg5[%c0_100, %c0_101] : memref<8x128xf32, #tpu.memory_space<vmem>>, vector<8x128xf32>
    %161 = arith.addf %159, %160 : vector<8x128xf32>
    %cst_102 = arith.constant 3.000000e+00 : f32
    %162 = vector.broadcast %cst_102 : f32 to vector<8x128xf32>
    %163 = arith.mulf %162, %132 : vector<8x128xf32>
    %164 = arith.addf %118, %163 : vector<8x128xf32>
    %cst_103 = arith.constant 3.000000e+00 : f32
    %165 = vector.broadcast %cst_103 : f32 to vector<8x128xf32>
    %166 = arith.mulf %165, %147 : vector<8x128xf32>
    %167 = arith.addf %164, %166 : vector<8x128xf32>
    %168 = arith.addf %167, %161 : vector<8x128xf32>
    %cst_104 = arith.constant 1.250000e-01 : f32
    %169 = vector.broadcast %cst_104 : f32 to vector<8x128xf32>
    %170 = arith.mulf %168, %169 : vector<8x128xf32>
    %171 = arith.addf %104, %170 : vector<8x128xf32>
    %172 = arith.truncf %171 : vector<8x128xf32> to vector<8x128xbf16>
    %c0_105 = arith.constant 0 : index
    %c0_106 = arith.constant 0 : index
    %173 = vector.load %arg6[%c0_105, %c0_106] : memref<128x128xbf16, #tpu.memory_space<vmem>>, vector<128x128xbf16>
    %cst_107 = arith.constant dense<0.000000e+00> : vector<8x128xf32>
    %174 = tpu.matmul %172, %173, %cst_107 {dimension_numbers = #tpu.dot_dimension_numbers<[1], [0], [0], [1], [0, 0, 1, 1], [], []>} : vector<8x128xbf16>, vector<128x128xbf16>, vector<8x128xf32> -> vector<8x128xf32>
    %c0_108 = arith.constant 0 : index
    %c0_109 = arith.constant 0 : index
    %175 = vector.load %arg7[%c0_108, %c0_109] : memref<8x128xf32, #tpu.memory_space<vmem>>, vector<8x128xf32>
    %176 = arith.addf %174, %175 : vector<8x128xf32>
    %177 = vector.extract_strided_slice %107 {offsets = [0, 0], sizes = [8, 32], strides = [1, 1]} : vector<8x128xf32> to vector<8x32xf32>
    %178 = vector.extract_strided_slice %176 {offsets = [0, 0], sizes = [8, 32], strides = [1, 1]} : vector<8x128xf32> to vector<8x32xf32>
    %179 = arith.addf %177, %178 : vector<8x32xf32>
    %180 = arith.negf %179 : vector<8x32xf32>
    %181 = math.exp %180 : vector<8x32xf32>
    %cst_110 = arith.constant 1.000000e+00 : f32
    %182 = vector.broadcast %cst_110 : f32 to vector<8x32xf32>
    %183 = arith.addf %182, %181 : vector<8x32xf32>
    %184 = arith.divf %182, %183 : vector<8x32xf32>
    %185 = vector.extract_strided_slice %107 {offsets = [0, 32], sizes = [8, 32], strides = [1, 1]} : vector<8x128xf32> to vector<8x32xf32>
    %186 = vector.extract_strided_slice %176 {offsets = [0, 32], sizes = [8, 32], strides = [1, 1]} : vector<8x128xf32> to vector<8x32xf32>
    %187 = arith.addf %185, %186 : vector<8x32xf32>
    %188 = arith.negf %187 : vector<8x32xf32>
    %189 = math.exp %188 : vector<8x32xf32>
    %cst_111 = arith.constant 1.000000e+00 : f32
    %190 = vector.broadcast %cst_111 : f32 to vector<8x32xf32>
    %191 = arith.addf %190, %189 : vector<8x32xf32>
    %192 = arith.divf %190, %191 : vector<8x32xf32>
    %193 = vector.extract_strided_slice %107 {offsets = [0, 64], sizes = [8, 32], strides = [1, 1]} : vector<8x128xf32> to vector<8x32xf32>
    %194 = vector.extract_strided_slice %176 {offsets = [0, 64], sizes = [8, 32], strides = [1, 1]} : vector<8x128xf32> to vector<8x32xf32>
    %195 = arith.mulf %184, %194 : vector<8x32xf32>
    %196 = arith.addf %193, %195 : vector<8x32xf32>
    %197 = math.tanh %196 : vector<8x32xf32>
    %cst_112 = arith.constant 1.000000e+00 : f32
    %198 = vector.broadcast %cst_112 : f32 to vector<8x32xf32>
    %199 = arith.subf %198, %192 : vector<8x32xf32>
    %200 = arith.mulf %199, %197 : vector<8x32xf32>
    %201 = vector.extract_strided_slice %171 {offsets = [0, 0], sizes = [8, 32], strides = [1, 1]} : vector<8x128xf32> to vector<8x32xf32>
    %202 = arith.mulf %192, %201 : vector<8x32xf32>
    %203 = arith.addf %200, %202 : vector<8x32xf32>
    %cst_113 = arith.constant 0.000000e+00 : f32
    %204 = vector.broadcast %cst_113 : f32 to vector<8x96xf32>
    %205 = tpu.concatenate %203, %204 in 1 : vector<8x32xf32>, vector<8x96xf32> -> vector<8x128xf32>
    %c2 = arith.constant 2 : index
    %c0_114 = arith.constant 0 : index
    %c0_115 = arith.constant 0 : index
    %206 = vector.load %arg1[%c2, %c0_114, %c0_115] : memref<8x8x128xbf16, #tpu.memory_space<vmem>>, vector<1x8x128xbf16>
    %207 = vector.shape_cast %206 : vector<1x8x128xbf16> to vector<8x128xbf16>
    %208 = arith.extf %207 : vector<8x128xbf16> to vector<8x128xf32>
    %209 = arith.truncf %205 : vector<8x128xf32> to vector<8x128xbf16>
    %c0_116 = arith.constant 0 : index
    %c0_117 = arith.constant 0 : index
    %210 = vector.load %arg2[%c0_116, %c0_117] : memref<128x128xbf16, #tpu.memory_space<vmem>>, vector<128x128xbf16>
    %cst_118 = arith.constant dense<0.000000e+00> : vector<8x128xf32>
    %211 = tpu.matmul %209, %210, %cst_118 {dimension_numbers = #tpu.dot_dimension_numbers<[1], [0], [0], [1], [0, 0, 1, 1], [], []>} : vector<8x128xbf16>, vector<128x128xbf16>, vector<8x128xf32> -> vector<8x128xf32>
    %c0_119 = arith.constant 0 : index
    %c0_120 = arith.constant 0 : index
    %212 = vector.load %arg3[%c0_119, %c0_120] : memref<8x128xf32, #tpu.memory_space<vmem>>, vector<8x128xf32>
    %213 = arith.addf %211, %212 : vector<8x128xf32>
    %214 = math.tanh %213 : vector<8x128xf32>
    %215 = arith.truncf %214 : vector<8x128xf32> to vector<8x128xbf16>
    %c0_121 = arith.constant 0 : index
    %c0_122 = arith.constant 0 : index
    %216 = vector.load %arg4[%c0_121, %c0_122] : memref<128x128xbf16, #tpu.memory_space<vmem>>, vector<128x128xbf16>
    %cst_123 = arith.constant dense<0.000000e+00> : vector<8x128xf32>
    %217 = tpu.matmul %215, %216, %cst_123 {dimension_numbers = #tpu.dot_dimension_numbers<[1], [0], [0], [1], [0, 0, 1, 1], [], []>} : vector<8x128xbf16>, vector<128x128xbf16>, vector<8x128xf32> -> vector<8x128xf32>
    %c0_124 = arith.constant 0 : index
    %c0_125 = arith.constant 0 : index
    %218 = vector.load %arg5[%c0_124, %c0_125] : memref<8x128xf32, #tpu.memory_space<vmem>>, vector<8x128xf32>
    %219 = arith.addf %217, %218 : vector<8x128xf32>
    %cst_126 = arith.constant 0.333333343 : f32
    %220 = vector.broadcast %cst_126 : f32 to vector<8x128xf32>
    %221 = arith.mulf %219, %220 : vector<8x128xf32>
    %222 = arith.addf %205, %221 : vector<8x128xf32>
    %223 = arith.truncf %222 : vector<8x128xf32> to vector<8x128xbf16>
    %c0_127 = arith.constant 0 : index
    %c0_128 = arith.constant 0 : index
    %224 = vector.load %arg2[%c0_127, %c0_128] : memref<128x128xbf16, #tpu.memory_space<vmem>>, vector<128x128xbf16>
    %cst_129 = arith.constant dense<0.000000e+00> : vector<8x128xf32>
    %225 = tpu.matmul %223, %224, %cst_129 {dimension_numbers = #tpu.dot_dimension_numbers<[1], [0], [0], [1], [0, 0, 1, 1], [], []>} : vector<8x128xbf16>, vector<128x128xbf16>, vector<8x128xf32> -> vector<8x128xf32>
    %c0_130 = arith.constant 0 : index
    %c0_131 = arith.constant 0 : index
    %226 = vector.load %arg3[%c0_130, %c0_131] : memref<8x128xf32, #tpu.memory_space<vmem>>, vector<8x128xf32>
    %227 = arith.addf %225, %226 : vector<8x128xf32>
    %228 = math.tanh %227 : vector<8x128xf32>
    %229 = arith.truncf %228 : vector<8x128xf32> to vector<8x128xbf16>
    %c0_132 = arith.constant 0 : index
    %c0_133 = arith.constant 0 : index
    %230 = vector.load %arg4[%c0_132, %c0_133] : memref<128x128xbf16, #tpu.memory_space<vmem>>, vector<128x128xbf16>
    %cst_134 = arith.constant dense<0.000000e+00> : vector<8x128xf32>
    %231 = tpu.matmul %229, %230, %cst_134 {dimension_numbers = #tpu.dot_dimension_numbers<[1], [0], [0], [1], [0, 0, 1, 1], [], []>} : vector<8x128xbf16>, vector<128x128xbf16>, vector<8x128xf32> -> vector<8x128xf32>
    %c0_135 = arith.constant 0 : index
    %c0_136 = arith.constant 0 : index
    %232 = vector.load %arg5[%c0_135, %c0_136] : memref<8x128xf32, #tpu.memory_space<vmem>>, vector<8x128xf32>
    %233 = arith.addf %231, %232 : vector<8x128xf32>
    %cst_137 = arith.constant 0.333333343 : f32
    %234 = vector.broadcast %cst_137 : f32 to vector<8x128xf32>
    %235 = arith.mulf %219, %234 : vector<8x128xf32>
    %236 = arith.subf %233, %235 : vector<8x128xf32>
    %237 = arith.addf %205, %236 : vector<8x128xf32>
    %238 = arith.truncf %237 : vector<8x128xf32> to vector<8x128xbf16>
    %c0_138 = arith.constant 0 : index
    %c0_139 = arith.constant 0 : index
    %239 = vector.load %arg2[%c0_138, %c0_139] : memref<128x128xbf16, #tpu.memory_space<vmem>>, vector<128x128xbf16>
    %cst_140 = arith.constant dense<0.000000e+00> : vector<8x128xf32>
    %240 = tpu.matmul %238, %239, %cst_140 {dimension_numbers = #tpu.dot_dimension_numbers<[1], [0], [0], [1], [0, 0, 1, 1], [], []>} : vector<8x128xbf16>, vector<128x128xbf16>, vector<8x128xf32> -> vector<8x128xf32>
    %c0_141 = arith.constant 0 : index
    %c0_142 = arith.constant 0 : index
    %241 = vector.load %arg3[%c0_141, %c0_142] : memref<8x128xf32, #tpu.memory_space<vmem>>, vector<8x128xf32>
    %242 = arith.addf %240, %241 : vector<8x128xf32>
    %243 = math.tanh %242 : vector<8x128xf32>
    %244 = arith.truncf %243 : vector<8x128xf32> to vector<8x128xbf16>
    %c0_143 = arith.constant 0 : index
    %c0_144 = arith.constant 0 : index
    %245 = vector.load %arg4[%c0_143, %c0_144] : memref<128x128xbf16, #tpu.memory_space<vmem>>, vector<128x128xbf16>
    %cst_145 = arith.constant dense<0.000000e+00> : vector<8x128xf32>
    %246 = tpu.matmul %244, %245, %cst_145 {dimension_numbers = #tpu.dot_dimension_numbers<[1], [0], [0], [1], [0, 0, 1, 1], [], []>} : vector<8x128xbf16>, vector<128x128xbf16>, vector<8x128xf32> -> vector<8x128xf32>
    %c0_146 = arith.constant 0 : index
    %c0_147 = arith.constant 0 : index
    %247 = vector.load %arg5[%c0_146, %c0_147] : memref<8x128xf32, #tpu.memory_space<vmem>>, vector<8x128xf32>
    %248 = arith.addf %246, %247 : vector<8x128xf32>
    %249 = arith.subf %219, %233 : vector<8x128xf32>
    %250 = arith.addf %249, %248 : vector<8x128xf32>
    %251 = arith.addf %205, %250 : vector<8x128xf32>
    %252 = arith.truncf %251 : vector<8x128xf32> to vector<8x128xbf16>
    %c0_148 = arith.constant 0 : index
    %c0_149 = arith.constant 0 : index
    %253 = vector.load %arg2[%c0_148, %c0_149] : memref<128x128xbf16, #tpu.memory_space<vmem>>, vector<128x128xbf16>
    %cst_150 = arith.constant dense<0.000000e+00> : vector<8x128xf32>
    %254 = tpu.matmul %252, %253, %cst_150 {dimension_numbers = #tpu.dot_dimension_numbers<[1], [0], [0], [1], [0, 0, 1, 1], [], []>} : vector<8x128xbf16>, vector<128x128xbf16>, vector<8x128xf32> -> vector<8x128xf32>
    %c0_151 = arith.constant 0 : index
    %c0_152 = arith.constant 0 : index
    %255 = vector.load %arg3[%c0_151, %c0_152] : memref<8x128xf32, #tpu.memory_space<vmem>>, vector<8x128xf32>
    %256 = arith.addf %254, %255 : vector<8x128xf32>
    %257 = math.tanh %256 : vector<8x128xf32>
    %258 = arith.truncf %257 : vector<8x128xf32> to vector<8x128xbf16>
    %c0_153 = arith.constant 0 : index
    %c0_154 = arith.constant 0 : index
    %259 = vector.load %arg4[%c0_153, %c0_154] : memref<128x128xbf16, #tpu.memory_space<vmem>>, vector<128x128xbf16>
    %cst_155 = arith.constant dense<0.000000e+00> : vector<8x128xf32>
    %260 = tpu.matmul %258, %259, %cst_155 {dimension_numbers = #tpu.dot_dimension_numbers<[1], [0], [0], [1], [0, 0, 1, 1], [], []>} : vector<8x128xbf16>, vector<128x128xbf16>, vector<8x128xf32> -> vector<8x128xf32>
    %c0_156 = arith.constant 0 : index
    %c0_157 = arith.constant 0 : index
    %261 = vector.load %arg5[%c0_156, %c0_157] : memref<8x128xf32, #tpu.memory_space<vmem>>, vector<8x128xf32>
    %262 = arith.addf %260, %261 : vector<8x128xf32>
    %cst_158 = arith.constant 3.000000e+00 : f32
    %263 = vector.broadcast %cst_158 : f32 to vector<8x128xf32>
    %264 = arith.mulf %263, %233 : vector<8x128xf32>
    %265 = arith.addf %219, %264 : vector<8x128xf32>
    %cst_159 = arith.constant 3.000000e+00 : f32
    %266 = vector.broadcast %cst_159 : f32 to vector<8x128xf32>
    %267 = arith.mulf %266, %248 : vector<8x128xf32>
    %268 = arith.addf %265, %267 : vector<8x128xf32>
    %269 = arith.addf %268, %262 : vector<8x128xf32>
    %cst_160 = arith.constant 1.250000e-01 : f32
    %270 = vector.broadcast %cst_160 : f32 to vector<8x128xf32>
    %271 = arith.mulf %269, %270 : vector<8x128xf32>
    %272 = arith.addf %205, %271 : vector<8x128xf32>
    %273 = arith.truncf %272 : vector<8x128xf32> to vector<8x128xbf16>
    %c0_161 = arith.constant 0 : index
    %c0_162 = arith.constant 0 : index
    %274 = vector.load %arg6[%c0_161, %c0_162] : memref<128x128xbf16, #tpu.memory_space<vmem>>, vector<128x128xbf16>
    %cst_163 = arith.constant dense<0.000000e+00> : vector<8x128xf32>
    %275 = tpu.matmul %273, %274, %cst_163 {dimension_numbers = #tpu.dot_dimension_numbers<[1], [0], [0], [1], [0, 0, 1, 1], [], []>} : vector<8x128xbf16>, vector<128x128xbf16>, vector<8x128xf32> -> vector<8x128xf32>
    %c0_164 = arith.constant 0 : index
    %c0_165 = arith.constant 0 : index
    %276 = vector.load %arg7[%c0_164, %c0_165] : memref<8x128xf32, #tpu.memory_space<vmem>>, vector<8x128xf32>
    %277 = arith.addf %275, %276 : vector<8x128xf32>
    %278 = vector.extract_strided_slice %208 {offsets = [0, 0], sizes = [8, 32], strides = [1, 1]} : vector<8x128xf32> to vector<8x32xf32>
    %279 = vector.extract_strided_slice %277 {offsets = [0, 0], sizes = [8, 32], strides = [1, 1]} : vector<8x128xf32> to vector<8x32xf32>
    %280 = arith.addf %278, %279 : vector<8x32xf32>
    %281 = arith.negf %280 : vector<8x32xf32>
    %282 = math.exp %281 : vector<8x32xf32>
    %cst_166 = arith.constant 1.000000e+00 : f32
    %283 = vector.broadcast %cst_166 : f32 to vector<8x32xf32>
    %284 = arith.addf %283, %282 : vector<8x32xf32>
    %285 = arith.divf %283, %284 : vector<8x32xf32>
    %286 = vector.extract_strided_slice %208 {offsets = [0, 32], sizes = [8, 32], strides = [1, 1]} : vector<8x128xf32> to vector<8x32xf32>
    %287 = vector.extract_strided_slice %277 {offsets = [0, 32], sizes = [8, 32], strides = [1, 1]} : vector<8x128xf32> to vector<8x32xf32>
    %288 = arith.addf %286, %287 : vector<8x32xf32>
    %289 = arith.negf %288 : vector<8x32xf32>
    %290 = math.exp %289 : vector<8x32xf32>
    %cst_167 = arith.constant 1.000000e+00 : f32
    %291 = vector.broadcast %cst_167 : f32 to vector<8x32xf32>
    %292 = arith.addf %291, %290 : vector<8x32xf32>
    %293 = arith.divf %291, %292 : vector<8x32xf32>
    %294 = vector.extract_strided_slice %208 {offsets = [0, 64], sizes = [8, 32], strides = [1, 1]} : vector<8x128xf32> to vector<8x32xf32>
    %295 = vector.extract_strided_slice %277 {offsets = [0, 64], sizes = [8, 32], strides = [1, 1]} : vector<8x128xf32> to vector<8x32xf32>
    %296 = arith.mulf %285, %295 : vector<8x32xf32>
    %297 = arith.addf %294, %296 : vector<8x32xf32>
    %298 = math.tanh %297 : vector<8x32xf32>
    %cst_168 = arith.constant 1.000000e+00 : f32
    %299 = vector.broadcast %cst_168 : f32 to vector<8x32xf32>
    %300 = arith.subf %299, %293 : vector<8x32xf32>
    %301 = arith.mulf %300, %298 : vector<8x32xf32>
    %302 = vector.extract_strided_slice %272 {offsets = [0, 0], sizes = [8, 32], strides = [1, 1]} : vector<8x128xf32> to vector<8x32xf32>
    %303 = arith.mulf %293, %302 : vector<8x32xf32>
    %304 = arith.addf %301, %303 : vector<8x32xf32>
    %cst_169 = arith.constant 0.000000e+00 : f32
    %305 = vector.broadcast %cst_169 : f32 to vector<8x96xf32>
    %306 = tpu.concatenate %304, %305 in 1 : vector<8x32xf32>, vector<8x96xf32> -> vector<8x128xf32>
    %c3 = arith.constant 3 : index
    %c0_170 = arith.constant 0 : index
    %c0_171 = arith.constant 0 : index
    %307 = vector.load %arg1[%c3, %c0_170, %c0_171] : memref<8x8x128xbf16, #tpu.memory_space<vmem>>, vector<1x8x128xbf16>
    %308 = vector.shape_cast %307 : vector<1x8x128xbf16> to vector<8x128xbf16>
    %309 = arith.extf %308 : vector<8x128xbf16> to vector<8x128xf32>
    %310 = arith.truncf %306 : vector<8x128xf32> to vector<8x128xbf16>
    %c0_172 = arith.constant 0 : index
    %c0_173 = arith.constant 0 : index
    %311 = vector.load %arg2[%c0_172, %c0_173] : memref<128x128xbf16, #tpu.memory_space<vmem>>, vector<128x128xbf16>
    %cst_174 = arith.constant dense<0.000000e+00> : vector<8x128xf32>
    %312 = tpu.matmul %310, %311, %cst_174 {dimension_numbers = #tpu.dot_dimension_numbers<[1], [0], [0], [1], [0, 0, 1, 1], [], []>} : vector<8x128xbf16>, vector<128x128xbf16>, vector<8x128xf32> -> vector<8x128xf32>
    %c0_175 = arith.constant 0 : index
    %c0_176 = arith.constant 0 : index
    %313 = vector.load %arg3[%c0_175, %c0_176] : memref<8x128xf32, #tpu.memory_space<vmem>>, vector<8x128xf32>
    %314 = arith.addf %312, %313 : vector<8x128xf32>
    %315 = math.tanh %314 : vector<8x128xf32>
    %316 = arith.truncf %315 : vector<8x128xf32> to vector<8x128xbf16>
    %c0_177 = arith.constant 0 : index
    %c0_178 = arith.constant 0 : index
    %317 = vector.load %arg4[%c0_177, %c0_178] : memref<128x128xbf16, #tpu.memory_space<vmem>>, vector<128x128xbf16>
    %cst_179 = arith.constant dense<0.000000e+00> : vector<8x128xf32>
    %318 = tpu.matmul %316, %317, %cst_179 {dimension_numbers = #tpu.dot_dimension_numbers<[1], [0], [0], [1], [0, 0, 1, 1], [], []>} : vector<8x128xbf16>, vector<128x128xbf16>, vector<8x128xf32> -> vector<8x128xf32>
    %c0_180 = arith.constant 0 : index
    %c0_181 = arith.constant 0 : index
    %319 = vector.load %arg5[%c0_180, %c0_181] : memref<8x128xf32, #tpu.memory_space<vmem>>, vector<8x128xf32>
    %320 = arith.addf %318, %319 : vector<8x128xf32>
    %cst_182 = arith.constant 0.333333343 : f32
    %321 = vector.broadcast %cst_182 : f32 to vector<8x128xf32>
    %322 = arith.mulf %320, %321 : vector<8x128xf32>
    %323 = arith.addf %306, %322 : vector<8x128xf32>
    %324 = arith.truncf %323 : vector<8x128xf32> to vector<8x128xbf16>
    %c0_183 = arith.constant 0 : index
    %c0_184 = arith.constant 0 : index
    %325 = vector.load %arg2[%c0_183, %c0_184] : memref<128x128xbf16, #tpu.memory_space<vmem>>, vector<128x128xbf16>
    %cst_185 = arith.constant dense<0.000000e+00> : vector<8x128xf32>
    %326 = tpu.matmul %324, %325, %cst_185 {dimension_numbers = #tpu.dot_dimension_numbers<[1], [0], [0], [1], [0, 0, 1, 1], [], []>} : vector<8x128xbf16>, vector<128x128xbf16>, vector<8x128xf32> -> vector<8x128xf32>
    %c0_186 = arith.constant 0 : index
    %c0_187 = arith.constant 0 : index
    %327 = vector.load %arg3[%c0_186, %c0_187] : memref<8x128xf32, #tpu.memory_space<vmem>>, vector<8x128xf32>
    %328 = arith.addf %326, %327 : vector<8x128xf32>
    %329 = math.tanh %328 : vector<8x128xf32>
    %330 = arith.truncf %329 : vector<8x128xf32> to vector<8x128xbf16>
    %c0_188 = arith.constant 0 : index
    %c0_189 = arith.constant 0 : index
    %331 = vector.load %arg4[%c0_188, %c0_189] : memref<128x128xbf16, #tpu.memory_space<vmem>>, vector<128x128xbf16>
    %cst_190 = arith.constant dense<0.000000e+00> : vector<8x128xf32>
    %332 = tpu.matmul %330, %331, %cst_190 {dimension_numbers = #tpu.dot_dimension_numbers<[1], [0], [0], [1], [0, 0, 1, 1], [], []>} : vector<8x128xbf16>, vector<128x128xbf16>, vector<8x128xf32> -> vector<8x128xf32>
    %c0_191 = arith.constant 0 : index
    %c0_192 = arith.constant 0 : index
    %333 = vector.load %arg5[%c0_191, %c0_192] : memref<8x128xf32, #tpu.memory_space<vmem>>, vector<8x128xf32>
    %334 = arith.addf %332, %333 : vector<8x128xf32>
    %cst_193 = arith.constant 0.333333343 : f32
    %335 = vector.broadcast %cst_193 : f32 to vector<8x128xf32>
    %336 = arith.mulf %320, %335 : vector<8x128xf32>
    %337 = arith.subf %334, %336 : vector<8x128xf32>
    %338 = arith.addf %306, %337 : vector<8x128xf32>
    %339 = arith.truncf %338 : vector<8x128xf32> to vector<8x128xbf16>
    %c0_194 = arith.constant 0 : index
    %c0_195 = arith.constant 0 : index
    %340 = vector.load %arg2[%c0_194, %c0_195] : memref<128x128xbf16, #tpu.memory_space<vmem>>, vector<128x128xbf16>
    %cst_196 = arith.constant dense<0.000000e+00> : vector<8x128xf32>
    %341 = tpu.matmul %339, %340, %cst_196 {dimension_numbers = #tpu.dot_dimension_numbers<[1], [0], [0], [1], [0, 0, 1, 1], [], []>} : vector<8x128xbf16>, vector<128x128xbf16>, vector<8x128xf32> -> vector<8x128xf32>
    %c0_197 = arith.constant 0 : index
    %c0_198 = arith.constant 0 : index
    %342 = vector.load %arg3[%c0_197, %c0_198] : memref<8x128xf32, #tpu.memory_space<vmem>>, vector<8x128xf32>
    %343 = arith.addf %341, %342 : vector<8x128xf32>
    %344 = math.tanh %343 : vector<8x128xf32>
    %345 = arith.truncf %344 : vector<8x128xf32> to vector<8x128xbf16>
    %c0_199 = arith.constant 0 : index
    %c0_200 = arith.constant 0 : index
    %346 = vector.load %arg4[%c0_199, %c0_200] : memref<128x128xbf16, #tpu.memory_space<vmem>>, vector<128x128xbf16>
    %cst_201 = arith.constant dense<0.000000e+00> : vector<8x128xf32>
    %347 = tpu.matmul %345, %346, %cst_201 {dimension_numbers = #tpu.dot_dimension_numbers<[1], [0], [0], [1], [0, 0, 1, 1], [], []>} : vector<8x128xbf16>, vector<128x128xbf16>, vector<8x128xf32> -> vector<8x128xf32>
    %c0_202 = arith.constant 0 : index
    %c0_203 = arith.constant 0 : index
    %348 = vector.load %arg5[%c0_202, %c0_203] : memref<8x128xf32, #tpu.memory_space<vmem>>, vector<8x128xf32>
    %349 = arith.addf %347, %348 : vector<8x128xf32>
    %350 = arith.subf %320, %334 : vector<8x128xf32>
    %351 = arith.addf %350, %349 : vector<8x128xf32>
    %352 = arith.addf %306, %351 : vector<8x128xf32>
    %353 = arith.truncf %352 : vector<8x128xf32> to vector<8x128xbf16>
    %c0_204 = arith.constant 0 : index
    %c0_205 = arith.constant 0 : index
    %354 = vector.load %arg2[%c0_204, %c0_205] : memref<128x128xbf16, #tpu.memory_space<vmem>>, vector<128x128xbf16>
    %cst_206 = arith.constant dense<0.000000e+00> : vector<8x128xf32>
    %355 = tpu.matmul %353, %354, %cst_206 {dimension_numbers = #tpu.dot_dimension_numbers<[1], [0], [0], [1], [0, 0, 1, 1], [], []>} : vector<8x128xbf16>, vector<128x128xbf16>, vector<8x128xf32> -> vector<8x128xf32>
    %c0_207 = arith.constant 0 : index
    %c0_208 = arith.constant 0 : index
    %356 = vector.load %arg3[%c0_207, %c0_208] : memref<8x128xf32, #tpu.memory_space<vmem>>, vector<8x128xf32>
    %357 = arith.addf %355, %356 : vector<8x128xf32>
    %358 = math.tanh %357 : vector<8x128xf32>
    %359 = arith.truncf %358 : vector<8x128xf32> to vector<8x128xbf16>
    %c0_209 = arith.constant 0 : index
    %c0_210 = arith.constant 0 : index
    %360 = vector.load %arg4[%c0_209, %c0_210] : memref<128x128xbf16, #tpu.memory_space<vmem>>, vector<128x128xbf16>
    %cst_211 = arith.constant dense<0.000000e+00> : vector<8x128xf32>
    %361 = tpu.matmul %359, %360, %cst_211 {dimension_numbers = #tpu.dot_dimension_numbers<[1], [0], [0], [1], [0, 0, 1, 1], [], []>} : vector<8x128xbf16>, vector<128x128xbf16>, vector<8x128xf32> -> vector<8x128xf32>
    %c0_212 = arith.constant 0 : index
    %c0_213 = arith.constant 0 : index
    %362 = vector.load %arg5[%c0_212, %c0_213] : memref<8x128xf32, #tpu.memory_space<vmem>>, vector<8x128xf32>
    %363 = arith.addf %361, %362 : vector<8x128xf32>
    %cst_214 = arith.constant 3.000000e+00 : f32
    %364 = vector.broadcast %cst_214 : f32 to vector<8x128xf32>
    %365 = arith.mulf %364, %334 : vector<8x128xf32>
    %366 = arith.addf %320, %365 : vector<8x128xf32>
    %cst_215 = arith.constant 3.000000e+00 : f32
    %367 = vector.broadcast %cst_215 : f32 to vector<8x128xf32>
    %368 = arith.mulf %367, %349 : vector<8x128xf32>
    %369 = arith.addf %366, %368 : vector<8x128xf32>
    %370 = arith.addf %369, %363 : vector<8x128xf32>
    %cst_216 = arith.constant 1.250000e-01 : f32
    %371 = vector.broadcast %cst_216 : f32 to vector<8x128xf32>
    %372 = arith.mulf %370, %371 : vector<8x128xf32>
    %373 = arith.addf %306, %372 : vector<8x128xf32>
    %374 = arith.truncf %373 : vector<8x128xf32> to vector<8x128xbf16>
    %c0_217 = arith.constant 0 : index
    %c0_218 = arith.constant 0 : index
    %375 = vector.load %arg6[%c0_217, %c0_218] : memref<128x128xbf16, #tpu.memory_space<vmem>>, vector<128x128xbf16>
    %cst_219 = arith.constant dense<0.000000e+00> : vector<8x128xf32>
    %376 = tpu.matmul %374, %375, %cst_219 {dimension_numbers = #tpu.dot_dimension_numbers<[1], [0], [0], [1], [0, 0, 1, 1], [], []>} : vector<8x128xbf16>, vector<128x128xbf16>, vector<8x128xf32> -> vector<8x128xf32>
    %c0_220 = arith.constant 0 : index
    %c0_221 = arith.constant 0 : index
    %377 = vector.load %arg7[%c0_220, %c0_221] : memref<8x128xf32, #tpu.memory_space<vmem>>, vector<8x128xf32>
    %378 = arith.addf %376, %377 : vector<8x128xf32>
    %379 = vector.extract_strided_slice %309 {offsets = [0, 0], sizes = [8, 32], strides = [1, 1]} : vector<8x128xf32> to vector<8x32xf32>
    %380 = vector.extract_strided_slice %378 {offsets = [0, 0], sizes = [8, 32], strides = [1, 1]} : vector<8x128xf32> to vector<8x32xf32>
    %381 = arith.addf %379, %380 : vector<8x32xf32>
    %382 = arith.negf %381 : vector<8x32xf32>
    %383 = math.exp %382 : vector<8x32xf32>
    %cst_222 = arith.constant 1.000000e+00 : f32
    %384 = vector.broadcast %cst_222 : f32 to vector<8x32xf32>
    %385 = arith.addf %384, %383 : vector<8x32xf32>
    %386 = arith.divf %384, %385 : vector<8x32xf32>
    %387 = vector.extract_strided_slice %309 {offsets = [0, 32], sizes = [8, 32], strides = [1, 1]} : vector<8x128xf32> to vector<8x32xf32>
    %388 = vector.extract_strided_slice %378 {offsets = [0, 32], sizes = [8, 32], strides = [1, 1]} : vector<8x128xf32> to vector<8x32xf32>
    %389 = arith.addf %387, %388 : vector<8x32xf32>
    %390 = arith.negf %389 : vector<8x32xf32>
    %391 = math.exp %390 : vector<8x32xf32>
    %cst_223 = arith.constant 1.000000e+00 : f32
    %392 = vector.broadcast %cst_223 : f32 to vector<8x32xf32>
    %393 = arith.addf %392, %391 : vector<8x32xf32>
    %394 = arith.divf %392, %393 : vector<8x32xf32>
    %395 = vector.extract_strided_slice %309 {offsets = [0, 64], sizes = [8, 32], strides = [1, 1]} : vector<8x128xf32> to vector<8x32xf32>
    %396 = vector.extract_strided_slice %378 {offsets = [0, 64], sizes = [8, 32], strides = [1, 1]} : vector<8x128xf32> to vector<8x32xf32>
    %397 = arith.mulf %386, %396 : vector<8x32xf32>
    %398 = arith.addf %395, %397 : vector<8x32xf32>
    %399 = math.tanh %398 : vector<8x32xf32>
    %cst_224 = arith.constant 1.000000e+00 : f32
    %400 = vector.broadcast %cst_224 : f32 to vector<8x32xf32>
    %401 = arith.subf %400, %394 : vector<8x32xf32>
    %402 = arith.mulf %401, %399 : vector<8x32xf32>
    %403 = vector.extract_strided_slice %373 {offsets = [0, 0], sizes = [8, 32], strides = [1, 1]} : vector<8x128xf32> to vector<8x32xf32>
    %404 = arith.mulf %394, %403 : vector<8x32xf32>
    %405 = arith.addf %402, %404 : vector<8x32xf32>
    %cst_225 = arith.constant 0.000000e+00 : f32
    %406 = vector.broadcast %cst_225 : f32 to vector<8x96xf32>
    %407 = tpu.concatenate %405, %406 in 1 : vector<8x32xf32>, vector<8x96xf32> -> vector<8x128xf32>
    %c4 = arith.constant 4 : index
    %c0_226 = arith.constant 0 : index
    %c0_227 = arith.constant 0 : index
    %408 = vector.load %arg1[%c4, %c0_226, %c0_227] : memref<8x8x128xbf16, #tpu.memory_space<vmem>>, vector<1x8x128xbf16>
    %409 = vector.shape_cast %408 : vector<1x8x128xbf16> to vector<8x128xbf16>
    %410 = arith.extf %409 : vector<8x128xbf16> to vector<8x128xf32>
    %411 = arith.truncf %407 : vector<8x128xf32> to vector<8x128xbf16>
    %c0_228 = arith.constant 0 : index
    %c0_229 = arith.constant 0 : index
    %412 = vector.load %arg2[%c0_228, %c0_229] : memref<128x128xbf16, #tpu.memory_space<vmem>>, vector<128x128xbf16>
    %cst_230 = arith.constant dense<0.000000e+00> : vector<8x128xf32>
    %413 = tpu.matmul %411, %412, %cst_230 {dimension_numbers = #tpu.dot_dimension_numbers<[1], [0], [0], [1], [0, 0, 1, 1], [], []>} : vector<8x128xbf16>, vector<128x128xbf16>, vector<8x128xf32> -> vector<8x128xf32>
    %c0_231 = arith.constant 0 : index
    %c0_232 = arith.constant 0 : index
    %414 = vector.load %arg3[%c0_231, %c0_232] : memref<8x128xf32, #tpu.memory_space<vmem>>, vector<8x128xf32>
    %415 = arith.addf %413, %414 : vector<8x128xf32>
    %416 = math.tanh %415 : vector<8x128xf32>
    %417 = arith.truncf %416 : vector<8x128xf32> to vector<8x128xbf16>
    %c0_233 = arith.constant 0 : index
    %c0_234 = arith.constant 0 : index
    %418 = vector.load %arg4[%c0_233, %c0_234] : memref<128x128xbf16, #tpu.memory_space<vmem>>, vector<128x128xbf16>
    %cst_235 = arith.constant dense<0.000000e+00> : vector<8x128xf32>
    %419 = tpu.matmul %417, %418, %cst_235 {dimension_numbers = #tpu.dot_dimension_numbers<[1], [0], [0], [1], [0, 0, 1, 1], [], []>} : vector<8x128xbf16>, vector<128x128xbf16>, vector<8x128xf32> -> vector<8x128xf32>
    %c0_236 = arith.constant 0 : index
    %c0_237 = arith.constant 0 : index
    %420 = vector.load %arg5[%c0_236, %c0_237] : memref<8x128xf32, #tpu.memory_space<vmem>>, vector<8x128xf32>
    %421 = arith.addf %419, %420 : vector<8x128xf32>
    %cst_238 = arith.constant 0.333333343 : f32
    %422 = vector.broadcast %cst_238 : f32 to vector<8x128xf32>
    %423 = arith.mulf %421, %422 : vector<8x128xf32>
    %424 = arith.addf %407, %423 : vector<8x128xf32>
    %425 = arith.truncf %424 : vector<8x128xf32> to vector<8x128xbf16>
    %c0_239 = arith.constant 0 : index
    %c0_240 = arith.constant 0 : index
    %426 = vector.load %arg2[%c0_239, %c0_240] : memref<128x128xbf16, #tpu.memory_space<vmem>>, vector<128x128xbf16>
    %cst_241 = arith.constant dense<0.000000e+00> : vector<8x128xf32>
    %427 = tpu.matmul %425, %426, %cst_241 {dimension_numbers = #tpu.dot_dimension_numbers<[1], [0], [0], [1], [0, 0, 1, 1], [], []>} : vector<8x128xbf16>, vector<128x128xbf16>, vector<8x128xf32> -> vector<8x128xf32>
    %c0_242 = arith.constant 0 : index
    %c0_243 = arith.constant 0 : index
    %428 = vector.load %arg3[%c0_242, %c0_243] : memref<8x128xf32, #tpu.memory_space<vmem>>, vector<8x128xf32>
    %429 = arith.addf %427, %428 : vector<8x128xf32>
    %430 = math.tanh %429 : vector<8x128xf32>
    %431 = arith.truncf %430 : vector<8x128xf32> to vector<8x128xbf16>
    %c0_244 = arith.constant 0 : index
    %c0_245 = arith.constant 0 : index
    %432 = vector.load %arg4[%c0_244, %c0_245] : memref<128x128xbf16, #tpu.memory_space<vmem>>, vector<128x128xbf16>
    %cst_246 = arith.constant dense<0.000000e+00> : vector<8x128xf32>
    %433 = tpu.matmul %431, %432, %cst_246 {dimension_numbers = #tpu.dot_dimension_numbers<[1], [0], [0], [1], [0, 0, 1, 1], [], []>} : vector<8x128xbf16>, vector<128x128xbf16>, vector<8x128xf32> -> vector<8x128xf32>
    %c0_247 = arith.constant 0 : index
    %c0_248 = arith.constant 0 : index
    %434 = vector.load %arg5[%c0_247, %c0_248] : memref<8x128xf32, #tpu.memory_space<vmem>>, vector<8x128xf32>
    %435 = arith.addf %433, %434 : vector<8x128xf32>
    %cst_249 = arith.constant 0.333333343 : f32
    %436 = vector.broadcast %cst_249 : f32 to vector<8x128xf32>
    %437 = arith.mulf %421, %436 : vector<8x128xf32>
    %438 = arith.subf %435, %437 : vector<8x128xf32>
    %439 = arith.addf %407, %438 : vector<8x128xf32>
    %440 = arith.truncf %439 : vector<8x128xf32> to vector<8x128xbf16>
    %c0_250 = arith.constant 0 : index
    %c0_251 = arith.constant 0 : index
    %441 = vector.load %arg2[%c0_250, %c0_251] : memref<128x128xbf16, #tpu.memory_space<vmem>>, vector<128x128xbf16>
    %cst_252 = arith.constant dense<0.000000e+00> : vector<8x128xf32>
    %442 = tpu.matmul %440, %441, %cst_252 {dimension_numbers = #tpu.dot_dimension_numbers<[1], [0], [0], [1], [0, 0, 1, 1], [], []>} : vector<8x128xbf16>, vector<128x128xbf16>, vector<8x128xf32> -> vector<8x128xf32>
    %c0_253 = arith.constant 0 : index
    %c0_254 = arith.constant 0 : index
    %443 = vector.load %arg3[%c0_253, %c0_254] : memref<8x128xf32, #tpu.memory_space<vmem>>, vector<8x128xf32>
    %444 = arith.addf %442, %443 : vector<8x128xf32>
    %445 = math.tanh %444 : vector<8x128xf32>
    %446 = arith.truncf %445 : vector<8x128xf32> to vector<8x128xbf16>
    %c0_255 = arith.constant 0 : index
    %c0_256 = arith.constant 0 : index
    %447 = vector.load %arg4[%c0_255, %c0_256] : memref<128x128xbf16, #tpu.memory_space<vmem>>, vector<128x128xbf16>
    %cst_257 = arith.constant dense<0.000000e+00> : vector<8x128xf32>
    %448 = tpu.matmul %446, %447, %cst_257 {dimension_numbers = #tpu.dot_dimension_numbers<[1], [0], [0], [1], [0, 0, 1, 1], [], []>} : vector<8x128xbf16>, vector<128x128xbf16>, vector<8x128xf32> -> vector<8x128xf32>
    %c0_258 = arith.constant 0 : index
    %c0_259 = arith.constant 0 : index
    %449 = vector.load %arg5[%c0_258, %c0_259] : memref<8x128xf32, #tpu.memory_space<vmem>>, vector<8x128xf32>
    %450 = arith.addf %448, %449 : vector<8x128xf32>
    %451 = arith.subf %421, %435 : vector<8x128xf32>
    %452 = arith.addf %451, %450 : vector<8x128xf32>
    %453 = arith.addf %407, %452 : vector<8x128xf32>
    %454 = arith.truncf %453 : vector<8x128xf32> to vector<8x128xbf16>
    %c0_260 = arith.constant 0 : index
    %c0_261 = arith.constant 0 : index
    %455 = vector.load %arg2[%c0_260, %c0_261] : memref<128x128xbf16, #tpu.memory_space<vmem>>, vector<128x128xbf16>
    %cst_262 = arith.constant dense<0.000000e+00> : vector<8x128xf32>
    %456 = tpu.matmul %454, %455, %cst_262 {dimension_numbers = #tpu.dot_dimension_numbers<[1], [0], [0], [1], [0, 0, 1, 1], [], []>} : vector<8x128xbf16>, vector<128x128xbf16>, vector<8x128xf32> -> vector<8x128xf32>
    %c0_263 = arith.constant 0 : index
    %c0_264 = arith.constant 0 : index
    %457 = vector.load %arg3[%c0_263, %c0_264] : memref<8x128xf32, #tpu.memory_space<vmem>>, vector<8x128xf32>
    %458 = arith.addf %456, %457 : vector<8x128xf32>
    %459 = math.tanh %458 : vector<8x128xf32>
    %460 = arith.truncf %459 : vector<8x128xf32> to vector<8x128xbf16>
    %c0_265 = arith.constant 0 : index
    %c0_266 = arith.constant 0 : index
    %461 = vector.load %arg4[%c0_265, %c0_266] : memref<128x128xbf16, #tpu.memory_space<vmem>>, vector<128x128xbf16>
    %cst_267 = arith.constant dense<0.000000e+00> : vector<8x128xf32>
    %462 = tpu.matmul %460, %461, %cst_267 {dimension_numbers = #tpu.dot_dimension_numbers<[1], [0], [0], [1], [0, 0, 1, 1], [], []>} : vector<8x128xbf16>, vector<128x128xbf16>, vector<8x128xf32> -> vector<8x128xf32>
    %c0_268 = arith.constant 0 : index
    %c0_269 = arith.constant 0 : index
    %463 = vector.load %arg5[%c0_268, %c0_269] : memref<8x128xf32, #tpu.memory_space<vmem>>, vector<8x128xf32>
    %464 = arith.addf %462, %463 : vector<8x128xf32>
    %cst_270 = arith.constant 3.000000e+00 : f32
    %465 = vector.broadcast %cst_270 : f32 to vector<8x128xf32>
    %466 = arith.mulf %465, %435 : vector<8x128xf32>
    %467 = arith.addf %421, %466 : vector<8x128xf32>
    %cst_271 = arith.constant 3.000000e+00 : f32
    %468 = vector.broadcast %cst_271 : f32 to vector<8x128xf32>
    %469 = arith.mulf %468, %450 : vector<8x128xf32>
    %470 = arith.addf %467, %469 : vector<8x128xf32>
    %471 = arith.addf %470, %464 : vector<8x128xf32>
    %cst_272 = arith.constant 1.250000e-01 : f32
    %472 = vector.broadcast %cst_272 : f32 to vector<8x128xf32>
    %473 = arith.mulf %471, %472 : vector<8x128xf32>
    %474 = arith.addf %407, %473 : vector<8x128xf32>
    %475 = arith.truncf %474 : vector<8x128xf32> to vector<8x128xbf16>
    %c0_273 = arith.constant 0 : index
    %c0_274 = arith.constant 0 : index
    %476 = vector.load %arg6[%c0_273, %c0_274] : memref<128x128xbf16, #tpu.memory_space<vmem>>, vector<128x128xbf16>
    %cst_275 = arith.constant dense<0.000000e+00> : vector<8x128xf32>
    %477 = tpu.matmul %475, %476, %cst_275 {dimension_numbers = #tpu.dot_dimension_numbers<[1], [0], [0], [1], [0, 0, 1, 1], [], []>} : vector<8x128xbf16>, vector<128x128xbf16>, vector<8x128xf32> -> vector<8x128xf32>
    %c0_276 = arith.constant 0 : index
    %c0_277 = arith.constant 0 : index
    %478 = vector.load %arg7[%c0_276, %c0_277] : memref<8x128xf32, #tpu.memory_space<vmem>>, vector<8x128xf32>
    %479 = arith.addf %477, %478 : vector<8x128xf32>
    %480 = vector.extract_strided_slice %410 {offsets = [0, 0], sizes = [8, 32], strides = [1, 1]} : vector<8x128xf32> to vector<8x32xf32>
    %481 = vector.extract_strided_slice %479 {offsets = [0, 0], sizes = [8, 32], strides = [1, 1]} : vector<8x128xf32> to vector<8x32xf32>
    %482 = arith.addf %480, %481 : vector<8x32xf32>
    %483 = arith.negf %482 : vector<8x32xf32>
    %484 = math.exp %483 : vector<8x32xf32>
    %cst_278 = arith.constant 1.000000e+00 : f32
    %485 = vector.broadcast %cst_278 : f32 to vector<8x32xf32>
    %486 = arith.addf %485, %484 : vector<8x32xf32>
    %487 = arith.divf %485, %486 : vector<8x32xf32>
    %488 = vector.extract_strided_slice %410 {offsets = [0, 32], sizes = [8, 32], strides = [1, 1]} : vector<8x128xf32> to vector<8x32xf32>
    %489 = vector.extract_strided_slice %479 {offsets = [0, 32], sizes = [8, 32], strides = [1, 1]} : vector<8x128xf32> to vector<8x32xf32>
    %490 = arith.addf %488, %489 : vector<8x32xf32>
    %491 = arith.negf %490 : vector<8x32xf32>
    %492 = math.exp %491 : vector<8x32xf32>
    %cst_279 = arith.constant 1.000000e+00 : f32
    %493 = vector.broadcast %cst_279 : f32 to vector<8x32xf32>
    %494 = arith.addf %493, %492 : vector<8x32xf32>
    %495 = arith.divf %493, %494 : vector<8x32xf32>
    %496 = vector.extract_strided_slice %410 {offsets = [0, 64], sizes = [8, 32], strides = [1, 1]} : vector<8x128xf32> to vector<8x32xf32>
    %497 = vector.extract_strided_slice %479 {offsets = [0, 64], sizes = [8, 32], strides = [1, 1]} : vector<8x128xf32> to vector<8x32xf32>
    %498 = arith.mulf %487, %497 : vector<8x32xf32>
    %499 = arith.addf %496, %498 : vector<8x32xf32>
    %500 = math.tanh %499 : vector<8x32xf32>
    %cst_280 = arith.constant 1.000000e+00 : f32
    %501 = vector.broadcast %cst_280 : f32 to vector<8x32xf32>
    %502 = arith.subf %501, %495 : vector<8x32xf32>
    %503 = arith.mulf %502, %500 : vector<8x32xf32>
    %504 = vector.extract_strided_slice %474 {offsets = [0, 0], sizes = [8, 32], strides = [1, 1]} : vector<8x128xf32> to vector<8x32xf32>
    %505 = arith.mulf %495, %504 : vector<8x32xf32>
    %506 = arith.addf %503, %505 : vector<8x32xf32>
    %cst_281 = arith.constant 0.000000e+00 : f32
    %507 = vector.broadcast %cst_281 : f32 to vector<8x96xf32>
    %508 = tpu.concatenate %506, %507 in 1 : vector<8x32xf32>, vector<8x96xf32> -> vector<8x128xf32>
    %c5 = arith.constant 5 : index
    %c0_282 = arith.constant 0 : index
    %c0_283 = arith.constant 0 : index
    %509 = vector.load %arg1[%c5, %c0_282, %c0_283] : memref<8x8x128xbf16, #tpu.memory_space<vmem>>, vector<1x8x128xbf16>
    %510 = vector.shape_cast %509 : vector<1x8x128xbf16> to vector<8x128xbf16>
    %511 = arith.extf %510 : vector<8x128xbf16> to vector<8x128xf32>
    %512 = arith.truncf %508 : vector<8x128xf32> to vector<8x128xbf16>
    %c0_284 = arith.constant 0 : index
    %c0_285 = arith.constant 0 : index
    %513 = vector.load %arg2[%c0_284, %c0_285] : memref<128x128xbf16, #tpu.memory_space<vmem>>, vector<128x128xbf16>
    %cst_286 = arith.constant dense<0.000000e+00> : vector<8x128xf32>
    %514 = tpu.matmul %512, %513, %cst_286 {dimension_numbers = #tpu.dot_dimension_numbers<[1], [0], [0], [1], [0, 0, 1, 1], [], []>} : vector<8x128xbf16>, vector<128x128xbf16>, vector<8x128xf32> -> vector<8x128xf32>
    %c0_287 = arith.constant 0 : index
    %c0_288 = arith.constant 0 : index
    %515 = vector.load %arg3[%c0_287, %c0_288] : memref<8x128xf32, #tpu.memory_space<vmem>>, vector<8x128xf32>
    %516 = arith.addf %514, %515 : vector<8x128xf32>
    %517 = math.tanh %516 : vector<8x128xf32>
    %518 = arith.truncf %517 : vector<8x128xf32> to vector<8x128xbf16>
    %c0_289 = arith.constant 0 : index
    %c0_290 = arith.constant 0 : index
    %519 = vector.load %arg4[%c0_289, %c0_290] : memref<128x128xbf16, #tpu.memory_space<vmem>>, vector<128x128xbf16>
    %cst_291 = arith.constant dense<0.000000e+00> : vector<8x128xf32>
    %520 = tpu.matmul %518, %519, %cst_291 {dimension_numbers = #tpu.dot_dimension_numbers<[1], [0], [0], [1], [0, 0, 1, 1], [], []>} : vector<8x128xbf16>, vector<128x128xbf16>, vector<8x128xf32> -> vector<8x128xf32>
    %c0_292 = arith.constant 0 : index
    %c0_293 = arith.constant 0 : index
    %521 = vector.load %arg5[%c0_292, %c0_293] : memref<8x128xf32, #tpu.memory_space<vmem>>, vector<8x128xf32>
    %522 = arith.addf %520, %521 : vector<8x128xf32>
    %cst_294 = arith.constant 0.333333343 : f32
    %523 = vector.broadcast %cst_294 : f32 to vector<8x128xf32>
    %524 = arith.mulf %522, %523 : vector<8x128xf32>
    %525 = arith.addf %508, %524 : vector<8x128xf32>
    %526 = arith.truncf %525 : vector<8x128xf32> to vector<8x128xbf16>
    %c0_295 = arith.constant 0 : index
    %c0_296 = arith.constant 0 : index
    %527 = vector.load %arg2[%c0_295, %c0_296] : memref<128x128xbf16, #tpu.memory_space<vmem>>, vector<128x128xbf16>
    %cst_297 = arith.constant dense<0.000000e+00> : vector<8x128xf32>
    %528 = tpu.matmul %526, %527, %cst_297 {dimension_numbers = #tpu.dot_dimension_numbers<[1], [0], [0], [1], [0, 0, 1, 1], [], []>} : vector<8x128xbf16>, vector<128x128xbf16>, vector<8x128xf32> -> vector<8x128xf32>
    %c0_298 = arith.constant 0 : index
    %c0_299 = arith.constant 0 : index
    %529 = vector.load %arg3[%c0_298, %c0_299] : memref<8x128xf32, #tpu.memory_space<vmem>>, vector<8x128xf32>
    %530 = arith.addf %528, %529 : vector<8x128xf32>
    %531 = math.tanh %530 : vector<8x128xf32>
    %532 = arith.truncf %531 : vector<8x128xf32> to vector<8x128xbf16>
    %c0_300 = arith.constant 0 : index
    %c0_301 = arith.constant 0 : index
    %533 = vector.load %arg4[%c0_300, %c0_301] : memref<128x128xbf16, #tpu.memory_space<vmem>>, vector<128x128xbf16>
    %cst_302 = arith.constant dense<0.000000e+00> : vector<8x128xf32>
    %534 = tpu.matmul %532, %533, %cst_302 {dimension_numbers = #tpu.dot_dimension_numbers<[1], [0], [0], [1], [0, 0, 1, 1], [], []>} : vector<8x128xbf16>, vector<128x128xbf16>, vector<8x128xf32> -> vector<8x128xf32>
    %c0_303 = arith.constant 0 : index
    %c0_304 = arith.constant 0 : index
    %535 = vector.load %arg5[%c0_303, %c0_304] : memref<8x128xf32, #tpu.memory_space<vmem>>, vector<8x128xf32>
    %536 = arith.addf %534, %535 : vector<8x128xf32>
    %cst_305 = arith.constant 0.333333343 : f32
    %537 = vector.broadcast %cst_305 : f32 to vector<8x128xf32>
    %538 = arith.mulf %522, %537 : vector<8x128xf32>
    %539 = arith.subf %536, %538 : vector<8x128xf32>
    %540 = arith.addf %508, %539 : vector<8x128xf32>
    %541 = arith.truncf %540 : vector<8x128xf32> to vector<8x128xbf16>
    %c0_306 = arith.constant 0 : index
    %c0_307 = arith.constant 0 : index
    %542 = vector.load %arg2[%c0_306, %c0_307] : memref<128x128xbf16, #tpu.memory_space<vmem>>, vector<128x128xbf16>
    %cst_308 = arith.constant dense<0.000000e+00> : vector<8x128xf32>
    %543 = tpu.matmul %541, %542, %cst_308 {dimension_numbers = #tpu.dot_dimension_numbers<[1], [0], [0], [1], [0, 0, 1, 1], [], []>} : vector<8x128xbf16>, vector<128x128xbf16>, vector<8x128xf32> -> vector<8x128xf32>
    %c0_309 = arith.constant 0 : index
    %c0_310 = arith.constant 0 : index
    %544 = vector.load %arg3[%c0_309, %c0_310] : memref<8x128xf32, #tpu.memory_space<vmem>>, vector<8x128xf32>
    %545 = arith.addf %543, %544 : vector<8x128xf32>
    %546 = math.tanh %545 : vector<8x128xf32>
    %547 = arith.truncf %546 : vector<8x128xf32> to vector<8x128xbf16>
    %c0_311 = arith.constant 0 : index
    %c0_312 = arith.constant 0 : index
    %548 = vector.load %arg4[%c0_311, %c0_312] : memref<128x128xbf16, #tpu.memory_space<vmem>>, vector<128x128xbf16>
    %cst_313 = arith.constant dense<0.000000e+00> : vector<8x128xf32>
    %549 = tpu.matmul %547, %548, %cst_313 {dimension_numbers = #tpu.dot_dimension_numbers<[1], [0], [0], [1], [0, 0, 1, 1], [], []>} : vector<8x128xbf16>, vector<128x128xbf16>, vector<8x128xf32> -> vector<8x128xf32>
    %c0_314 = arith.constant 0 : index
    %c0_315 = arith.constant 0 : index
    %550 = vector.load %arg5[%c0_314, %c0_315] : memref<8x128xf32, #tpu.memory_space<vmem>>, vector<8x128xf32>
    %551 = arith.addf %549, %550 : vector<8x128xf32>
    %552 = arith.subf %522, %536 : vector<8x128xf32>
    %553 = arith.addf %552, %551 : vector<8x128xf32>
    %554 = arith.addf %508, %553 : vector<8x128xf32>
    %555 = arith.truncf %554 : vector<8x128xf32> to vector<8x128xbf16>
    %c0_316 = arith.constant 0 : index
    %c0_317 = arith.constant 0 : index
    %556 = vector.load %arg2[%c0_316, %c0_317] : memref<128x128xbf16, #tpu.memory_space<vmem>>, vector<128x128xbf16>
    %cst_318 = arith.constant dense<0.000000e+00> : vector<8x128xf32>
    %557 = tpu.matmul %555, %556, %cst_318 {dimension_numbers = #tpu.dot_dimension_numbers<[1], [0], [0], [1], [0, 0, 1, 1], [], []>} : vector<8x128xbf16>, vector<128x128xbf16>, vector<8x128xf32> -> vector<8x128xf32>
    %c0_319 = arith.constant 0 : index
    %c0_320 = arith.constant 0 : index
    %558 = vector.load %arg3[%c0_319, %c0_320] : memref<8x128xf32, #tpu.memory_space<vmem>>, vector<8x128xf32>
    %559 = arith.addf %557, %558 : vector<8x128xf32>
    %560 = math.tanh %559 : vector<8x128xf32>
    %561 = arith.truncf %560 : vector<8x128xf32> to vector<8x128xbf16>
    %c0_321 = arith.constant 0 : index
    %c0_322 = arith.constant 0 : index
    %562 = vector.load %arg4[%c0_321, %c0_322] : memref<128x128xbf16, #tpu.memory_space<vmem>>, vector<128x128xbf16>
    %cst_323 = arith.constant dense<0.000000e+00> : vector<8x128xf32>
    %563 = tpu.matmul %561, %562, %cst_323 {dimension_numbers = #tpu.dot_dimension_numbers<[1], [0], [0], [1], [0, 0, 1, 1], [], []>} : vector<8x128xbf16>, vector<128x128xbf16>, vector<8x128xf32> -> vector<8x128xf32>
    %c0_324 = arith.constant 0 : index
    %c0_325 = arith.constant 0 : index
    %564 = vector.load %arg5[%c0_324, %c0_325] : memref<8x128xf32, #tpu.memory_space<vmem>>, vector<8x128xf32>
    %565 = arith.addf %563, %564 : vector<8x128xf32>
    %cst_326 = arith.constant 3.000000e+00 : f32
    %566 = vector.broadcast %cst_326 : f32 to vector<8x128xf32>
    %567 = arith.mulf %566, %536 : vector<8x128xf32>
    %568 = arith.addf %522, %567 : vector<8x128xf32>
    %cst_327 = arith.constant 3.000000e+00 : f32
    %569 = vector.broadcast %cst_327 : f32 to vector<8x128xf32>
    %570 = arith.mulf %569, %551 : vector<8x128xf32>
    %571 = arith.addf %568, %570 : vector<8x128xf32>
    %572 = arith.addf %571, %565 : vector<8x128xf32>
    %cst_328 = arith.constant 1.250000e-01 : f32
    %573 = vector.broadcast %cst_328 : f32 to vector<8x128xf32>
    %574 = arith.mulf %572, %573 : vector<8x128xf32>
    %575 = arith.addf %508, %574 : vector<8x128xf32>
    %576 = arith.truncf %575 : vector<8x128xf32> to vector<8x128xbf16>
    %c0_329 = arith.constant 0 : index
    %c0_330 = arith.constant 0 : index
    %577 = vector.load %arg6[%c0_329, %c0_330] : memref<128x128xbf16, #tpu.memory_space<vmem>>, vector<128x128xbf16>
    %cst_331 = arith.constant dense<0.000000e+00> : vector<8x128xf32>
    %578 = tpu.matmul %576, %577, %cst_331 {dimension_numbers = #tpu.dot_dimension_numbers<[1], [0], [0], [1], [0, 0, 1, 1], [], []>} : vector<8x128xbf16>, vector<128x128xbf16>, vector<8x128xf32> -> vector<8x128xf32>
    %c0_332 = arith.constant 0 : index
    %c0_333 = arith.constant 0 : index
    %579 = vector.load %arg7[%c0_332, %c0_333] : memref<8x128xf32, #tpu.memory_space<vmem>>, vector<8x128xf32>
    %580 = arith.addf %578, %579 : vector<8x128xf32>
    %581 = vector.extract_strided_slice %511 {offsets = [0, 0], sizes = [8, 32], strides = [1, 1]} : vector<8x128xf32> to vector<8x32xf32>
    %582 = vector.extract_strided_slice %580 {offsets = [0, 0], sizes = [8, 32], strides = [1, 1]} : vector<8x128xf32> to vector<8x32xf32>
    %583 = arith.addf %581, %582 : vector<8x32xf32>
    %584 = arith.negf %583 : vector<8x32xf32>
    %585 = math.exp %584 : vector<8x32xf32>
    %cst_334 = arith.constant 1.000000e+00 : f32
    %586 = vector.broadcast %cst_334 : f32 to vector<8x32xf32>
    %587 = arith.addf %586, %585 : vector<8x32xf32>
    %588 = arith.divf %586, %587 : vector<8x32xf32>
    %589 = vector.extract_strided_slice %511 {offsets = [0, 32], sizes = [8, 32], strides = [1, 1]} : vector<8x128xf32> to vector<8x32xf32>
    %590 = vector.extract_strided_slice %580 {offsets = [0, 32], sizes = [8, 32], strides = [1, 1]} : vector<8x128xf32> to vector<8x32xf32>
    %591 = arith.addf %589, %590 : vector<8x32xf32>
    %592 = arith.negf %591 : vector<8x32xf32>
    %593 = math.exp %592 : vector<8x32xf32>
    %cst_335 = arith.constant 1.000000e+00 : f32
    %594 = vector.broadcast %cst_335 : f32 to vector<8x32xf32>
    %595 = arith.addf %594, %593 : vector<8x32xf32>
    %596 = arith.divf %594, %595 : vector<8x32xf32>
    %597 = vector.extract_strided_slice %511 {offsets = [0, 64], sizes = [8, 32], strides = [1, 1]} : vector<8x128xf32> to vector<8x32xf32>
    %598 = vector.extract_strided_slice %580 {offsets = [0, 64], sizes = [8, 32], strides = [1, 1]} : vector<8x128xf32> to vector<8x32xf32>
    %599 = arith.mulf %588, %598 : vector<8x32xf32>
    %600 = arith.addf %597, %599 : vector<8x32xf32>
    %601 = math.tanh %600 : vector<8x32xf32>
    %cst_336 = arith.constant 1.000000e+00 : f32
    %602 = vector.broadcast %cst_336 : f32 to vector<8x32xf32>
    %603 = arith.subf %602, %596 : vector<8x32xf32>
    %604 = arith.mulf %603, %601 : vector<8x32xf32>
    %605 = vector.extract_strided_slice %575 {offsets = [0, 0], sizes = [8, 32], strides = [1, 1]} : vector<8x128xf32> to vector<8x32xf32>
    %606 = arith.mulf %596, %605 : vector<8x32xf32>
    %607 = arith.addf %604, %606 : vector<8x32xf32>
    %cst_337 = arith.constant 0.000000e+00 : f32
    %608 = vector.broadcast %cst_337 : f32 to vector<8x96xf32>
    %609 = tpu.concatenate %607, %608 in 1 : vector<8x32xf32>, vector<8x96xf32> -> vector<8x128xf32>
    %c6 = arith.constant 6 : index
    %c0_338 = arith.constant 0 : index
    %c0_339 = arith.constant 0 : index
    %610 = vector.load %arg1[%c6, %c0_338, %c0_339] : memref<8x8x128xbf16, #tpu.memory_space<vmem>>, vector<1x8x128xbf16>
    %611 = vector.shape_cast %610 : vector<1x8x128xbf16> to vector<8x128xbf16>
    %612 = arith.extf %611 : vector<8x128xbf16> to vector<8x128xf32>
    %613 = arith.truncf %609 : vector<8x128xf32> to vector<8x128xbf16>
    %c0_340 = arith.constant 0 : index
    %c0_341 = arith.constant 0 : index
    %614 = vector.load %arg2[%c0_340, %c0_341] : memref<128x128xbf16, #tpu.memory_space<vmem>>, vector<128x128xbf16>
    %cst_342 = arith.constant dense<0.000000e+00> : vector<8x128xf32>
    %615 = tpu.matmul %613, %614, %cst_342 {dimension_numbers = #tpu.dot_dimension_numbers<[1], [0], [0], [1], [0, 0, 1, 1], [], []>} : vector<8x128xbf16>, vector<128x128xbf16>, vector<8x128xf32> -> vector<8x128xf32>
    %c0_343 = arith.constant 0 : index
    %c0_344 = arith.constant 0 : index
    %616 = vector.load %arg3[%c0_343, %c0_344] : memref<8x128xf32, #tpu.memory_space<vmem>>, vector<8x128xf32>
    %617 = arith.addf %615, %616 : vector<8x128xf32>
    %618 = math.tanh %617 : vector<8x128xf32>
    %619 = arith.truncf %618 : vector<8x128xf32> to vector<8x128xbf16>
    %c0_345 = arith.constant 0 : index
    %c0_346 = arith.constant 0 : index
    %620 = vector.load %arg4[%c0_345, %c0_346] : memref<128x128xbf16, #tpu.memory_space<vmem>>, vector<128x128xbf16>
    %cst_347 = arith.constant dense<0.000000e+00> : vector<8x128xf32>
    %621 = tpu.matmul %619, %620, %cst_347 {dimension_numbers = #tpu.dot_dimension_numbers<[1], [0], [0], [1], [0, 0, 1, 1], [], []>} : vector<8x128xbf16>, vector<128x128xbf16>, vector<8x128xf32> -> vector<8x128xf32>
    %c0_348 = arith.constant 0 : index
    %c0_349 = arith.constant 0 : index
    %622 = vector.load %arg5[%c0_348, %c0_349] : memref<8x128xf32, #tpu.memory_space<vmem>>, vector<8x128xf32>
    %623 = arith.addf %621, %622 : vector<8x128xf32>
    %cst_350 = arith.constant 0.333333343 : f32
    %624 = vector.broadcast %cst_350 : f32 to vector<8x128xf32>
    %625 = arith.mulf %623, %624 : vector<8x128xf32>
    %626 = arith.addf %609, %625 : vector<8x128xf32>
    %627 = arith.truncf %626 : vector<8x128xf32> to vector<8x128xbf16>
    %c0_351 = arith.constant 0 : index
    %c0_352 = arith.constant 0 : index
    %628 = vector.load %arg2[%c0_351, %c0_352] : memref<128x128xbf16, #tpu.memory_space<vmem>>, vector<128x128xbf16>
    %cst_353 = arith.constant dense<0.000000e+00> : vector<8x128xf32>
    %629 = tpu.matmul %627, %628, %cst_353 {dimension_numbers = #tpu.dot_dimension_numbers<[1], [0], [0], [1], [0, 0, 1, 1], [], []>} : vector<8x128xbf16>, vector<128x128xbf16>, vector<8x128xf32> -> vector<8x128xf32>
    %c0_354 = arith.constant 0 : index
    %c0_355 = arith.constant 0 : index
    %630 = vector.load %arg3[%c0_354, %c0_355] : memref<8x128xf32, #tpu.memory_space<vmem>>, vector<8x128xf32>
    %631 = arith.addf %629, %630 : vector<8x128xf32>
    %632 = math.tanh %631 : vector<8x128xf32>
    %633 = arith.truncf %632 : vector<8x128xf32> to vector<8x128xbf16>
    %c0_356 = arith.constant 0 : index
    %c0_357 = arith.constant 0 : index
    %634 = vector.load %arg4[%c0_356, %c0_357] : memref<128x128xbf16, #tpu.memory_space<vmem>>, vector<128x128xbf16>
    %cst_358 = arith.constant dense<0.000000e+00> : vector<8x128xf32>
    %635 = tpu.matmul %633, %634, %cst_358 {dimension_numbers = #tpu.dot_dimension_numbers<[1], [0], [0], [1], [0, 0, 1, 1], [], []>} : vector<8x128xbf16>, vector<128x128xbf16>, vector<8x128xf32> -> vector<8x128xf32>
    %c0_359 = arith.constant 0 : index
    %c0_360 = arith.constant 0 : index
    %636 = vector.load %arg5[%c0_359, %c0_360] : memref<8x128xf32, #tpu.memory_space<vmem>>, vector<8x128xf32>
    %637 = arith.addf %635, %636 : vector<8x128xf32>
    %cst_361 = arith.constant 0.333333343 : f32
    %638 = vector.broadcast %cst_361 : f32 to vector<8x128xf32>
    %639 = arith.mulf %623, %638 : vector<8x128xf32>
    %640 = arith.subf %637, %639 : vector<8x128xf32>
    %641 = arith.addf %609, %640 : vector<8x128xf32>
    %642 = arith.truncf %641 : vector<8x128xf32> to vector<8x128xbf16>
    %c0_362 = arith.constant 0 : index
    %c0_363 = arith.constant 0 : index
    %643 = vector.load %arg2[%c0_362, %c0_363] : memref<128x128xbf16, #tpu.memory_space<vmem>>, vector<128x128xbf16>
    %cst_364 = arith.constant dense<0.000000e+00> : vector<8x128xf32>
    %644 = tpu.matmul %642, %643, %cst_364 {dimension_numbers = #tpu.dot_dimension_numbers<[1], [0], [0], [1], [0, 0, 1, 1], [], []>} : vector<8x128xbf16>, vector<128x128xbf16>, vector<8x128xf32> -> vector<8x128xf32>
    %c0_365 = arith.constant 0 : index
    %c0_366 = arith.constant 0 : index
    %645 = vector.load %arg3[%c0_365, %c0_366] : memref<8x128xf32, #tpu.memory_space<vmem>>, vector<8x128xf32>
    %646 = arith.addf %644, %645 : vector<8x128xf32>
    %647 = math.tanh %646 : vector<8x128xf32>
    %648 = arith.truncf %647 : vector<8x128xf32> to vector<8x128xbf16>
    %c0_367 = arith.constant 0 : index
    %c0_368 = arith.constant 0 : index
    %649 = vector.load %arg4[%c0_367, %c0_368] : memref<128x128xbf16, #tpu.memory_space<vmem>>, vector<128x128xbf16>
    %cst_369 = arith.constant dense<0.000000e+00> : vector<8x128xf32>
    %650 = tpu.matmul %648, %649, %cst_369 {dimension_numbers = #tpu.dot_dimension_numbers<[1], [0], [0], [1], [0, 0, 1, 1], [], []>} : vector<8x128xbf16>, vector<128x128xbf16>, vector<8x128xf32> -> vector<8x128xf32>
    %c0_370 = arith.constant 0 : index
    %c0_371 = arith.constant 0 : index
    %651 = vector.load %arg5[%c0_370, %c0_371] : memref<8x128xf32, #tpu.memory_space<vmem>>, vector<8x128xf32>
    %652 = arith.addf %650, %651 : vector<8x128xf32>
    %653 = arith.subf %623, %637 : vector<8x128xf32>
    %654 = arith.addf %653, %652 : vector<8x128xf32>
    %655 = arith.addf %609, %654 : vector<8x128xf32>
    %656 = arith.truncf %655 : vector<8x128xf32> to vector<8x128xbf16>
    %c0_372 = arith.constant 0 : index
    %c0_373 = arith.constant 0 : index
    %657 = vector.load %arg2[%c0_372, %c0_373] : memref<128x128xbf16, #tpu.memory_space<vmem>>, vector<128x128xbf16>
    %cst_374 = arith.constant dense<0.000000e+00> : vector<8x128xf32>
    %658 = tpu.matmul %656, %657, %cst_374 {dimension_numbers = #tpu.dot_dimension_numbers<[1], [0], [0], [1], [0, 0, 1, 1], [], []>} : vector<8x128xbf16>, vector<128x128xbf16>, vector<8x128xf32> -> vector<8x128xf32>
    %c0_375 = arith.constant 0 : index
    %c0_376 = arith.constant 0 : index
    %659 = vector.load %arg3[%c0_375, %c0_376] : memref<8x128xf32, #tpu.memory_space<vmem>>, vector<8x128xf32>
    %660 = arith.addf %658, %659 : vector<8x128xf32>
    %661 = math.tanh %660 : vector<8x128xf32>
    %662 = arith.truncf %661 : vector<8x128xf32> to vector<8x128xbf16>
    %c0_377 = arith.constant 0 : index
    %c0_378 = arith.constant 0 : index
    %663 = vector.load %arg4[%c0_377, %c0_378] : memref<128x128xbf16, #tpu.memory_space<vmem>>, vector<128x128xbf16>
    %cst_379 = arith.constant dense<0.000000e+00> : vector<8x128xf32>
    %664 = tpu.matmul %662, %663, %cst_379 {dimension_numbers = #tpu.dot_dimension_numbers<[1], [0], [0], [1], [0, 0, 1, 1], [], []>} : vector<8x128xbf16>, vector<128x128xbf16>, vector<8x128xf32> -> vector<8x128xf32>
    %c0_380 = arith.constant 0 : index
    %c0_381 = arith.constant 0 : index
    %665 = vector.load %arg5[%c0_380, %c0_381] : memref<8x128xf32, #tpu.memory_space<vmem>>, vector<8x128xf32>
    %666 = arith.addf %664, %665 : vector<8x128xf32>
    %cst_382 = arith.constant 3.000000e+00 : f32
    %667 = vector.broadcast %cst_382 : f32 to vector<8x128xf32>
    %668 = arith.mulf %667, %637 : vector<8x128xf32>
    %669 = arith.addf %623, %668 : vector<8x128xf32>
    %cst_383 = arith.constant 3.000000e+00 : f32
    %670 = vector.broadcast %cst_383 : f32 to vector<8x128xf32>
    %671 = arith.mulf %670, %652 : vector<8x128xf32>
    %672 = arith.addf %669, %671 : vector<8x128xf32>
    %673 = arith.addf %672, %666 : vector<8x128xf32>
    %cst_384 = arith.constant 1.250000e-01 : f32
    %674 = vector.broadcast %cst_384 : f32 to vector<8x128xf32>
    %675 = arith.mulf %673, %674 : vector<8x128xf32>
    %676 = arith.addf %609, %675 : vector<8x128xf32>
    %677 = arith.truncf %676 : vector<8x128xf32> to vector<8x128xbf16>
    %c0_385 = arith.constant 0 : index
    %c0_386 = arith.constant 0 : index
    %678 = vector.load %arg6[%c0_385, %c0_386] : memref<128x128xbf16, #tpu.memory_space<vmem>>, vector<128x128xbf16>
    %cst_387 = arith.constant dense<0.000000e+00> : vector<8x128xf32>
    %679 = tpu.matmul %677, %678, %cst_387 {dimension_numbers = #tpu.dot_dimension_numbers<[1], [0], [0], [1], [0, 0, 1, 1], [], []>} : vector<8x128xbf16>, vector<128x128xbf16>, vector<8x128xf32> -> vector<8x128xf32>
    %c0_388 = arith.constant 0 : index
    %c0_389 = arith.constant 0 : index
    %680 = vector.load %arg7[%c0_388, %c0_389] : memref<8x128xf32, #tpu.memory_space<vmem>>, vector<8x128xf32>
    %681 = arith.addf %679, %680 : vector<8x128xf32>
    %682 = vector.extract_strided_slice %612 {offsets = [0, 0], sizes = [8, 32], strides = [1, 1]} : vector<8x128xf32> to vector<8x32xf32>
    %683 = vector.extract_strided_slice %681 {offsets = [0, 0], sizes = [8, 32], strides = [1, 1]} : vector<8x128xf32> to vector<8x32xf32>
    %684 = arith.addf %682, %683 : vector<8x32xf32>
    %685 = arith.negf %684 : vector<8x32xf32>
    %686 = math.exp %685 : vector<8x32xf32>
    %cst_390 = arith.constant 1.000000e+00 : f32
    %687 = vector.broadcast %cst_390 : f32 to vector<8x32xf32>
    %688 = arith.addf %687, %686 : vector<8x32xf32>
    %689 = arith.divf %687, %688 : vector<8x32xf32>
    %690 = vector.extract_strided_slice %612 {offsets = [0, 32], sizes = [8, 32], strides = [1, 1]} : vector<8x128xf32> to vector<8x32xf32>
    %691 = vector.extract_strided_slice %681 {offsets = [0, 32], sizes = [8, 32], strides = [1, 1]} : vector<8x128xf32> to vector<8x32xf32>
    %692 = arith.addf %690, %691 : vector<8x32xf32>
    %693 = arith.negf %692 : vector<8x32xf32>
    %694 = math.exp %693 : vector<8x32xf32>
    %cst_391 = arith.constant 1.000000e+00 : f32
    %695 = vector.broadcast %cst_391 : f32 to vector<8x32xf32>
    %696 = arith.addf %695, %694 : vector<8x32xf32>
    %697 = arith.divf %695, %696 : vector<8x32xf32>
    %698 = vector.extract_strided_slice %612 {offsets = [0, 64], sizes = [8, 32], strides = [1, 1]} : vector<8x128xf32> to vector<8x32xf32>
    %699 = vector.extract_strided_slice %681 {offsets = [0, 64], sizes = [8, 32], strides = [1, 1]} : vector<8x128xf32> to vector<8x32xf32>
    %700 = arith.mulf %689, %699 : vector<8x32xf32>
    %701 = arith.addf %698, %700 : vector<8x32xf32>
    %702 = math.tanh %701 : vector<8x32xf32>
    %cst_392 = arith.constant 1.000000e+00 : f32
    %703 = vector.broadcast %cst_392 : f32 to vector<8x32xf32>
    %704 = arith.subf %703, %697 : vector<8x32xf32>
    %705 = arith.mulf %704, %702 : vector<8x32xf32>
    %706 = vector.extract_strided_slice %676 {offsets = [0, 0], sizes = [8, 32], strides = [1, 1]} : vector<8x128xf32> to vector<8x32xf32>
    %707 = arith.mulf %697, %706 : vector<8x32xf32>
    %708 = arith.addf %705, %707 : vector<8x32xf32>
    %cst_393 = arith.constant 0.000000e+00 : f32
    %709 = vector.broadcast %cst_393 : f32 to vector<8x96xf32>
    %710 = tpu.concatenate %708, %709 in 1 : vector<8x32xf32>, vector<8x96xf32> -> vector<8x128xf32>
    %c7 = arith.constant 7 : index
    %c0_394 = arith.constant 0 : index
    %c0_395 = arith.constant 0 : index
    %711 = vector.load %arg1[%c7, %c0_394, %c0_395] : memref<8x8x128xbf16, #tpu.memory_space<vmem>>, vector<1x8x128xbf16>
    %712 = vector.shape_cast %711 : vector<1x8x128xbf16> to vector<8x128xbf16>
    %713 = arith.extf %712 : vector<8x128xbf16> to vector<8x128xf32>
    %714 = arith.truncf %710 : vector<8x128xf32> to vector<8x128xbf16>
    %c0_396 = arith.constant 0 : index
    %c0_397 = arith.constant 0 : index
    %715 = vector.load %arg2[%c0_396, %c0_397] : memref<128x128xbf16, #tpu.memory_space<vmem>>, vector<128x128xbf16>
    %cst_398 = arith.constant dense<0.000000e+00> : vector<8x128xf32>
    %716 = tpu.matmul %714, %715, %cst_398 {dimension_numbers = #tpu.dot_dimension_numbers<[1], [0], [0], [1], [0, 0, 1, 1], [], []>} : vector<8x128xbf16>, vector<128x128xbf16>, vector<8x128xf32> -> vector<8x128xf32>
    %c0_399 = arith.constant 0 : index
    %c0_400 = arith.constant 0 : index
    %717 = vector.load %arg3[%c0_399, %c0_400] : memref<8x128xf32, #tpu.memory_space<vmem>>, vector<8x128xf32>
    %718 = arith.addf %716, %717 : vector<8x128xf32>
    %719 = math.tanh %718 : vector<8x128xf32>
    %720 = arith.truncf %719 : vector<8x128xf32> to vector<8x128xbf16>
    %c0_401 = arith.constant 0 : index
    %c0_402 = arith.constant 0 : index
    %721 = vector.load %arg4[%c0_401, %c0_402] : memref<128x128xbf16, #tpu.memory_space<vmem>>, vector<128x128xbf16>
    %cst_403 = arith.constant dense<0.000000e+00> : vector<8x128xf32>
    %722 = tpu.matmul %720, %721, %cst_403 {dimension_numbers = #tpu.dot_dimension_numbers<[1], [0], [0], [1], [0, 0, 1, 1], [], []>} : vector<8x128xbf16>, vector<128x128xbf16>, vector<8x128xf32> -> vector<8x128xf32>
    %c0_404 = arith.constant 0 : index
    %c0_405 = arith.constant 0 : index
    %723 = vector.load %arg5[%c0_404, %c0_405] : memref<8x128xf32, #tpu.memory_space<vmem>>, vector<8x128xf32>
    %724 = arith.addf %722, %723 : vector<8x128xf32>
    %cst_406 = arith.constant 0.333333343 : f32
    %725 = vector.broadcast %cst_406 : f32 to vector<8x128xf32>
    %726 = arith.mulf %724, %725 : vector<8x128xf32>
    %727 = arith.addf %710, %726 : vector<8x128xf32>
    %728 = arith.truncf %727 : vector<8x128xf32> to vector<8x128xbf16>
    %c0_407 = arith.constant 0 : index
    %c0_408 = arith.constant 0 : index
    %729 = vector.load %arg2[%c0_407, %c0_408] : memref<128x128xbf16, #tpu.memory_space<vmem>>, vector<128x128xbf16>
    %cst_409 = arith.constant dense<0.000000e+00> : vector<8x128xf32>
    %730 = tpu.matmul %728, %729, %cst_409 {dimension_numbers = #tpu.dot_dimension_numbers<[1], [0], [0], [1], [0, 0, 1, 1], [], []>} : vector<8x128xbf16>, vector<128x128xbf16>, vector<8x128xf32> -> vector<8x128xf32>
    %c0_410 = arith.constant 0 : index
    %c0_411 = arith.constant 0 : index
    %731 = vector.load %arg3[%c0_410, %c0_411] : memref<8x128xf32, #tpu.memory_space<vmem>>, vector<8x128xf32>
    %732 = arith.addf %730, %731 : vector<8x128xf32>
    %733 = math.tanh %732 : vector<8x128xf32>
    %734 = arith.truncf %733 : vector<8x128xf32> to vector<8x128xbf16>
    %c0_412 = arith.constant 0 : index
    %c0_413 = arith.constant 0 : index
    %735 = vector.load %arg4[%c0_412, %c0_413] : memref<128x128xbf16, #tpu.memory_space<vmem>>, vector<128x128xbf16>
    %cst_414 = arith.constant dense<0.000000e+00> : vector<8x128xf32>
    %736 = tpu.matmul %734, %735, %cst_414 {dimension_numbers = #tpu.dot_dimension_numbers<[1], [0], [0], [1], [0, 0, 1, 1], [], []>} : vector<8x128xbf16>, vector<128x128xbf16>, vector<8x128xf32> -> vector<8x128xf32>
    %c0_415 = arith.constant 0 : index
    %c0_416 = arith.constant 0 : index
    %737 = vector.load %arg5[%c0_415, %c0_416] : memref<8x128xf32, #tpu.memory_space<vmem>>, vector<8x128xf32>
    %738 = arith.addf %736, %737 : vector<8x128xf32>
    %cst_417 = arith.constant 0.333333343 : f32
    %739 = vector.broadcast %cst_417 : f32 to vector<8x128xf32>
    %740 = arith.mulf %724, %739 : vector<8x128xf32>
    %741 = arith.subf %738, %740 : vector<8x128xf32>
    %742 = arith.addf %710, %741 : vector<8x128xf32>
    %743 = arith.truncf %742 : vector<8x128xf32> to vector<8x128xbf16>
    %c0_418 = arith.constant 0 : index
    %c0_419 = arith.constant 0 : index
    %744 = vector.load %arg2[%c0_418, %c0_419] : memref<128x128xbf16, #tpu.memory_space<vmem>>, vector<128x128xbf16>
    %cst_420 = arith.constant dense<0.000000e+00> : vector<8x128xf32>
    %745 = tpu.matmul %743, %744, %cst_420 {dimension_numbers = #tpu.dot_dimension_numbers<[1], [0], [0], [1], [0, 0, 1, 1], [], []>} : vector<8x128xbf16>, vector<128x128xbf16>, vector<8x128xf32> -> vector<8x128xf32>
    %c0_421 = arith.constant 0 : index
    %c0_422 = arith.constant 0 : index
    %746 = vector.load %arg3[%c0_421, %c0_422] : memref<8x128xf32, #tpu.memory_space<vmem>>, vector<8x128xf32>
    %747 = arith.addf %745, %746 : vector<8x128xf32>
    %748 = math.tanh %747 : vector<8x128xf32>
    %749 = arith.truncf %748 : vector<8x128xf32> to vector<8x128xbf16>
    %c0_423 = arith.constant 0 : index
    %c0_424 = arith.constant 0 : index
    %750 = vector.load %arg4[%c0_423, %c0_424] : memref<128x128xbf16, #tpu.memory_space<vmem>>, vector<128x128xbf16>
    %cst_425 = arith.constant dense<0.000000e+00> : vector<8x128xf32>
    %751 = tpu.matmul %749, %750, %cst_425 {dimension_numbers = #tpu.dot_dimension_numbers<[1], [0], [0], [1], [0, 0, 1, 1], [], []>} : vector<8x128xbf16>, vector<128x128xbf16>, vector<8x128xf32> -> vector<8x128xf32>
    %c0_426 = arith.constant 0 : index
    %c0_427 = arith.constant 0 : index
    %752 = vector.load %arg5[%c0_426, %c0_427] : memref<8x128xf32, #tpu.memory_space<vmem>>, vector<8x128xf32>
    %753 = arith.addf %751, %752 : vector<8x128xf32>
    %754 = arith.subf %724, %738 : vector<8x128xf32>
    %755 = arith.addf %754, %753 : vector<8x128xf32>
    %756 = arith.addf %710, %755 : vector<8x128xf32>
    %757 = arith.truncf %756 : vector<8x128xf32> to vector<8x128xbf16>
    %c0_428 = arith.constant 0 : index
    %c0_429 = arith.constant 0 : index
    %758 = vector.load %arg2[%c0_428, %c0_429] : memref<128x128xbf16, #tpu.memory_space<vmem>>, vector<128x128xbf16>
    %cst_430 = arith.constant dense<0.000000e+00> : vector<8x128xf32>
    %759 = tpu.matmul %757, %758, %cst_430 {dimension_numbers = #tpu.dot_dimension_numbers<[1], [0], [0], [1], [0, 0, 1, 1], [], []>} : vector<8x128xbf16>, vector<128x128xbf16>, vector<8x128xf32> -> vector<8x128xf32>
    %c0_431 = arith.constant 0 : index
    %c0_432 = arith.constant 0 : index
    %760 = vector.load %arg3[%c0_431, %c0_432] : memref<8x128xf32, #tpu.memory_space<vmem>>, vector<8x128xf32>
    %761 = arith.addf %759, %760 : vector<8x128xf32>
    %762 = math.tanh %761 : vector<8x128xf32>
    %763 = arith.truncf %762 : vector<8x128xf32> to vector<8x128xbf16>
    %c0_433 = arith.constant 0 : index
    %c0_434 = arith.constant 0 : index
    %764 = vector.load %arg4[%c0_433, %c0_434] : memref<128x128xbf16, #tpu.memory_space<vmem>>, vector<128x128xbf16>
    %cst_435 = arith.constant dense<0.000000e+00> : vector<8x128xf32>
    %765 = tpu.matmul %763, %764, %cst_435 {dimension_numbers = #tpu.dot_dimension_numbers<[1], [0], [0], [1], [0, 0, 1, 1], [], []>} : vector<8x128xbf16>, vector<128x128xbf16>, vector<8x128xf32> -> vector<8x128xf32>
    %c0_436 = arith.constant 0 : index
    %c0_437 = arith.constant 0 : index
    %766 = vector.load %arg5[%c0_436, %c0_437] : memref<8x128xf32, #tpu.memory_space<vmem>>, vector<8x128xf32>
    %767 = arith.addf %765, %766 : vector<8x128xf32>
    %cst_438 = arith.constant 3.000000e+00 : f32
    %768 = vector.broadcast %cst_438 : f32 to vector<8x128xf32>
    %769 = arith.mulf %768, %738 : vector<8x128xf32>
    %770 = arith.addf %724, %769 : vector<8x128xf32>
    %cst_439 = arith.constant 3.000000e+00 : f32
    %771 = vector.broadcast %cst_439 : f32 to vector<8x128xf32>
    %772 = arith.mulf %771, %753 : vector<8x128xf32>
    %773 = arith.addf %770, %772 : vector<8x128xf32>
    %774 = arith.addf %773, %767 : vector<8x128xf32>
    %cst_440 = arith.constant 1.250000e-01 : f32
    %775 = vector.broadcast %cst_440 : f32 to vector<8x128xf32>
    %776 = arith.mulf %774, %775 : vector<8x128xf32>
    %777 = arith.addf %710, %776 : vector<8x128xf32>
    %778 = arith.truncf %777 : vector<8x128xf32> to vector<8x128xbf16>
    %c0_441 = arith.constant 0 : index
    %c0_442 = arith.constant 0 : index
    %779 = vector.load %arg6[%c0_441, %c0_442] : memref<128x128xbf16, #tpu.memory_space<vmem>>, vector<128x128xbf16>
    %cst_443 = arith.constant dense<0.000000e+00> : vector<8x128xf32>
    %780 = tpu.matmul %778, %779, %cst_443 {dimension_numbers = #tpu.dot_dimension_numbers<[1], [0], [0], [1], [0, 0, 1, 1], [], []>} : vector<8x128xbf16>, vector<128x128xbf16>, vector<8x128xf32> -> vector<8x128xf32>
    %c0_444 = arith.constant 0 : index
    %c0_445 = arith.constant 0 : index
    %781 = vector.load %arg7[%c0_444, %c0_445] : memref<8x128xf32, #tpu.memory_space<vmem>>, vector<8x128xf32>
    %782 = arith.addf %780, %781 : vector<8x128xf32>
    %783 = vector.extract_strided_slice %713 {offsets = [0, 0], sizes = [8, 32], strides = [1, 1]} : vector<8x128xf32> to vector<8x32xf32>
    %784 = vector.extract_strided_slice %782 {offsets = [0, 0], sizes = [8, 32], strides = [1, 1]} : vector<8x128xf32> to vector<8x32xf32>
    %785 = arith.addf %783, %784 : vector<8x32xf32>
    %786 = arith.negf %785 : vector<8x32xf32>
    %787 = math.exp %786 : vector<8x32xf32>
    %cst_446 = arith.constant 1.000000e+00 : f32
    %788 = vector.broadcast %cst_446 : f32 to vector<8x32xf32>
    %789 = arith.addf %788, %787 : vector<8x32xf32>
    %790 = arith.divf %788, %789 : vector<8x32xf32>
    %791 = vector.extract_strided_slice %713 {offsets = [0, 32], sizes = [8, 32], strides = [1, 1]} : vector<8x128xf32> to vector<8x32xf32>
    %792 = vector.extract_strided_slice %782 {offsets = [0, 32], sizes = [8, 32], strides = [1, 1]} : vector<8x128xf32> to vector<8x32xf32>
    %793 = arith.addf %791, %792 : vector<8x32xf32>
    %794 = arith.negf %793 : vector<8x32xf32>
    %795 = math.exp %794 : vector<8x32xf32>
    %cst_447 = arith.constant 1.000000e+00 : f32
    %796 = vector.broadcast %cst_447 : f32 to vector<8x32xf32>
    %797 = arith.addf %796, %795 : vector<8x32xf32>
    %798 = arith.divf %796, %797 : vector<8x32xf32>
    %799 = vector.extract_strided_slice %713 {offsets = [0, 64], sizes = [8, 32], strides = [1, 1]} : vector<8x128xf32> to vector<8x32xf32>
    %800 = vector.extract_strided_slice %782 {offsets = [0, 64], sizes = [8, 32], strides = [1, 1]} : vector<8x128xf32> to vector<8x32xf32>
    %801 = arith.mulf %790, %800 : vector<8x32xf32>
    %802 = arith.addf %799, %801 : vector<8x32xf32>
    %803 = math.tanh %802 : vector<8x32xf32>
    %cst_448 = arith.constant 1.000000e+00 : f32
    %804 = vector.broadcast %cst_448 : f32 to vector<8x32xf32>
    %805 = arith.subf %804, %798 : vector<8x32xf32>
    %806 = arith.mulf %805, %803 : vector<8x32xf32>
    %807 = vector.extract_strided_slice %777 {offsets = [0, 0], sizes = [8, 32], strides = [1, 1]} : vector<8x128xf32> to vector<8x32xf32>
    %808 = arith.mulf %798, %807 : vector<8x32xf32>
    %809 = arith.addf %806, %808 : vector<8x32xf32>
    %cst_449 = arith.constant 0.000000e+00 : f32
    %810 = vector.broadcast %cst_449 : f32 to vector<8x96xf32>
    %811 = tpu.concatenate %809, %810 in 1 : vector<8x32xf32>, vector<8x96xf32> -> vector<8x128xf32>
    %c0_450 = arith.constant 0 : index
    %c0_451 = arith.constant 0 : index
    %812 = vector.load %arg8[%c0_450, %c0_451] : memref<8x128xf32, #tpu.memory_space<vmem>>, vector<8x128xf32>
    tpu.vector_store %arg8[%c0_450, %c0_451], %811 {strides = array<i32>} : memref<8x128xf32, #tpu.memory_space<vmem>>, vector<8x128xf32>,
    return
  }
  func.func @transform_0(%arg0: i32) -> (i32, i32, i32) {
    %c0_i32 = arith.constant 0 : i32
    %c0_i32_0 = arith.constant 0 : i32
    %c0_i32_1 = arith.constant 0 : i32
    return %arg0, %c0_i32, %c0_i32_0 : i32, i32, i32
  }
  func.func @transform_1(%arg0: i32) -> (i32, i32) {
    %c0_i32 = arith.constant 0 : i32
    %c0_i32_0 = arith.constant 0 : i32
    %c0_i32_1 = arith.constant 0 : i32
    return %c0_i32, %c0_i32_0 : i32, i32
  }
  func.func @transform_2(%arg0: i32) -> (i32, i32) {
    %c0_i32 = arith.constant 0 : i32
    %c0_i32_0 = arith.constant 0 : i32
    %c0_i32_1 = arith.constant 0 : i32
    return %c0_i32, %c0_i32_0 : i32, i32
  }
  func.func @transform_3(%arg0: i32) -> (i32, i32) {
    %c0_i32 = arith.constant 0 : i32
    %c0_i32_0 = arith.constant 0 : i32
    %c0_i32_1 = arith.constant 0 : i32
    return %c0_i32, %c0_i32_0 : i32, i32
  }
  func.func @transform_4(%arg0: i32) -> (i32, i32) {
    %c0_i32 = arith.constant 0 : i32
    %c0_i32_0 = arith.constant 0 : i32
    %c0_i32_1 = arith.constant 0 : i32
    return %c0_i32, %c0_i32_0 : i32, i32
  }
  func.func @transform_5(%arg0: i32) -> (i32, i32) {
    %c0_i32 = arith.constant 0 : i32
    %c0_i32_0 = arith.constant 0 : i32
    %c0_i32_1 = arith.constant 0 : i32
    return %c0_i32, %c0_i32_0 : i32, i32
  }
  func.func @transform_6(%arg0: i32) -> (i32, i32) {
    %c0_i32 = arith.constant 0 : i32
    %c0_i32_0 = arith.constant 0 : i32
    %c0_i32_1 = arith.constant 0 : i32
    return %c0_i32, %c0_i32_0 : i32, i32
  }
  func.func @transform_7(%arg0: i32) -> (i32, i32) {
    %c0_i32 = arith.constant 0 : i32
    %c0_i32_0 = arith.constant 0 : i32
    %c0_i32_1 = arith.constant 0 : i32
    return %c0_i32, %c0_i32_0 : i32, i32
  }
}

</mosaic_0001>

<llo_original>
// kernel: odernn_forward.1
$region0: #{odernn_forward.1}
  #allocation0 [shape = 'u32[]', space=smem, size = 0x4, offset = 0x4, fixed_abs, tag = 'smem constant byte address 0x4 - core index']
  #allocation1 [shape = 'u32[144,128]{1,0:T(1,128)}', space=vmem, size = 0x12000, scoped, tag = 'internal scratch']
  %s0 = inlined_call_operand.vmem [shape: bf16[8,8,128], index: 0, kind: input, shape index: {}]
  %s1 = inlined_call_operand.vmem [shape: bf16[128,128], index: 1, kind: input, shape index: {}]
  %s2 = inlined_call_operand.vmem [shape: f32[8,128], index: 2, kind: input, shape index: {}]
  %s3 = inlined_call_operand.vmem [shape: bf16[128,128], index: 3, kind: input, shape index: {}]
  %s4 = inlined_call_operand.vmem [shape: f32[8,128], index: 4, kind: input, shape index: {}]
  %s5 = inlined_call_operand.vmem [shape: bf16[128,128], index: 5, kind: input, shape index: {}]
  %s6 = inlined_call_operand.vmem [shape: f32[8,128], index: 6, kind: input, shape index: {}]
  %s7 = inlined_call_operand.vmem [shape: f32[8,128], index: 7, kind: output, shape index: {}]
  %s8 = sld [smem:[#allocation0]]
  $region42: #{odernn_forward.1} parent=0
    _
  %s10 = ssub.s32 1, %s8
  %s11 = scalar_select 0, %s10, %s8
  // Predicated region
  $region2: #{odernn_forward.1} parent=0 // pred_check
    _
  $region3: #{odernn_forward.1} parent=0 // pred_check_branch
    %13 = sbr.rel (0) target = $region5
  $region4: #{odernn_forward.1} parent=0 // pred_region
    _
  $region5: #{odernn_forward.1} parent=0 // pred_fallthru
    _
  // Predicated region
  $region6: #{odernn_forward.1} parent=0 // pred_check
    _
  $region7: #{odernn_forward.1} parent=0 // pred_check_branch
    %15 = sbr.rel (0) target = $region9
  $region8: #{odernn_forward.1} parent=0 // pred_region
    _
  $region9: #{odernn_forward.1} parent=0 // pred_fallthru
    _
  // Predicated region
  $region10: #{odernn_forward.1} parent=0 // pred_check
    _
  $region11: #{odernn_forward.1} parent=0 // pred_check_branch
    %17 = sbr.rel (0) target = $region13
  $region12: #{odernn_forward.1} parent=0 // pred_region
    _
  $region13: #{odernn_forward.1} parent=0 // pred_fallthru
    _
  // Predicated region
  $region14: #{odernn_forward.1} parent=0 // pred_check
    _
  $region15: #{odernn_forward.1} parent=0 // pred_check_branch
    %19 = sbr.rel (0) target = $region17
  $region16: #{odernn_forward.1} parent=0 // pred_region
    _
  $region17: #{odernn_forward.1} parent=0 // pred_fallthru
    _
  // Predicated region
  $region18: #{odernn_forward.1} parent=0 // pred_check
    _
  $region19: #{odernn_forward.1} parent=0 // pred_check_branch
    %21 = sbr.rel (0) target = $region21
  $region20: #{odernn_forward.1} parent=0 // pred_region
    _
  $region21: #{odernn_forward.1} parent=0 // pred_fallthru
    _
  // Predicated region
  $region22: #{odernn_forward.1} parent=0 // pred_check
    _
  $region23: #{odernn_forward.1} parent=0 // pred_check_branch
    %23 = sbr.rel (0) target = $region25
  $region24: #{odernn_forward.1} parent=0 // pred_region
    _
  $region25: #{odernn_forward.1} parent=0 // pred_fallthru
    _
  // Predicated region
  $region26: #{odernn_forward.1} parent=0 // pred_check
    _
  $region27: #{odernn_forward.1} parent=0 // pred_check_branch
    %25 = sbr.rel (0) target = $region29
  $region28: #{odernn_forward.1} parent=0 // pred_region
    _
  $region29: #{odernn_forward.1} parent=0 // pred_fallthru
    _
  %p27 = scmp.eq.s32.totalorder 0, 0
  // Predicated region
  $region30: #{odernn_forward.1} parent=0 // pred_check
    %p28 = pneg %p27
  $region31: #{odernn_forward.1} parent=0 // pred_check_branch
    %30 = sbr.rel (%p28) target = $region33
  $region32: #{odernn_forward.1} parent=0 // pred_region
    %31 = vst [vmem:[%s7] sm:$0xff] 0.0
  $region33: #{odernn_forward.1} parent=0 // pred_fallthru
    _
  %v32 = vld [vmem:[%s7] sm:$0xff]
  %v33 = vld [vmem:[%s0] sm:$0xf]
  %v34 = vunpack.c.l.bf16 %v33
  %v35 = vpack.c.bf16 %v32, %v32
  %v36 = vld [vmem:[%s1] sm:$0xf]
  %v37 = vld [vmem:[%s1 + $0x4] sm:$0xf]
  %v38 = vld [vmem:[%s1 + $0x8] sm:$0xf]
  %v39 = vld [vmem:[%s1 + $0xc] sm:$0xf]
  %v40 = vld [vmem:[%s1 + $0x10] sm:$0xf]
  %v41 = vld [vmem:[%s1 + $0x14] sm:$0xf]
  %v42 = vld [vmem:[%s1 + $0x18] sm:$0xf]
  %v43 = vld [vmem:[%s1 + $0x1c] sm:$0xf]
  %v44 = vld [vmem:[%s1 + $0x20] sm:$0xf]
  %v45 = vld [vmem:[%s1 + $0x24] sm:$0xf]
  %v46 = vld [vmem:[%s1 + $0x28] sm:$0xf]
  %v47 = vld [vmem:[%s1 + $0x2c] sm:$0xf]
  %v48 = vld [vmem:[%s1 + $0x30] sm:$0xf]
  %v49 = vld [vmem:[%s1 + $0x34] sm:$0xf]
  %v50 = vld [vmem:[%s1 + $0x38] sm:$0xf]
  %v51 = vld [vmem:[%s1 + $0x3c] sm:$0xf]
  %v52 = vld [vmem:[%s2] sm:$0xff]
  %v69 = vunpack.c.l.b16 %v36
  %v70 = vunpack.c.l.b16 %v37
  %v71 = vunpack.c.l.b16 %v38
  %v72 = vunpack.c.l.b16 %v39
  %v73 = vunpack.c.l.b16 %v40
  %v74 = vunpack.c.l.b16 %v41
  %v75 = vunpack.c.l.b16 %v42
  %v76 = vunpack.c.l.b16 %v43
  %v77 = vunpack.c.l.b16 %v44
  %v78 = vunpack.c.l.b16 %v45
  %v79 = vunpack.c.l.b16 %v46
  %v80 = vunpack.c.l.b16 %v47
  %v81 = vunpack.c.l.b16 %v48
  %v82 = vunpack.c.l.b16 %v49
  %v83 = vunpack.c.l.b16 %v50
  %v84 = vunpack.c.l.b16 %v51
  %v85 = vpack.c.b16 %v70, %v69
  %v86 = vpack.c.b16 %v72, %v71
  %v87 = vpack.c.b16 %v74, %v73
  %v88 = vpack.c.b16 %v76, %v75
  %v89 = vpack.c.b16 %v78, %v77
  %v90 = vpack.c.b16 %v80, %v79
  %v91 = vpack.c.b16 %v82, %v81
  %v92 = vpack.c.b16 %v84, %v83
  %101 = vmatprep.subr.bf16.mxu0 0
  %102 = vmatpush1.bf16.msra.mxu0 %v85
  %103 = vmatprep.subr.bf16.mxu0 0
  %104 = vmatpush1.bf16.msra.mxu0 %v86
  %105 = vmatprep.subr.bf16.mxu0 0
  %106 = vmatpush1.bf16.msra.mxu0 %v87
  %107 = vmatprep.subr.bf16.mxu0 0
  %108 = vmatpush1.bf16.msra.mxu0 %v88
  %109 = vmatprep.subr.bf16.mxu0 0
  %110 = vmatpush1.bf16.msra.mxu0 %v89
  %111 = vmatprep.subr.bf16.mxu0 0
  %112 = vmatpush1.bf16.msra.mxu0 %v90
  %113 = vmatprep.subr.bf16.mxu0 0
  %114 = vmatpush1.bf16.msra.mxu0 %v91
  %115 = vmatprep.subr.bf16.mxu0 0
  %116 = vmatpush1.bf16.msra.mxu0 %v92
  %117 = vmatprep.subr.bf16.mxu0 0
  %118 = vmatpush1.bf16.msra.mxu0 0
  %119 = vmatprep.subr.bf16.mxu0 0
  %120 = vmatpush1.bf16.msra.mxu0 0
  %121 = vmatprep.subr.bf16.mxu0 0
  %122 = vmatpush1.bf16.msra.mxu0 0
  %123 = vmatprep.subr.bf16.mxu0 0
  %124 = vmatpush1.bf16.msra.mxu0 0
  %125 = vmatprep.subr.bf16.mxu0 0
  %126 = vmatpush1.bf16.msra.mxu0 0
  %127 = vmatprep.subr.bf16.mxu0 0
  %128 = vmatpush1.bf16.msra.mxu0 0
  %129 = vmatprep.subr.bf16.mxu0 0
  %130 = vmatpush1.bf16.msra.mxu0 0
  %131 = vmatprep.subr.bf16.mxu0 0
  %132 = vmatpush1.bf16.msra.mxu0 0
  %133 = vmatprep.mubr.bf16.mxu0 0
  %134 = vmatmul.mubr.bf16.gmra.mrb[0].mxu0 %v35
  %v135 = vpop.f32.mrb[0].mxu0
  %v136 = vadd.f32 %v52, %v135
  %v137 = vpop.f32.mrb[0].mxu0
  %v138 = vpop.f32.mrb[0].mxu0
  %v139 = vpop.f32.mrb[0].mxu0
  %140 = vdwg.mxu0
  %v141 = vtanh.pop %v136
  %v142 = vpack.c.bf16 %v141, %v141
  %v143 = vld [vmem:[%s3] sm:$0xf]
  %v144 = vld [vmem:[%s3 + $0x4] sm:$0xf]
  %v145 = vld [vmem:[%s3 + $0x8] sm:$0xf]
  %v146 = vld [vmem:[%s3 + $0xc] sm:$0xf]
  %v147 = vld [vmem:[%s3 + $0x10] sm:$0xf]
  %v148 = vld [vmem:[%s3 + $0x14] sm:$0xf]
  %v149 = vld [vmem:[%s3 + $0x18] sm:$0xf]
  %v150 = vld [vmem:[%s3 + $0x1c] sm:$0xf]
  %v151 = vld [vmem:[%s3 + $0x20] sm:$0xf]
  %v152 = vld [vmem:[%s3 + $0x24] sm:$0xf]
  %v153 = vld [vmem:[%s3 + $0x28] sm:$0xf]
  %v154 = vld [vmem:[%s3 + $0x2c] sm:$0xf]
  %v155 = vld [vmem:[%s3 + $0x30] sm:$0xf]
  %v156 = vld [vmem:[%s3 + $0x34] sm:$0xf]
  %v157 = vld [vmem:[%s3 + $0x38] sm:$0xf]
  %v158 = vld [vmem:[%s3 + $0x3c] sm:$0xf]
  %v159 = vld [vmem:[%s4] sm:$0xff]
  %v176 = vunpack.c.l.b16 %v143
  %v177 = vunpack.c.l.b16 %v144
  %v178 = vunpack.c.l.b16 %v145
  %v179 = vunpack.c.l.b16 %v146
  %v180 = vunpack.c.l.b16 %v147
  %v181 = vunpack.c.l.b16 %v148
  %v182 = vunpack.c.l.b16 %v149
  %v183 = vunpack.c.l.b16 %v150
  %v184 = vunpack.c.l.b16 %v151
  %v185 = vunpack.c.l.b16 %v152
  %v186 = vunpack.c.l.b16 %v153
  %v187 = vunpack.c.l.b16 %v154
  %v188 = vunpack.c.l.b16 %v155
  %v189 = vunpack.c.l.b16 %v156
  %v190 = vunpack.c.l.b16 %v157
  %v191 = vunpack.c.l.b16 %v158
  %v192 = vpack.c.b16 %v177, %v176
  %v193 = vpack.c.b16 %v179, %v178
  %v194 = vpack.c.b16 %v181, %v180
  %v195 = vpack.c.b16 %v183, %v182
  %v196 = vpack.c.b16 %v185, %v184
  %v197 = vpack.c.b16 %v187, %v186
  %v198 = vpack.c.b16 %v189, %v188
  %v199 = vpack.c.b16 %v191, %v190
  %208 = vmatprep.subr.bf16.mxu0 0
  %209 = vmatpush1.bf16.msra.mxu0 %v192
  %210 = vmatprep.subr.bf16.mxu0 0
  %211 = vmatpush1.bf16.msra.mxu0 %v193
  %212 = vmatprep.subr.bf16.mxu0 0
  %213 = vmatpush1.bf16.msra.mxu0 %v194
  %214 = vmatprep.subr.bf16.mxu0 0
  %215 = vmatpush1.bf16.msra.mxu0 %v195
  %216 = vmatprep.subr.bf16.mxu0 0
  %217 = vmatpush1.bf16.msra.mxu0 %v196
  %218 = vmatprep.subr.bf16.mxu0 0
  %219 = vmatpush1.bf16.msra.mxu0 %v197
  %220 = vmatprep.subr.bf16.mxu0 0
  %221 = vmatpush1.bf16.msra.mxu0 %v198
  %222 = vmatprep.subr.bf16.mxu0 0
  %223 = vmatpush1.bf16.msra.mxu0 %v199
  %224 = vmatprep.subr.bf16.mxu0 0
  %225 = vmatpush1.bf16.msra.mxu0 0
  %226 = vmatprep.subr.bf16.mxu0 0
  %227 = vmatpush1.bf16.msra.mxu0 0
  %228 = vmatprep.subr.bf16.mxu0 0
  %229 = vmatpush1.bf16.msra.mxu0 0
  %230 = vmatprep.subr.bf16.mxu0 0
  %231 = vmatpush1.bf16.msra.mxu0 0
  %232 = vmatprep.subr.bf16.mxu0 0
  %233 = vmatpush1.bf16.msra.mxu0 0
  %234 = vmatprep.subr.bf16.mxu0 0
  %235 = vmatpush1.bf16.msra.mxu0 0
  %236 = vmatprep.subr.bf16.mxu0 0
  %237 = vmatpush1.bf16.msra.mxu0 0
  %238 = vmatprep.subr.bf16.mxu0 0
  %239 = vmatpush1.bf16.msra.mxu0 0
  %240 = vmatprep.mubr.bf16.mxu0 0
  %241 = vmatmul.mubr.bf16.gmra.mrb[0].mxu0 %v142
  %v242 = vpop.f32.mrb[0].mxu0
  %v243 = vadd.f32 %v159, %v242
  %v244 = vpop.f32.mrb[0].mxu0
  %v245 = vpop.f32.mrb[0].mxu0
  %v246 = vpop.f32.mrb[0].mxu0
  %247 = vdwg.mxu0
  %v248 = vmul.f32 %v243, 0.33333334
  %v249 = vadd.f32 %v32, %v248
  %v250 = vpack.c.bf16 %v249, %v249
  %251 = vmatprep.subr.bf16.mxu0 0
  %252 = vmatpush1.bf16.msra.mxu0 %v85
  %253 = vmatprep.subr.bf16.mxu0 0
  %254 = vmatpush1.bf16.msra.mxu0 %v86
  %255 = vmatprep.subr.bf16.mxu0 0
  %256 = vmatpush1.bf16.msra.mxu0 %v87
  %257 = vmatprep.subr.bf16.mxu0 0
  %258 = vmatpush1.bf16.msra.mxu0 %v88
  %259 = vmatprep.subr.bf16.mxu0 0
  %260 = vmatpush1.bf16.msra.mxu0 %v89
  %261 = vmatprep.subr.bf16.mxu0 0
  %262 = vmatpush1.bf16.msra.mxu0 %v90
  %263 = vmatprep.subr.bf16.mxu0 0
  %264 = vmatpush1.bf16.msra.mxu0 %v91
  %265 = vmatprep.subr.bf16.mxu0 0
  %266 = vmatpush1.bf16.msra.mxu0 %v92
  %267 = vmatprep.subr.bf16.mxu0 0
  %268 = vmatpush1.bf16.msra.mxu0 0
  %269 = vmatprep.subr.bf16.mxu0 0
  %270 = vmatpush1.bf16.msra.mxu0 0
  %271 = vmatprep.subr.bf16.mxu0 0
  %272 = vmatpush1.bf16.msra.mxu0 0
  %273 = vmatprep.subr.bf16.mxu0 0
  %274 = vmatpush1.bf16.msra.mxu0 0
  %275 = vmatprep.subr.bf16.mxu0 0
  %276 = vmatpush1.bf16.msra.mxu0 0
  %277 = vmatprep.subr.bf16.mxu0 0
  %278 = vmatpush1.bf16.msra.mxu0 0
  %279 = vmatprep.subr.bf16.mxu0 0
  %280 = vmatpush1.bf16.msra.mxu0 0
  %281 = vmatprep.subr.bf16.mxu0 0
  %282 = vmatpush1.bf16.msra.mxu0 0
  %283 = vmatprep.mubr.bf16.mxu0 0
  %284 = vmatmul.mubr.bf16.gmra.mrb[0].mxu0 %v250
  %v285 = vpop.f32.mrb[0].mxu0
  %v286 = vadd.f32 %v52, %v285
  %v287 = vpop.f32.mrb[0].mxu0
  %v288 = vpop.f32.mrb[0].mxu0
  %v289 = vpop.f32.mrb[0].mxu0
  %290 = vdwg.mxu0
  %v291 = vtanh.pop %v286
  %v292 = vpack.c.bf16 %v291, %v291
  %293 = vmatprep.subr.bf16.mxu0 0
  %294 = vmatpush1.bf16.msra.mxu0 %v192
  %295 = vmatprep.subr.bf16.mxu0 0
  %296 = vmatpush1.bf16.msra.mxu0 %v193
  %297 = vmatprep.subr.bf16.mxu0 0
  %298 = vmatpush1.bf16.msra.mxu0 %v194
  %299 = vmatprep.subr.bf16.mxu0 0
  %300 = vmatpush1.bf16.msra.mxu0 %v195
  %301 = vmatprep.subr.bf16.mxu0 0
  %302 = vmatpush1.bf16.msra.mxu0 %v196
  %303 = vmatprep.subr.bf16.mxu0 0
  %304 = vmatpush1.bf16.msra.mxu0 %v197
  %305 = vmatprep.subr.bf16.mxu0 0
  %306 = vmatpush1.bf16.msra.mxu0 %v198
  %307 = vmatprep.subr.bf16.mxu0 0
  %308 = vmatpush1.bf16.msra.mxu0 %v199
  %309 = vmatprep.subr.bf16.mxu0 0
  %310 = vmatpush1.bf16.msra.mxu0 0
  %311 = vmatprep.subr.bf16.mxu0 0
  %312 = vmatpush1.bf16.msra.mxu0 0
  %313 = vmatprep.subr.bf16.mxu0 0
  %314 = vmatpush1.bf16.msra.mxu0 0
  %315 = vmatprep.subr.bf16.mxu0 0
  %316 = vmatpush1.bf16.msra.mxu0 0
  %317 = vmatprep.subr.bf16.mxu0 0
  %318 = vmatpush1.bf16.msra.mxu0 0
  %319 = vmatprep.subr.bf16.mxu0 0
  %320 = vmatpush1.bf16.msra.mxu0 0
  %321 = vmatprep.subr.bf16.mxu0 0
  %322 = vmatpush1.bf16.msra.mxu0 0
  %323 = vmatprep.subr.bf16.mxu0 0
  %324 = vmatpush1.bf16.msra.mxu0 0
  %325 = vmatprep.mubr.bf16.mxu0 0
  %326 = vmatmul.mubr.bf16.gmra.mrb[0].mxu0 %v292
  %v327 = vpop.f32.mrb[0].mxu0
  %v328 = vadd.f32 %v159, %v327
  %v329 = vpop.f32.mrb[0].mxu0
  %v330 = vpop.f32.mrb[0].mxu0
  %v331 = vpop.f32.mrb[0].mxu0
  %332 = vdwg.mxu0
  %v333 = vsub.f32 %v328, %v248
  %v334 = vadd.f32 %v32, %v333
  %v335 = vpack.c.bf16 %v334, %v334
  %336 = vmatprep.subr.bf16.mxu0 0
  %337 = vmatpush1.bf16.msra.mxu0 %v85
  %338 = vmatprep.subr.bf16.mxu0 0
  %339 = vmatpush1.bf16.msra.mxu0 %v86
  %340 = vmatprep.subr.bf16.mxu0 0
  %341 = vmatpush1.bf16.msra.mxu0 %v87
  %342 = vmatprep.subr.bf16.mxu0 0
  %343 = vmatpush1.bf16.msra.mxu0 %v88
  %344 = vmatprep.subr.bf16.mxu0 0
  %345 = vmatpush1.bf16.msra.mxu0 %v89
  %346 = vmatprep.subr.bf16.mxu0 0
  %347 = vmatpush1.bf16.msra.mxu0 %v90
  %348 = vmatprep.subr.bf16.mxu0 0
  %349 = vmatpush1.bf16.msra.mxu0 %v91
  %350 = vmatprep.subr.bf16.mxu0 0
  %351 = vmatpush1.bf16.msra.mxu0 %v92
  %352 = vmatprep.subr.bf16.mxu0 0
  %353 = vmatpush1.bf16.msra.mxu0 0
  %354 = vmatprep.subr.bf16.mxu0 0
  %355 = vmatpush1.bf16.msra.mxu0 0
  %356 = vmatprep.subr.bf16.mxu0 0
  %357 = vmatpush1.bf16.msra.mxu0 0
  %358 = vmatprep.subr.bf16.mxu0 0
  %359 = vmatpush1.bf16.msra.mxu0 0
  %360 = vmatprep.subr.bf16.mxu0 0
  %361 = vmatpush1.bf16.msra.mxu0 0
  %362 = vmatprep.subr.bf16.mxu0 0
  %363 = vmatpush1.bf16.msra.mxu0 0
  %364 = vmatprep.subr.bf16.mxu0 0
  %365 = vmatpush1.bf16.msra.mxu0 0
  %366 = vmatprep.subr.bf16.mxu0 0
  %367 = vmatpush1.bf16.msra.mxu0 0
  %368 = vmatprep.mubr.bf16.mxu0 0
  %369 = vmatmul.mubr.bf16.gmra.mrb[0].mxu0 %v335
  %v370 = vpop.f32.mrb[0].mxu0
  %v371 = vadd.f32 %v52, %v370
  %v372 = vpop.f32.mrb[0].mxu0
  %v373 = vpop.f32.mrb[0].mxu0
  %v374 = vpop.f32.mrb[0].mxu0
  %375 = vdwg.mxu0
  %v376 = vtanh.pop %v371
  %v377 = vpack.c.bf16 %v376, %v376
  %378 = vmatprep.subr.bf16.mxu0 0
  %379 = vmatpush1.bf16.msra.mxu0 %v192
  %380 = vmatprep.subr.bf16.mxu0 0
  %381 = vmatpush1.bf16.msra.mxu0 %v193
  %382 = vmatprep.subr.bf16.mxu0 0
  %383 = vmatpush1.bf16.msra.mxu0 %v194
  %384 = vmatprep.subr.bf16.mxu0 0
  %385 = vmatpush1.bf16.msra.mxu0 %v195
  %386 = vmatprep.subr.bf16.mxu0 0
  %387 = vmatpush1.bf16.msra.mxu0 %v196
  %388 = vmatprep.subr.bf16.mxu0 0
  %389 = vmatpush1.bf16.msra.mxu0 %v197
  %390 = vmatprep.subr.bf16.mxu0 0
  %391 = vmatpush1.bf16.msra.mxu0 %v198
  %392 = vmatprep.subr.bf16.mxu0 0
  %393 = vmatpush1.bf16.msra.mxu0 %v199
  %394 = vmatprep.subr.bf16.mxu0 0
  %395 = vmatpush1.bf16.msra.mxu0 0
  %396 = vmatprep.subr.bf16.mxu0 0
  %397 = vmatpush1.bf16.msra.mxu0 0
  %398 = vmatprep.subr.bf16.mxu0 0
  %399 = vmatpush1.bf16.msra.mxu0 0
  %400 = vmatprep.subr.bf16.mxu0 0
  %401 = vmatpush1.bf16.msra.mxu0 0
  %402 = vmatprep.subr.bf16.mxu0 0
  %403 = vmatpush1.bf16.msra.mxu0 0
  %404 = vmatprep.subr.bf16.mxu0 0
  %405 = vmatpush1.bf16.msra.mxu0 0
  %406 = vmatprep.subr.bf16.mxu0 0
  %407 = vmatpush1.bf16.msra.mxu0 0
  %408 = vmatprep.subr.bf16.mxu0 0
  %409 = vmatpush1.bf16.msra.mxu0 0
  %410 = vmatprep.mubr.bf16.mxu0 0
  %411 = vmatmul.mubr.bf16.gmra.mrb[0].mxu0 %v377
  %v412 = vpop.f32.mrb[0].mxu0
  %v413 = vadd.f32 %v159, %v412
  %v414 = vpop.f32.mrb[0].mxu0
  %v415 = vpop.f32.mrb[0].mxu0
  %v416 = vpop.f32.mrb[0].mxu0
  %417 = vdwg.mxu0
  %v418 = vsub.f32 %v243, %v328
  %v419 = vadd.f32 %v418, %v413
  %v420 = vadd.f32 %v32, %v419
  %v421 = vpack.c.bf16 %v420, %v420
  %422 = vmatprep.subr.bf16.mxu0 0
  %423 = vmatpush1.bf16.msra.mxu0 %v85
  %424 = vmatprep.subr.bf16.mxu0 0
  %425 = vmatpush1.bf16.msra.mxu0 %v86
  %426 = vmatprep.subr.bf16.mxu0 0
  %427 = vmatpush1.bf16.msra.mxu0 %v87
  %428 = vmatprep.subr.bf16.mxu0 0
  %429 = vmatpush1.bf16.msra.mxu0 %v88
  %430 = vmatprep.subr.bf16.mxu0 0
  %431 = vmatpush1.bf16.msra.mxu0 %v89
  %432 = vmatprep.subr.bf16.mxu0 0
  %433 = vmatpush1.bf16.msra.mxu0 %v90
  %434 = vmatprep.subr.bf16.mxu0 0
  %435 = vmatpush1.bf16.msra.mxu0 %v91
  %436 = vmatprep.subr.bf16.mxu0 0
  %437 = vmatpush1.bf16.msra.mxu0 %v92
  %438 = vmatprep.subr.bf16.mxu0 0
  %439 = vmatpush1.bf16.msra.mxu0 0
  %440 = vmatprep.subr.bf16.mxu0 0
  %441 = vmatpush1.bf16.msra.mxu0 0
  %442 = vmatprep.subr.bf16.mxu0 0
  %443 = vmatpush1.bf16.msra.mxu0 0
  %444 = vmatprep.subr.bf16.mxu0 0
  %445 = vmatpush1.bf16.msra.mxu0 0
  %446 = vmatprep.subr.bf16.mxu0 0
  %447 = vmatpush1.bf16.msra.mxu0 0
  %448 = vmatprep.subr.bf16.mxu0 0
  %449 = vmatpush1.bf16.msra.mxu0 0
  %450 = vmatprep.subr.bf16.mxu0 0
  %451 = vmatpush1.bf16.msra.mxu0 0
  %452 = vmatprep.subr.bf16.mxu0 0
  %453 = vmatpush1.bf16.msra.mxu0 0
  %454 = vmatprep.mubr.bf16.mxu0 0
  %455 = vmatmul.mubr.bf16.gmra.mrb[0].mxu0 %v421
  %v456 = vpop.f32.mrb[0].mxu0
  %v457 = vadd.f32 %v52, %v456
  %v458 = vpop.f32.mrb[0].mxu0
  %v459 = vpop.f32.mrb[0].mxu0
  %v460 = vpop.f32.mrb[0].mxu0
  %461 = vdwg.mxu0
  %v462 = vtanh.pop %v457
  %v463 = vpack.c.bf16 %v462, %v462
  %464 = vmatprep.subr.bf16.mxu0 0
  %465 = vmatpush1.bf16.msra.mxu0 %v192
  %466 = vmatprep.subr.bf16.mxu0 0
  %467 = vmatpush1.bf16.msra.mxu0 %v193
  %468 = vmatprep.subr.bf16.mxu0 0
  %469 = vmatpush1.bf16.msra.mxu0 %v194
  %470 = vmatprep.subr.bf16.mxu0 0
  %471 = vmatpush1.bf16.msra.mxu0 %v195
  %472 = vmatprep.subr.bf16.mxu0 0
  %473 = vmatpush1.bf16.msra.mxu0 %v196
  %474 = vmatprep.subr.bf16.mxu0 0
  %475 = vmatpush1.bf16.msra.mxu0 %v197
  %476 = vmatprep.subr.bf16.mxu0 0
  %477 = vmatpush1.bf16.msra.mxu0 %v198
  %478 = vmatprep.subr.bf16.mxu0 0
  %479 = vmatpush1.bf16.msra.mxu0 %v199
  %480 = vmatprep.subr.bf16.mxu0 0
  %481 = vmatpush1.bf16.msra.mxu0 0
  %482 = vmatprep.subr.bf16.mxu0 0
  %483 = vmatpush1.bf16.msra.mxu0 0
  %484 = vmatprep.subr.bf16.mxu0 0
  %485 = vmatpush1.bf16.msra.mxu0 0
  %486 = vmatprep.subr.bf16.mxu0 0
  %487 = vmatpush1.bf16.msra.mxu0 0
  %488 = vmatprep.subr.bf16.mxu0 0
  %489 = vmatpush1.bf16.msra.mxu0 0
  %490 = vmatprep.subr.bf16.mxu0 0
  %491 = vmatpush1.bf16.msra.mxu0 0
  %492 = vmatprep.subr.bf16.mxu0 0
  %493 = vmatpush1.bf16.msra.mxu0 0
  %494 = vmatprep.subr.bf16.mxu0 0
  %495 = vmatpush1.bf16.msra.mxu0 0
  %496 = vmatprep.mubr.bf16.mxu0 0
  %497 = vmatmul.mubr.bf16.gmra.mrb[0].mxu0 %v463
  %v498 = vpop.f32.mrb[0].mxu0
  %v499 = vadd.f32 %v159, %v498
  %v500 = vpop.f32.mrb[0].mxu0
  %v501 = vpop.f32.mrb[0].mxu0
  %v502 = vpop.f32.mrb[0].mxu0
  %503 = vdwg.mxu0
  %v504 = vmul.f32 %v328, 3.0
  %v505 = vadd.f32 %v243, %v504
  %v506 = vmul.f32 %v413, 3.0
  %v507 = vadd.f32 %v505, %v506
  %v508 = vadd.f32 %v507, %v499
  %v509 = vmul.f32 %v508, 0.125
  %v510 = vadd.f32 %v32, %v509
  %v511 = vpack.c.bf16 %v510, %v510
  %v512 = vld [vmem:[%s5] sm:$0xf]
  %v513 = vld [vmem:[%s5 + $0x4] sm:$0xf]
  %v514 = vld [vmem:[%s5 + $0x8] sm:$0xf]
  %v515 = vld [vmem:[%s5 + $0xc] sm:$0xf]
  %v516 = vld [vmem:[%s5 + $0x10] sm:$0xf]
  %v517 = vld [vmem:[%s5 + $0x14] sm:$0xf]
  %v518 = vld [vmem:[%s5 + $0x18] sm:$0xf]
  %v519 = vld [vmem:[%s5 + $0x1c] sm:$0xf]
  %v520 = vld [vmem:[%s5 + $0x20] sm:$0xf]
  %v521 = vld [vmem:[%s5 + $0x24] sm:$0xf]
  %v522 = vld [vmem:[%s5 + $0x28] sm:$0xf]
  %v523 = vld [vmem:[%s5 + $0x2c] sm:$0xf]
  %v524 = vld [vmem:[%s5 + $0x30] sm:$0xf]
  %v525 = vld [vmem:[%s5 + $0x34] sm:$0xf]
  %v526 = vld [vmem:[%s5 + $0x38] sm:$0xf]
  %v527 = vld [vmem:[%s5 + $0x3c] sm:$0xf]
  %v528 = vld [vmem:[%s6] sm:$0xff]
  %v545 = vunpack.c.l.b16 %v512
  %v546 = vunpack.c.l.b16 %v513
  %v547 = vunpack.c.l.b16 %v514
  %v548 = vunpack.c.l.b16 %v515
  %v549 = vunpack.c.l.b16 %v516
  %v550 = vunpack.c.l.b16 %v517
  %v551 = vunpack.c.l.b16 %v518
  %v552 = vunpack.c.l.b16 %v519
  %v553 = vunpack.c.l.b16 %v520
  %v554 = vunpack.c.l.b16 %v521
  %v555 = vunpack.c.l.b16 %v522
  %v556 = vunpack.c.l.b16 %v523
  %v557 = vunpack.c.l.b16 %v524
  %v558 = vunpack.c.l.b16 %v525
  %v559 = vunpack.c.l.b16 %v526
  %v560 = vunpack.c.l.b16 %v527
  %v561 = vpack.c.b16 %v546, %v545
  %v562 = vpack.c.b16 %v548, %v547
  %v563 = vpack.c.b16 %v550, %v549
  %v564 = vpack.c.b16 %v552, %v551
  %v565 = vpack.c.b16 %v554, %v553
  %v566 = vpack.c.b16 %v556, %v555
  %v567 = vpack.c.b16 %v558, %v557
  %v568 = vpack.c.b16 %v560, %v559
  %577 = vmatprep.subr.bf16.mxu0 0
  %578 = vmatpush1.bf16.msra.mxu0 %v561
  %579 = vmatprep.subr.bf16.mxu0 0
  %580 = vmatpush1.bf16.msra.mxu0 %v562
  %581 = vmatprep.subr.bf16.mxu0 0
  %582 = vmatpush1.bf16.msra.mxu0 %v563
  %583 = vmatprep.subr.bf16.mxu0 0
  %584 = vmatpush1.bf16.msra.mxu0 %v564
  %585 = vmatprep.subr.bf16.mxu0 0
  %586 = vmatpush1.bf16.msra.mxu0 %v565
  %587 = vmatprep.subr.bf16.mxu0 0
  %588 = vmatpush1.bf16.msra.mxu0 %v566
  %589 = vmatprep.subr.bf16.mxu0 0
  %590 = vmatpush1.bf16.msra.mxu0 %v567
  %591 = vmatprep.subr.bf16.mxu0 0
  %592 = vmatpush1.bf16.msra.mxu0 %v568
  %593 = vmatprep.subr.bf16.mxu0 0
  %594 = vmatpush1.bf16.msra.mxu0 0
  %595 = vmatprep.subr.bf16.mxu0 0
  %596 = vmatpush1.bf16.msra.mxu0 0
  %597 = vmatprep.subr.bf16.mxu0 0
  %598 = vmatpush1.bf16.msra.mxu0 0
  %599 = vmatprep.subr.bf16.mxu0 0
  %600 = vmatpush1.bf16.msra.mxu0 0
  %601 = vmatprep.subr.bf16.mxu0 0
  %602 = vmatpush1.bf16.msra.mxu0 0
  %603 = vmatprep.subr.bf16.mxu0 0
  %604 = vmatpush1.bf16.msra.mxu0 0
  %605 = vmatprep.subr.bf16.mxu0 0
  %606 = vmatpush1.bf16.msra.mxu0 0
  %607 = vmatprep.subr.bf16.mxu0 0
  %608 = vmatpush1.bf16.msra.mxu0 0
  %609 = vmatprep.mubr.bf16.mxu0 0
  %610 = vmatmul.mubr.bf16.gmra.mrb[0].mxu0 %v511
  %v611 = vpop.f32.mrb[0].mxu0
  %v612 = vadd.f32 %v528, %v611
  %v613 = vpop.f32.mrb[0].mxu0
  %v614 = vpop.f32.mrb[0].mxu0
  %v615 = vpop.f32.mrb[0].mxu0
  %616 = vdwg.mxu0
  %v617 = vadd.f32 %v34, %v612
  %v618 = vxor.u32 %v617, 2147483648
  %v619 = vmul.f32 %v618, 1.442695
  %v620 = vpow.pop %v619
  %v621 = vadd.f32 %v620, 1.0
  %v622 = vrcp.pop %v621
  %v623 = vmul.f32 1.0, %v622
  %625 = vrot.lane.b32.xlu0 %v612, 64
  %v626 = vpop.permute.xlu0 %625
  %v628 = vmul.f32 %v623, %v626
  %630 = vrot.lane.b32.xlu0 %v628, 64
  %v631 = vpop.permute.xlu0 %630
  %v633 = vadd.f32 %v34, %v631
  %v634 = vtanh.pop %v633
  %v635 = vsub.f32 1.0, %v623
  %637 = vrot.lane.b32.xlu0 %v634, 96
  %v638 = vpop.permute.xlu0 %637
  %v640 = vmul.f32 %v635, %v638
  %642 = vrot.lane.b32.xlu0 %v510, 32
  %v643 = vpop.permute.xlu0 %642
  %v645 = vmul.f32 %v623, %v643
  %v646 = vadd.f32 %v640, %v645
  %648 = vrot.lane.b32.xlu0 %v646, 96
  %v649 = vpop.permute.xlu0 %648
  %vm651 = vcmask 261120
  %v652 = vsel %vm651, %v649, 0.0
  %s653 = scalar_lea.vmem %s0, 4
  %v654 = vld [vmem:[%s653] sm:$0xf]
  %v655 = vunpack.c.l.bf16 %v654
  %v656 = vpack.c.bf16 %v652, %v652
  %657 = vmatprep.subr.bf16.mxu0 0
  %658 = vmatpush1.bf16.msra.mxu0 %v85
  %659 = vmatprep.subr.bf16.mxu0 0
  %660 = vmatpush1.bf16.msra.mxu0 %v86
  %661 = vmatprep.subr.bf16.mxu0 0
  %662 = vmatpush1.bf16.msra.mxu0 %v87
  %663 = vmatprep.subr.bf16.mxu0 0
  %664 = vmatpush1.bf16.msra.mxu0 %v88
  %665 = vmatprep.subr.bf16.mxu0 0
  %666 = vmatpush1.bf16.msra.mxu0 %v89
  %667 = vmatprep.subr.bf16.mxu0 0
  %668 = vmatpush1.bf16.msra.mxu0 %v90
  %669 = vmatprep.subr.bf16.mxu0 0
  %670 = vmatpush1.bf16.msra.mxu0 %v91
  %671 = vmatprep.subr.bf16.mxu0 0
  %672 = vmatpush1.bf16.msra.mxu0 %v92
  %673 = vmatprep.subr.bf16.mxu0 0
  %674 = vmatpush1.bf16.msra.mxu0 0
  %675 = vmatprep.subr.bf16.mxu0 0
  %676 = vmatpush1.bf16.msra.mxu0 0
  %677 = vmatprep.subr.bf16.mxu0 0
  %678 = vmatpush1.bf16.msra.mxu0 0
  %679 = vmatprep.subr.bf16.mxu0 0
  %680 = vmatpush1.bf16.msra.mxu0 0
  %681 = vmatprep.subr.bf16.mxu0 0
  %682 = vmatpush1.bf16.msra.mxu0 0
  %683 = vmatprep.subr.bf16.mxu0 0
  %684 = vmatpush1.bf16.msra.mxu0 0
  %685 = vmatprep.subr.bf16.mxu0 0
  %686 = vmatpush1.bf16.msra.mxu0 0
  %687 = vmatprep.subr.bf16.mxu0 0
  %688 = vmatpush1.bf16.msra.mxu0 0
  %689 = vmatprep.mubr.bf16.mxu0 0
  %690 = vmatmul.mubr.bf16.gmra.mrb[0].mxu0 %v656
  %v691 = vpop.f32.mrb[0].mxu0
  %v692 = vadd.f32 %v52, %v691
  %v693 = vpop.f32.mrb[0].mxu0
  %v694 = vpop.f32.mrb[0].mxu0
  %v695 = vpop.f32.mrb[0].mxu0
  %696 = vdwg.mxu0
  %v697 = vtanh.pop %v692
  %v698 = vpack.c.bf16 %v697, %v697
  %699 = vmatprep.subr.bf16.mxu0 0
  %700 = vmatpush1.bf16.msra.mxu0 %v192
  %701 = vmatprep.subr.bf16.mxu0 0
  %702 = vmatpush1.bf16.msra.mxu0 %v193
  %703 = vmatprep.subr.bf16.mxu0 0
  %704 = vmatpush1.bf16.msra.mxu0 %v194
  %705 = vmatprep.subr.bf16.mxu0 0
  %706 = vmatpush1.bf16.msra.mxu0 %v195
  %707 = vmatprep.subr.bf16.mxu0 0
  %708 = vmatpush1.bf16.msra.mxu0 %v196
  %709 = vmatprep.subr.bf16.mxu0 0
  %710 = vmatpush1.bf16.msra.mxu0 %v197
  %711 = vmatprep.subr.bf16.mxu0 0
  %712 = vmatpush1.bf16.msra.mxu0 %v198
  %713 = vmatprep.subr.bf16.mxu0 0
  %714 = vmatpush1.bf16.msra.mxu0 %v199
  %715 = vmatprep.subr.bf16.mxu0 0
  %716 = vmatpush1.bf16.msra.mxu0 0
  %717 = vmatprep.subr.bf16.mxu0 0
  %718 = vmatpush1.bf16.msra.mxu0 0
  %719 = vmatprep.subr.bf16.mxu0 0
  %720 = vmatpush1.bf16.msra.mxu0 0
  %721 = vmatprep.subr.bf16.mxu0 0
  %722 = vmatpush1.bf16.msra.mxu0 0
  %723 = vmatprep.subr.bf16.mxu0 0
  %724 = vmatpush1.bf16.msra.mxu0 0
  %725 = vmatprep.subr.bf16.mxu0 0
  %726 = vmatpush1.bf16.msra.mxu0 0
  %727 = vmatprep.subr.bf16.mxu0 0
  %728 = vmatpush1.bf16.msra.mxu0 0
  %729 = vmatprep.subr.bf16.mxu0 0
  %730 = vmatpush1.bf16.msra.mxu0 0
  %731 = vmatprep.mubr.bf16.mxu0 0
  %732 = vmatmul.mubr.bf16.gmra.mrb[0].mxu0 %v698
  %v733 = vpop.f32.mrb[0].mxu0
  %v734 = vadd.f32 %v159, %v733
  %v735 = vpop.f32.mrb[0].mxu0
  %v736 = vpop.f32.mrb[0].mxu0
  %v737 = vpop.f32.mrb[0].mxu0
  %738 = vdwg.mxu0
  %v739 = vmul.f32 %v734, 0.33333334
  %v740 = vadd.f32 %v652, %v739
  %v741 = vpack.c.bf16 %v740, %v740
  %742 = vmatprep.subr.bf16.mxu0 0
  %743 = vmatpush1.bf16.msra.mxu0 %v85
  %744 = vmatprep.subr.bf16.mxu0 0
  %745 = vmatpush1.bf16.msra.mxu0 %v86
  %746 = vmatprep.subr.bf16.mxu0 0
  %747 = vmatpush1.bf16.msra.mxu0 %v87
  %748 = vmatprep.subr.bf16.mxu0 0
  %749 = vmatpush1.bf16.msra.mxu0 %v88
  %750 = vmatprep.subr.bf16.mxu0 0
  %751 = vmatpush1.bf16.msra.mxu0 %v89
  %752 = vmatprep.subr.bf16.mxu0 0
  %753 = vmatpush1.bf16.msra.mxu0 %v90
  %754 = vmatprep.subr.bf16.mxu0 0
  %755 = vmatpush1.bf16.msra.mxu0 %v91
  %756 = vmatprep.subr.bf16.mxu0 0
  %757 = vmatpush1.bf16.msra.mxu0 %v92
  %758 = vmatprep.subr.bf16.mxu0 0
  %759 = vmatpush1.bf16.msra.mxu0 0
  %760 = vmatprep.subr.bf16.mxu0 0
  %761 = vmatpush1.bf16.msra.mxu0 0
  %762 = vmatprep.subr.bf16.mxu0 0
  %763 = vmatpush1.bf16.msra.mxu0 0
  %764 = vmatprep.subr.bf16.mxu0 0
  %765 = vmatpush1.bf16.msra.mxu0 0
  %766 = vmatprep.subr.bf16.mxu0 0
  %767 = vmatpush1.bf16.msra.mxu0 0
  %768 = vmatprep.subr.bf16.mxu0 0
  %769 = vmatpush1.bf16.msra.mxu0 0
  %770 = vmatprep.subr.bf16.mxu0 0
  %771 = vmatpush1.bf16.msra.mxu0 0
  %772 = vmatprep.subr.bf16.mxu0 0
  %773 = vmatpush1.bf16.msra.mxu0 0
  %774 = vmatprep.mubr.bf16.mxu0 0
  %775 = vmatmul.mubr.bf16.gmra.mrb[0].mxu0 %v741
  %v776 = vpop.f32.mrb[0].mxu0
  %v777 = vadd.f32 %v52, %v776
  %v778 = vpop.f32.mrb[0].mxu0
  %v779 = vpop.f32.mrb[0].mxu0
  %v780 = vpop.f32.mrb[0].mxu0
  %781 = vdwg.mxu0
  %v782 = vtanh.pop %v777
  %v783 = vpack.c.bf16 %v782, %v782
  %784 = vmatprep.subr.bf16.mxu0 0
  %785 = vmatpush1.bf16.msra.mxu0 %v192
  %786 = vmatprep.subr.bf16.mxu0 0
  %787 = vmatpush1.bf16.msra.mxu0 %v193
  %788 = vmatprep.subr.bf16.mxu0 0
  %789 = vmatpush1.bf16.msra.mxu0 %v194
  %790 = vmatprep.subr.bf16.mxu0 0
  %791 = vmatpush1.bf16.msra.mxu0 %v195
  %792 = vmatprep.subr.bf16.mxu0 0
  %793 = vmatpush1.bf16.msra.mxu0 %v196
  %794 = vmatprep.subr.bf16.mxu0 0
  %795 = vmatpush1.bf16.msra.mxu0 %v197
  %796 = vmatprep.subr.bf16.mxu0 0
  %797 = vmatpush1.bf16.msra.mxu0 %v198
  %798 = vmatprep.subr.bf16.mxu0 0
  %799 = vmatpush1.bf16.msra.mxu0 %v199
  %800 = vmatprep.subr.bf16.mxu0 0
  %801 = vmatpush1.bf16.msra.mxu0 0
  %802 = vmatprep.subr.bf16.mxu0 0
  %803 = vmatpush1.bf16.msra.mxu0 0
  %804 = vmatprep.subr.bf16.mxu0 0
  %805 = vmatpush1.bf16.msra.mxu0 0
  %806 = vmatprep.subr.bf16.mxu0 0
  %807 = vmatpush1.bf16.msra.mxu0 0
  %808 = vmatprep.subr.bf16.mxu0 0
  %809 = vmatpush1.bf16.msra.mxu0 0
  %810 = vmatprep.subr.bf16.mxu0 0
  %811 = vmatpush1.bf16.msra.mxu0 0
  %812 = vmatprep.subr.bf16.mxu0 0
  %813 = vmatpush1.bf16.msra.mxu0 0
  %814 = vmatprep.subr.bf16.mxu0 0
  %815 = vmatpush1.bf16.msra.mxu0 0
  %816 = vmatprep.mubr.bf16.mxu0 0
  %817 = vmatmul.mubr.bf16.gmra.mrb[0].mxu0 %v783
  %v818 = vpop.f32.mrb[0].mxu0
  %v819 = vadd.f32 %v159, %v818
  %v820 = vpop.f32.mrb[0].mxu0
  %v821 = vpop.f32.mrb[0].mxu0
  %v822 = vpop.f32.mrb[0].mxu0
  %823 = vdwg.mxu0
  %v824 = vsub.f32 %v819, %v739
  %v825 = vadd.f32 %v652, %v824
  %v826 = vpack.c.bf16 %v825, %v825
  %827 = vmatprep.subr.bf16.mxu0 0
  %828 = vmatpush1.bf16.msra.mxu0 %v85
  %829 = vmatprep.subr.bf16.mxu0 0
  %830 = vmatpush1.bf16.msra.mxu0 %v86
  %831 = vmatprep.subr.bf16.mxu0 0
  %832 = vmatpush1.bf16.msra.mxu0 %v87
  %833 = vmatprep.subr.bf16.mxu0 0
  %834 = vmatpush1.bf16.msra.mxu0 %v88
  %835 = vmatprep.subr.bf16.mxu0 0
  %836 = vmatpush1.bf16.msra.mxu0 %v89
  %837 = vmatprep.subr.bf16.mxu0 0
  %838 = vmatpush1.bf16.msra.mxu0 %v90
  %839 = vmatprep.subr.bf16.mxu0 0
  %840 = vmatpush1.bf16.msra.mxu0 %v91
  %841 = vmatprep.subr.bf16.mxu0 0
  %842 = vmatpush1.bf16.msra.mxu0 %v92
  %843 = vmatprep.subr.bf16.mxu0 0
  %844 = vmatpush1.bf16.msra.mxu0 0
  %845 = vmatprep.subr.bf16.mxu0 0
  %846 = vmatpush1.bf16.msra.mxu0 0
  %847 = vmatprep.subr.bf16.mxu0 0
  %848 = vmatpush1.bf16.msra.mxu0 0
  %849 = vmatprep.subr.bf16.mxu0 0
  %850 = vmatpush1.bf16.msra.mxu0 0
  %851 = vmatprep.subr.bf16.mxu0 0
  %852 = vmatpush1.bf16.msra.mxu0 0
  %853 = vmatprep.subr.bf16.mxu0 0
  %854 = vmatpush1.bf16.msra.mxu0 0
  %855 = vmatprep.subr.bf16.mxu0 0
  %856 = vmatpush1.bf16.msra.mxu0 0
  %857 = vmatprep.subr.bf16.mxu0 0
  %858 = vmatpush1.bf16.msra.mxu0 0
  %859 = vmatprep.mubr.bf16.mxu0 0
  %860 = vmatmul.mubr.bf16.gmra.mrb[0].mxu0 %v826
  %v861 = vpop.f32.mrb[0].mxu0
  %v862 = vadd.f32 %v52, %v861
  %v863 = vpop.f32.mrb[0].mxu0
  %v864 = vpop.f32.mrb[0].mxu0
  %v865 = vpop.f32.mrb[0].mxu0
  %866 = vdwg.mxu0
  %v867 = vtanh.pop %v862
  %v868 = vpack.c.bf16 %v867, %v867
  %869 = vmatprep.subr.bf16.mxu0 0
  %870 = vmatpush1.bf16.msra.mxu0 %v192
  %871 = vmatprep.subr.bf16.mxu0 0
  %872 = vmatpush1.bf16.msra.mxu0 %v193
  %873 = vmatprep.subr.bf16.mxu0 0
  %874 = vmatpush1.bf16.msra.mxu0 %v194
  %875 = vmatprep.subr.bf16.mxu0 0
  %876 = vmatpush1.bf16.msra.mxu0 %v195
  %877 = vmatprep.subr.bf16.mxu0 0
  %878 = vmatpush1.bf16.msra.mxu0 %v196
  %879 = vmatprep.subr.bf16.mxu0 0
  %880 = vmatpush1.bf16.msra.mxu0 %v197
  %881 = vmatprep.subr.bf16.mxu0 0
  %882 = vmatpush1.bf16.msra.mxu0 %v198
  %883 = vmatprep.subr.bf16.mxu0 0
  %884 = vmatpush1.bf16.msra.mxu0 %v199
  %885 = vmatprep.subr.bf16.mxu0 0
  %886 = vmatpush1.bf16.msra.mxu0 0
  %887 = vmatprep.subr.bf16.mxu0 0
  %888 = vmatpush1.bf16.msra.mxu0 0
  %889 = vmatprep.subr.bf16.mxu0 0
  %890 = vmatpush1.bf16.msra.mxu0 0
  %891 = vmatprep.subr.bf16.mxu0 0
  %892 = vmatpush1.bf16.msra.mxu0 0
  %893 = vmatprep.subr.bf16.mxu0 0
  %894 = vmatpush1.bf16.msra.mxu0 0
  %895 = vmatprep.subr.bf16.mxu0 0
  %896 = vmatpush1.bf16.msra.mxu0 0
  %897 = vmatprep.subr.bf16.mxu0 0
  %898 = vmatpush1.bf16.msra.mxu0 0
  %899 = vmatprep.subr.bf16.mxu0 0
  %900 = vmatpush1.bf16.msra.mxu0 0
  %901 = vmatprep.mubr.bf16.mxu0 0
  %902 = vmatmul.mubr.bf16.gmra.mrb[0].mxu0 %v868
  %v903 = vpop.f32.mrb[0].mxu0
  %v904 = vadd.f32 %v159, %v903
  %v905 = vpop.f32.mrb[0].mxu0
  %v906 = vpop.f32.mrb[0].mxu0
  %v907 = vpop.f32.mrb[0].mxu0
  %908 = vdwg.mxu0
  %v909 = vsub.f32 %v734, %v819
  %v910 = vadd.f32 %v909, %v904
  %v911 = vadd.f32 %v652, %v910
  %v912 = vpack.c.bf16 %v911, %v911
  %913 = vmatprep.subr.bf16.mxu0 0
  %914 = vmatpush1.bf16.msra.mxu0 %v85
  %915 = vmatprep.subr.bf16.mxu0 0
  %916 = vmatpush1.bf16.msra.mxu0 %v86
  %917 = vmatprep.subr.bf16.mxu0 0
  %918 = vmatpush1.bf16.msra.mxu0 %v87
  %919 = vmatprep.subr.bf16.mxu0 0
  %920 = vmatpush1.bf16.msra.mxu0 %v88
  %921 = vmatprep.subr.bf16.mxu0 0
  %922 = vmatpush1.bf16.msra.mxu0 %v89
  %923 = vmatprep.subr.bf16.mxu0 0
  %924 = vmatpush1.bf16.msra.mxu0 %v90
  %925 = vmatprep.subr.bf16.mxu0 0
  %926 = vmatpush1.bf16.msra.mxu0 %v91
  %927 = vmatprep.subr.bf16.mxu0 0
  %928 = vmatpush1.bf16.msra.mxu0 %v92
  %929 = vmatprep.subr.bf16.mxu0 0
  %930 = vmatpush1.bf16.msra.mxu0 0
  %931 = vmatprep.subr.bf16.mxu0 0
  %932 = vmatpush1.bf16.msra.mxu0 0
  %933 = vmatprep.subr.bf16.mxu0 0
  %934 = vmatpush1.bf16.msra.mxu0 0
  %935 = vmatprep.subr.bf16.mxu0 0
  %936 = vmatpush1.bf16.msra.mxu0 0
  %937 = vmatprep.subr.bf16.mxu0 0
  %938 = vmatpush1.bf16.msra.mxu0 0
  %939 = vmatprep.subr.bf16.mxu0 0
  %940 = vmatpush1.bf16.msra.mxu0 0
  %941 = vmatprep.subr.bf16.mxu0 0
  %942 = vmatpush1.bf16.msra.mxu0 0
  %943 = vmatprep.subr.bf16.mxu0 0
  %944 = vmatpush1.bf16.msra.mxu0 0
  %945 = vmatprep.mubr.bf16.mxu0 0
  %946 = vmatmul.mubr.bf16.gmra.mrb[0].mxu0 %v912
  %v947 = vpop.f32.mrb[0].mxu0
  %v948 = vadd.f32 %v52, %v947
  %v949 = vpop.f32.mrb[0].mxu0
  %v950 = vpop.f32.mrb[0].mxu0
  %v951 = vpop.f32.mrb[0].mxu0
  %952 = vdwg.mxu0
  %v953 = vtanh.pop %v948
  %v954 = vpack.c.bf16 %v953, %v953
  %955 = vmatprep.subr.bf16.mxu0 0
  %956 = vmatpush1.bf16.msra.mxu0 %v192
  %957 = vmatprep.subr.bf16.mxu0 0
  %958 = vmatpush1.bf16.msra.mxu0 %v193
  %959 = vmatprep.subr.bf16.mxu0 0
  %960 = vmatpush1.bf16.msra.mxu0 %v194
  %961 = vmatprep.subr.bf16.mxu0 0
  %962 = vmatpush1.bf16.msra.mxu0 %v195
  %963 = vmatprep.subr.bf16.mxu0 0
  %964 = vmatpush1.bf16.msra.mxu0 %v196
  %965 = vmatprep.subr.bf16.mxu0 0
  %966 = vmatpush1.bf16.msra.mxu0 %v197
  %967 = vmatprep.subr.bf16.mxu0 0
  %968 = vmatpush1.bf16.msra.mxu0 %v198
  %969 = vmatprep.subr.bf16.mxu0 0
  %970 = vmatpush1.bf16.msra.mxu0 %v199
  %971 = vmatprep.subr.bf16.mxu0 0
  %972 = vmatpush1.bf16.msra.mxu0 0
  %973 = vmatprep.subr.bf16.mxu0 0
  %974 = vmatpush1.bf16.msra.mxu0 0
  %975 = vmatprep.subr.bf16.mxu0 0
  %976 = vmatpush1.bf16.msra.mxu0 0
  %977 = vmatprep.subr.bf16.mxu0 0
  %978 = vmatpush1.bf16.msra.mxu0 0
  %979 = vmatprep.subr.bf16.mxu0 0
  %980 = vmatpush1.bf16.msra.mxu0 0
  %981 = vmatprep.subr.bf16.mxu0 0
  %982 = vmatpush1.bf16.msra.mxu0 0
  %983 = vmatprep.subr.bf16.mxu0 0
  %984 = vmatpush1.bf16.msra.mxu0 0
  %985 = vmatprep.subr.bf16.mxu0 0
  %986 = vmatpush1.bf16.msra.mxu0 0
  %987 = vmatprep.mubr.bf16.mxu0 0
  %988 = vmatmul.mubr.bf16.gmra.mrb[0].mxu0 %v954
  %v989 = vpop.f32.mrb[0].mxu0
  %v990 = vadd.f32 %v159, %v989
  %v991 = vpop.f32.mrb[0].mxu0
  %v992 = vpop.f32.mrb[0].mxu0
  %v993 = vpop.f32.mrb[0].mxu0
  %994 = vdwg.mxu0
  %v995 = vmul.f32 %v819, 3.0
  %v996 = vadd.f32 %v734, %v995
  %v997 = vmul.f32 %v904, 3.0
  %v998 = vadd.f32 %v996, %v997
  %v999 = vadd.f32 %v998, %v990
  %v1000 = vmul.f32 %v999, 0.125
  %v1001 = vadd.f32 %v652, %v1000
  %v1002 = vpack.c.bf16 %v1001, %v1001
  %1003 = vmatprep.subr.bf16.mxu0 0
  %1004 = vmatpush1.bf16.msra.mxu0 %v561
  %1005 = vmatprep.subr.bf16.mxu0 0
  %1006 = vmatpush1.bf16.msra.mxu0 %v562
  %1007 = vmatprep.subr.bf16.mxu0 0
  %1008 = vmatpush1.bf16.msra.mxu0 %v563
  %1009 = vmatprep.subr.bf16.mxu0 0
  %1010 = vmatpush1.bf16.msra.mxu0 %v564
  %1011 = vmatprep.subr.bf16.mxu0 0
  %1012 = vmatpush1.bf16.msra.mxu0 %v565
  %1013 = vmatprep.subr.bf16.mxu0 0
  %1014 = vmatpush1.bf16.msra.mxu0 %v566
  %1015 = vmatprep.subr.bf16.mxu0 0
  %1016 = vmatpush1.bf16.msra.mxu0 %v567
  %1017 = vmatprep.subr.bf16.mxu0 0
  %1018 = vmatpush1.bf16.msra.mxu0 %v568
  %1019 = vmatprep.subr.bf16.mxu0 0
  %1020 = vmatpush1.bf16.msra.mxu0 0
  %1021 = vmatprep.subr.bf16.mxu0 0
  %1022 = vmatpush1.bf16.msra.mxu0 0
  %1023 = vmatprep.subr.bf16.mxu0 0
  %1024 = vmatpush1.bf16.msra.mxu0 0
  %1025 = vmatprep.subr.bf16.mxu0 0
  %1026 = vmatpush1.bf16.msra.mxu0 0
  %1027 = vmatprep.subr.bf16.mxu0 0
  %1028 = vmatpush1.bf16.msra.mxu0 0
  %1029 = vmatprep.subr.bf16.mxu0 0
  %1030 = vmatpush1.bf16.msra.mxu0 0
  %1031 = vmatprep.subr.bf16.mxu0 0
  %1032 = vmatpush1.bf16.msra.mxu0 0
  %1033 = vmatprep.subr.bf16.mxu0 0
  %1034 = vmatpush1.bf16.msra.mxu0 0
  %1035 = vmatprep.mubr.bf16.mxu0 0
  %1036 = vmatmul.mubr.bf16.gmra.mrb[0].mxu0 %v1002
  %v1037 = vpop.f32.mrb[0].mxu0
  %v1038 = vadd.f32 %v528, %v1037
  %v1039 = vpop.f32.mrb[0].mxu0
  %v1040 = vpop.f32.mrb[0].mxu0
  %v1041 = vpop.f32.mrb[0].mxu0
  %1042 = vdwg.mxu0
  %v1043 = vadd.f32 %v655, %v1038
  %v1044 = vxor.u32 %v1043, 2147483648
  %v1045 = vmul.f32 %v1044, 1.442695
  %v1046 = vpow.pop %v1045
  %v1047 = vadd.f32 %v1046, 1.0
  %v1048 = vrcp.pop %v1047
  %v1049 = vmul.f32 1.0, %v1048
  %1051 = vrot.lane.b32.xlu0 %v1038, 64
  %v1052 = vpop.permute.xlu0 %1051
  %v1054 = vmul.f32 %v1049, %v1052
  %1056 = vrot.lane.b32.xlu0 %v1054, 64
  %v1057 = vpop.permute.xlu0 %1056
  %v1059 = vadd.f32 %v655, %v1057
  %v1060 = vtanh.pop %v1059
  %v1061 = vsub.f32 1.0, %v1049
  %1063 = vrot.lane.b32.xlu0 %v1060, 96
  %v1064 = vpop.permute.xlu0 %1063
  %v1066 = vmul.f32 %v1061, %v1064
  %1068 = vrot.lane.b32.xlu0 %v1001, 32
  %v1069 = vpop.permute.xlu0 %1068
  %v1071 = vmul.f32 %v1049, %v1069
  %v1072 = vadd.f32 %v1066, %v1071
  %1074 = vrot.lane.b32.xlu0 %v1072, 96
  %v1075 = vpop.permute.xlu0 %1074
  %v1077 = vsel %vm651, %v1075, 0.0
  %s1078 = scalar_lea.vmem %s0, 8
  %v1079 = vld [vmem:[%s1078] sm:$0xf]
  %v1080 = vunpack.c.l.bf16 %v1079
  %v1081 = vpack.c.bf16 %v1077, %v1077
  %1082 = vmatprep.subr.bf16.mxu0 0
  %1083 = vmatpush1.bf16.msra.mxu0 %v85
  %1084 = vmatprep.subr.bf16.mxu0 0
  %1085 = vmatpush1.bf16.msra.mxu0 %v86
  %1086 = vmatprep.subr.bf16.mxu0 0
  %1087 = vmatpush1.bf16.msra.mxu0 %v87
  %1088 = vmatprep.subr.bf16.mxu0 0
  %1089 = vmatpush1.bf16.msra.mxu0 %v88
  %1090 = vmatprep.subr.bf16.mxu0 0
  %1091 = vmatpush1.bf16.msra.mxu0 %v89
  %1092 = vmatprep.subr.bf16.mxu0 0
  %1093 = vmatpush1.bf16.msra.mxu0 %v90
  %1094 = vmatprep.subr.bf16.mxu0 0
  %1095 = vmatpush1.bf16.msra.mxu0 %v91
  %1096 = vmatprep.subr.bf16.mxu0 0
  %1097 = vmatpush1.bf16.msra.mxu0 %v92
  %1098 = vmatprep.subr.bf16.mxu0 0
  %1099 = vmatpush1.bf16.msra.mxu0 0
  %1100 = vmatprep.subr.bf16.mxu0 0
  %1101 = vmatpush1.bf16.msra.mxu0 0
  %1102 = vmatprep.subr.bf16.mxu0 0
  %1103 = vmatpush1.bf16.msra.mxu0 0
  %1104 = vmatprep.subr.bf16.mxu0 0
  %1105 = vmatpush1.bf16.msra.mxu0 0
  %1106 = vmatprep.subr.bf16.mxu0 0
  %1107 = vmatpush1.bf16.msra.mxu0 0
  %1108 = vmatprep.subr.bf16.mxu0 0
  %1109 = vmatpush1.bf16.msra.mxu0 0
  %1110 = vmatprep.subr.bf16.mxu0 0
  %1111 = vmatpush1.bf16.msra.mxu0 0
  %1112 = vmatprep.subr.bf16.mxu0 0
  %1113 = vmatpush1.bf16.msra.mxu0 0
  %1114 = vmatprep.mubr.bf16.mxu0 0
  %1115 = vmatmul.mubr.bf16.gmra.mrb[0].mxu0 %v1081
  %v1116 = vpop.f32.mrb[0].mxu0
  %v1117 = vadd.f32 %v52, %v1116
  %v1118 = vpop.f32.mrb[0].mxu0
  %v1119 = vpop.f32.mrb[0].mxu0
  %v1120 = vpop.f32.mrb[0].mxu0
  %1121 = vdwg.mxu0
  %v1122 = vtanh.pop %v1117
  %v1123 = vpack.c.bf16 %v1122, %v1122
  %1124 = vmatprep.subr.bf16.mxu0 0
  %1125 = vmatpush1.bf16.msra.mxu0 %v192
  %1126 = vmatprep.subr.bf16.mxu0 0
  %1127 = vmatpush1.bf16.msra.mxu0 %v193
  %1128 = vmatprep.subr.bf16.mxu0 0
  %1129 = vmatpush1.bf16.msra.mxu0 %v194
  %1130 = vmatprep.subr.bf16.mxu0 0
  %1131 = vmatpush1.bf16.msra.mxu0 %v195
  %1132 = vmatprep.subr.bf16.mxu0 0
  %1133 = vmatpush1.bf16.msra.mxu0 %v196
  %1134 = vmatprep.subr.bf16.mxu0 0
  %1135 = vmatpush1.bf16.msra.mxu0 %v197
  %1136 = vmatprep.subr.bf16.mxu0 0
  %1137 = vmatpush1.bf16.msra.mxu0 %v198
  %1138 = vmatprep.subr.bf16.mxu0 0
  %1139 = vmatpush1.bf16.msra.mxu0 %v199
  %1140 = vmatprep.subr.bf16.mxu0 0
  %1141 = vmatpush1.bf16.msra.mxu0 0
  %1142 = vmatprep.subr.bf16.mxu0 0
  %1143 = vmatpush1.bf16.msra.mxu0 0
  %1144 = vmatprep.subr.bf16.mxu0 0
  %1145 = vmatpush1.bf16.msra.mxu0 0
  %1146 = vmatprep.subr.bf16.mxu0 0
  %1147 = vmatpush1.bf16.msra.mxu0 0
  %1148 = vmatprep.subr.bf16.mxu0 0
  %1149 = vmatpush1.bf16.msra.mxu0 0
  %1150 = vmatprep.subr.bf16.mxu0 0
  %1151 = vmatpush1.bf16.msra.mxu0 0
  %1152 = vmatprep.subr.bf16.mxu0 0
  %1153 = vmatpush1.bf16.msra.mxu0 0
  %1154 = vmatprep.subr.bf16.mxu0 0
  %1155 = vmatpush1.bf16.msra.mxu0 0
  %1156 = vmatprep.mubr.bf16.mxu0 0
  %1157 = vmatmul.mubr.bf16.gmra.mrb[0].mxu0 %v1123
  %v1158 = vpop.f32.mrb[0].mxu0
  %v1159 = vadd.f32 %v159, %v1158
  %v1160 = vpop.f32.mrb[0].mxu0
  %v1161 = vpop.f32.mrb[0].mxu0
  %v1162 = vpop.f32.mrb[0].mxu0
  %1163 = vdwg.mxu0
  %v1164 = vmul.f32 %v1159, 0.33333334
  %v1165 = vadd.f32 %v1077, %v1164
  %v1166 = vpack.c.bf16 %v1165, %v1165
  %1167 = vmatprep.subr.bf16.mxu0 0
  %1168 = vmatpush1.bf16.msra.mxu0 %v85
  %1169 = vmatprep.subr.bf16.mxu0 0
  %1170 = vmatpush1.bf16.msra.mxu0 %v86
  %1171 = vmatprep.subr.bf16.mxu0 0
  %1172 = vmatpush1.bf16.msra.mxu0 %v87
  %1173 = vmatprep.subr.bf16.mxu0 0
  %1174 = vmatpush1.bf16.msra.mxu0 %v88
  %1175 = vmatprep.subr.bf16.mxu0 0
  %1176 = vmatpush1.bf16.msra.mxu0 %v89
  %1177 = vmatprep.subr.bf16.mxu0 0
  %1178 = vmatpush1.bf16.msra.mxu0 %v90
  %1179 = vmatprep.subr.bf16.mxu0 0
  %1180 = vmatpush1.bf16.msra.mxu0 %v91
  %1181 = vmatprep.subr.bf16.mxu0 0
  %1182 = vmatpush1.bf16.msra.mxu0 %v92
  %1183 = vmatprep.subr.bf16.mxu0 0
  %1184 = vmatpush1.bf16.msra.mxu0 0
  %1185 = vmatprep.subr.bf16.mxu0 0
  %1186 = vmatpush1.bf16.msra.mxu0 0
  %1187 = vmatprep.subr.bf16.mxu0 0
  %1188 = vmatpush1.bf16.msra.mxu0 0
  %1189 = vmatprep.subr.bf16.mxu0 0
  %1190 = vmatpush1.bf16.msra.mxu0 0
  %1191 = vmatprep.subr.bf16.mxu0 0
  %1192 = vmatpush1.bf16.msra.mxu0 0
  %1193 = vmatprep.subr.bf16.mxu0 0
  %1194 = vmatpush1.bf16.msra.mxu0 0
  %1195 = vmatprep.subr.bf16.mxu0 0
  %1196 = vmatpush1.bf16.msra.mxu0 0
  %1197 = vmatprep.subr.bf16.mxu0 0
  %1198 = vmatpush1.bf16.msra.mxu0 0
  %1199 = vmatprep.mubr.bf16.mxu0 0
  %1200 = vmatmul.mubr.bf16.gmra.mrb[0].mxu0 %v1166
  %v1201 = vpop.f32.mrb[0].mxu0
  %v1202 = vadd.f32 %v52, %v1201
  %v1203 = vpop.f32.mrb[0].mxu0
  %v1204 = vpop.f32.mrb[0].mxu0
  %v1205 = vpop.f32.mrb[0].mxu0
  %1206 = vdwg.mxu0
  %v1207 = vtanh.pop %v1202
  %v1208 = vpack.c.bf16 %v1207, %v1207
  %1209 = vmatprep.subr.bf16.mxu0 0
  %1210 = vmatpush1.bf16.msra.mxu0 %v192
  %1211 = vmatprep.subr.bf16.mxu0 0
  %1212 = vmatpush1.bf16.msra.mxu0 %v193
  %1213 = vmatprep.subr.bf16.mxu0 0
  %1214 = vmatpush1.bf16.msra.mxu0 %v194
  %1215 = vmatprep.subr.bf16.mxu0 0
  %1216 = vmatpush1.bf16.msra.mxu0 %v195
  %1217 = vmatprep.subr.bf16.mxu0 0
  %1218 = vmatpush1.bf16.msra.mxu0 %v196
  %1219 = vmatprep.subr.bf16.mxu0 0
  %1220 = vmatpush1.bf16.msra.mxu0 %v197
  %1221 = vmatprep.subr.bf16.mxu0 0
  %1222 = vmatpush1.bf16.msra.mxu0 %v198
  %1223 = vmatprep.subr.bf16.mxu0 0
  %1224 = vmatpush1.bf16.msra.mxu0 %v199
  %1225 = vmatprep.subr.bf16.mxu0 0
  %1226 = vmatpush1.bf16.msra.mxu0 0
  %1227 = vmatprep.subr.bf16.mxu0 0
  %1228 = vmatpush1.bf16.msra.mxu0 0
  %1229 = vmatprep.subr.bf16.mxu0 0
  %1230 = vmatpush1.bf16.msra.mxu0 0
  %1231 = vmatprep.subr.bf16.mxu0 0
  %1232 = vmatpush1.bf16.msra.mxu0 0
  %1233 = vmatprep.subr.bf16.mxu0 0
  %1234 = vmatpush1.bf16.msra.mxu0 0
  %1235 = vmatprep.subr.bf16.mxu0 0
  %1236 = vmatpush1.bf16.msra.mxu0 0
  %1237 = vmatprep.subr.bf16.mxu0 0
  %1238 = vmatpush1.bf16.msra.mxu0 0
  %1239 = vmatprep.subr.bf16.mxu0 0
  %1240 = vmatpush1.bf16.msra.mxu0 0
  %1241 = vmatprep.mubr.bf16.mxu0 0
  %1242 = vmatmul.mubr.bf16.gmra.mrb[0].mxu0 %v1208
  %v1243 = vpop.f32.mrb[0].mxu0
  %v1244 = vadd.f32 %v159, %v1243
  %v1245 = vpop.f32.mrb[0].mxu0
  %v1246 = vpop.f32.mrb[0].mxu0
  %v1247 = vpop.f32.mrb[0].mxu0
  %1248 = vdwg.mxu0
  %v1249 = vsub.f32 %v1244, %v1164
  %v1250 = vadd.f32 %v1077, %v1249
  %v1251 = vpack.c.bf16 %v1250, %v1250
  %1252 = vmatprep.subr.bf16.mxu0 0
  %1253 = vmatpush1.bf16.msra.mxu0 %v85
  %1254 = vmatprep.subr.bf16.mxu0 0
  %1255 = vmatpush1.bf16.msra.mxu0 %v86
  %1256 = vmatprep.subr.bf16.mxu0 0
  %1257 = vmatpush1.bf16.msra.mxu0 %v87
  %1258 = vmatprep.subr.bf16.mxu0 0
  %1259 = vmatpush1.bf16.msra.mxu0 %v88
  %1260 = vmatprep.subr.bf16.mxu0 0
  %1261 = vmatpush1.bf16.msra.mxu0 %v89
  %1262 = vmatprep.subr.bf16.mxu0 0
  %1263 = vmatpush1.bf16.msra.mxu0 %v90
  %1264 = vmatprep.subr.bf16.mxu0 0
  %1265 = vmatpush1.bf16.msra.mxu0 %v91
  %1266 = vmatprep.subr.bf16.mxu0 0
  %1267 = vmatpush1.bf16.msra.mxu0 %v92
  %1268 = vmatprep.subr.bf16.mxu0 0
  %1269 = vmatpush1.bf16.msra.mxu0 0
  %1270 = vmatprep.subr.bf16.mxu0 0
  %1271 = vmatpush1.bf16.msra.mxu0 0
  %1272 = vmatprep.subr.bf16.mxu0 0
  %1273 = vmatpush1.bf16.msra.mxu0 0
  %1274 = vmatprep.subr.bf16.mxu0 0
  %1275 = vmatpush1.bf16.msra.mxu0 0
  %1276 = vmatprep.subr.bf16.mxu0 0
  %1277 = vmatpush1.bf16.msra.mxu0 0
  %1278 = vmatprep.subr.bf16.mxu0 0
  %1279 = vmatpush1.bf16.msra.mxu0 0
  %1280 = vmatprep.subr.bf16.mxu0 0
  %1281 = vmatpush1.bf16.msra.mxu0 0
  %1282 = vmatprep.subr.bf16.mxu0 0
  %1283 = vmatpush1.bf16.msra.mxu0 0
  %1284 = vmatprep.mubr.bf16.mxu0 0
  %1285 = vmatmul.mubr.bf16.gmra.mrb[0].mxu0 %v1251
  %v1286 = vpop.f32.mrb[0].mxu0
  %v1287 = vadd.f32 %v52, %v1286
  %v1288 = vpop.f32.mrb[0].mxu0
  %v1289 = vpop.f32.mrb[0].mxu0
  %v1290 = vpop.f32.mrb[0].mxu0
  %1291 = vdwg.mxu0
  %v1292 = vtanh.pop %v1287
  %v1293 = vpack.c.bf16 %v1292, %v1292
  %1294 = vmatprep.subr.bf16.mxu0 0
  %1295 = vmatpush1.bf16.msra.mxu0 %v192
  %1296 = vmatprep.subr.bf16.mxu0 0
  %1297 = vmatpush1.bf16.msra.mxu0 %v193
  %1298 = vmatprep.subr.bf16.mxu0 0
  %1299 = vmatpush1.bf16.msra.mxu0 %v194
  %1300 = vmatprep.subr.bf16.mxu0 0
  %1301 = vmatpush1.bf16.msra.mxu0 %v195
  %1302 = vmatprep.subr.bf16.mxu0 0
  %1303 = vmatpush1.bf16.msra.mxu0 %v196
  %1304 = vmatprep.subr.bf16.mxu0 0
  %1305 = vmatpush1.bf16.msra.mxu0 %v197
  %1306 = vmatprep.subr.bf16.mxu0 0
  %1307 = vmatpush1.bf16.msra.mxu0 %v198
  %1308 = vmatprep.subr.bf16.mxu0 0
  %1309 = vmatpush1.bf16.msra.mxu0 %v199
  %1310 = vmatprep.subr.bf16.mxu0 0
  %1311 = vmatpush1.bf16.msra.mxu0 0
  %1312 = vmatprep.subr.bf16.mxu0 0
  %1313 = vmatpush1.bf16.msra.mxu0 0
  %1314 = vmatprep.subr.bf16.mxu0 0
  %1315 = vmatpush1.bf16.msra.mxu0 0
  %1316 = vmatprep.subr.bf16.mxu0 0
  %1317 = vmatpush1.bf16.msra.mxu0 0
  %1318 = vmatprep.subr.bf16.mxu0 0
  %1319 = vmatpush1.bf16.msra.mxu0 0
  %1320 = vmatprep.subr.bf16.mxu0 0
  %1321 = vmatpush1.bf16.msra.mxu0 0
  %1322 = vmatprep.subr.bf16.mxu0 0
  %1323 = vmatpush1.bf16.msra.mxu0 0
  %1324 = vmatprep.subr.bf16.mxu0 0
  %1325 = vmatpush1.bf16.msra.mxu0 0
  %1326 = vmatprep.mubr.bf16.mxu0 0
  %1327 = vmatmul.mubr.bf16.gmra.mrb[0].mxu0 %v1293
  %v1328 = vpop.f32.mrb[0].mxu0
  %v1329 = vadd.f32 %v159, %v1328
  %v1330 = vpop.f32.mrb[0].mxu0
  %v1331 = vpop.f32.mrb[0].mxu0
  %v1332 = vpop.f32.mrb[0].mxu0
  %1333 = vdwg.mxu0
  %v1334 = vsub.f32 %v1159, %v1244
  %v1335 = vadd.f32 %v1334, %v1329
  %v1336 = vadd.f32 %v1077, %v1335
  %v1337 = vpack.c.bf16 %v1336, %v1336
  %1338 = vmatprep.subr.bf16.mxu0 0
  %1339 = vmatpush1.bf16.msra.mxu0 %v85
  %1340 = vmatprep.subr.bf16.mxu0 0
  %1341 = vmatpush1.bf16.msra.mxu0 %v86
  %1342 = vmatprep.subr.bf16.mxu0 0
  %1343 = vmatpush1.bf16.msra.mxu0 %v87
  %1344 = vmatprep.subr.bf16.mxu0 0
  %1345 = vmatpush1.bf16.msra.mxu0 %v88
  %1346 = vmatprep.subr.bf16.mxu0 0
  %1347 = vmatpush1.bf16.msra.mxu0 %v89
  %1348 = vmatprep.subr.bf16.mxu0 0
  %1349 = vmatpush1.bf16.msra.mxu0 %v90
  %1350 = vmatprep.subr.bf16.mxu0 0
  %1351 = vmatpush1.bf16.msra.mxu0 %v91
  %1352 = vmatprep.subr.bf16.mxu0 0
  %1353 = vmatpush1.bf16.msra.mxu0 %v92
  %1354 = vmatprep.subr.bf16.mxu0 0
  %1355 = vmatpush1.bf16.msra.mxu0 0
  %1356 = vmatprep.subr.bf16.mxu0 0
  %1357 = vmatpush1.bf16.msra.mxu0 0
  %1358 = vmatprep.subr.bf16.mxu0 0
  %1359 = vmatpush1.bf16.msra.mxu0 0
  %1360 = vmatprep.subr.bf16.mxu0 0
  %1361 = vmatpush1.bf16.msra.mxu0 0
  %1362 = vmatprep.subr.bf16.mxu0 0
  %1363 = vmatpush1.bf16.msra.mxu0 0
  %1364 = vmatprep.subr.bf16.mxu0 0
  %1365 = vmatpush1.bf16.msra.mxu0 0
  %1366 = vmatprep.subr.bf16.mxu0 0
  %1367 = vmatpush1.bf16.msra.mxu0 0
  %1368 = vmatprep.subr.bf16.mxu0 0
  %1369 = vmatpush1.bf16.msra.mxu0 0
  %1370 = vmatprep.mubr.bf16.mxu0 0
  %1371 = vmatmul.mubr.bf16.gmra.mrb[0].mxu0 %v1337
  %v1372 = vpop.f32.mrb[0].mxu0
  %v1373 = vadd.f32 %v52, %v1372
  %v1374 = vpop.f32.mrb[0].mxu0
  %v1375 = vpop.f32.mrb[0].mxu0
  %v1376 = vpop.f32.mrb[0].mxu0
  %1377 = vdwg.mxu0
  %v1378 = vtanh.pop %v1373
  %v1379 = vpack.c.bf16 %v1378, %v1378
  %1380 = vmatprep.subr.bf16.mxu0 0
  %1381 = vmatpush1.bf16.msra.mxu0 %v192
  %1382 = vmatprep.subr.bf16.mxu0 0
  %1383 = vmatpush1.bf16.msra.mxu0 %v193
  %1384 = vmatprep.subr.bf16.mxu0 0
  %1385 = vmatpush1.bf16.msra.mxu0 %v194
  %1386 = vmatprep.subr.bf16.mxu0 0
  %1387 = vmatpush1.bf16.msra.mxu0 %v195
  %1388 = vmatprep.subr.bf16.mxu0 0
  %1389 = vmatpush1.bf16.msra.mxu0 %v196
  %1390 = vmatprep.subr.bf16.mxu0 0
  %1391 = vmatpush1.bf16.msra.mxu0 %v197
  %1392 = vmatprep.subr.bf16.mxu0 0
  %1393 = vmatpush1.bf16.msra.mxu0 %v198
  %1394 = vmatprep.subr.bf16.mxu0 0
  %1395 = vmatpush1.bf16.msra.mxu0 %v199
  %1396 = vmatprep.subr.bf16.mxu0 0
  %1397 = vmatpush1.bf16.msra.mxu0 0
  %1398 = vmatprep.subr.bf16.mxu0 0
  %1399 = vmatpush1.bf16.msra.mxu0 0
  %1400 = vmatprep.subr.bf16.mxu0 0
  %1401 = vmatpush1.bf16.msra.mxu0 0
  %1402 = vmatprep.subr.bf16.mxu0 0
  %1403 = vmatpush1.bf16.msra.mxu0 0
  %1404 = vmatprep.subr.bf16.mxu0 0
  %1405 = vmatpush1.bf16.msra.mxu0 0
  %1406 = vmatprep.subr.bf16.mxu0 0
  %1407 = vmatpush1.bf16.msra.mxu0 0
  %1408 = vmatprep.subr.bf16.mxu0 0
  %1409 = vmatpush1.bf16.msra.mxu0 0
  %1410 = vmatprep.subr.bf16.mxu0 0
  %1411 = vmatpush1.bf16.msra.mxu0 0
  %1412 = vmatprep.mubr.bf16.mxu0 0
  %1413 = vmatmul.mubr.bf16.gmra.mrb[0].mxu0 %v1379
  %v1414 = vpop.f32.mrb[0].mxu0
  %v1415 = vadd.f32 %v159, %v1414
  %v1416 = vpop.f32.mrb[0].mxu0
  %v1417 = vpop.f32.mrb[0].mxu0
  %v1418 = vpop.f32.mrb[0].mxu0
  %1419 = vdwg.mxu0
  %v1420 = vmul.f32 %v1244, 3.0
  %v1421 = vadd.f32 %v1159, %v1420
  %v1422 = vmul.f32 %v1329, 3.0
  %v1423 = vadd.f32 %v1421, %v1422
  %v1424 = vadd.f32 %v1423, %v1415
  %v1425 = vmul.f32 %v1424, 0.125
  %v1426 = vadd.f32 %v1077, %v1425
  %v1427 = vpack.c.bf16 %v1426, %v1426
  %1428 = vmatprep.subr.bf16.mxu0 0
  %1429 = vmatpush1.bf16.msra.mxu0 %v561
  %1430 = vmatprep.subr.bf16.mxu0 0
  %1431 = vmatpush1.bf16.msra.mxu0 %v562
  %1432 = vmatprep.subr.bf16.mxu0 0
  %1433 = vmatpush1.bf16.msra.mxu0 %v563
  %1434 = vmatprep.subr.bf16.mxu0 0
  %1435 = vmatpush1.bf16.msra.mxu0 %v564
  %1436 = vmatprep.subr.bf16.mxu0 0
  %1437 = vmatpush1.bf16.msra.mxu0 %v565
  %1438 = vmatprep.subr.bf16.mxu0 0
  %1439 = vmatpush1.bf16.msra.mxu0 %v566
  %1440 = vmatprep.subr.bf16.mxu0 0
  %1441 = vmatpush1.bf16.msra.mxu0 %v567
  %1442 = vmatprep.subr.bf16.mxu0 0
  %1443 = vmatpush1.bf16.msra.mxu0 %v568
  %1444 = vmatprep.subr.bf16.mxu0 0
  %1445 = vmatpush1.bf16.msra.mxu0 0
  %1446 = vmatprep.subr.bf16.mxu0 0
  %1447 = vmatpush1.bf16.msra.mxu0 0
  %1448 = vmatprep.subr.bf16.mxu0 0
  %1449 = vmatpush1.bf16.msra.mxu0 0
  %1450 = vmatprep.subr.bf16.mxu0 0
  %1451 = vmatpush1.bf16.msra.mxu0 0
  %1452 = vmatprep.subr.bf16.mxu0 0
  %1453 = vmatpush1.bf16.msra.mxu0 0
  %1454 = vmatprep.subr.bf16.mxu0 0
  %1455 = vmatpush1.bf16.msra.mxu0 0
  %1456 = vmatprep.subr.bf16.mxu0 0
  %1457 = vmatpush1.bf16.msra.mxu0 0
  %1458 = vmatprep.subr.bf16.mxu0 0
  %1459 = vmatpush1.bf16.msra.mxu0 0
  %1460 = vmatprep.mubr.bf16.mxu0 0
  %1461 = vmatmul.mubr.bf16.gmra.mrb[0].mxu0 %v1427
  %v1462 = vpop.f32.mrb[0].mxu0
  %v1463 = vadd.f32 %v528, %v1462
  %v1464 = vpop.f32.mrb[0].mxu0
  %v1465 = vpop.f32.mrb[0].mxu0
  %v1466 = vpop.f32.mrb[0].mxu0
  %1467 = vdwg.mxu0
  %v1468 = vadd.f32 %v1080, %v1463
  %v1469 = vxor.u32 %v1468, 2147483648
  %v1470 = vmul.f32 %v1469, 1.442695
  %v1471 = vpow.pop %v1470
  %v1472 = vadd.f32 %v1471, 1.0
  %v1473 = vrcp.pop %v1472
  %v1474 = vmul.f32 1.0, %v1473
  %1476 = vrot.lane.b32.xlu0 %v1463, 64
  %v1477 = vpop.permute.xlu0 %1476
  %v1479 = vmul.f32 %v1474, %v1477
  %1481 = vrot.lane.b32.xlu0 %v1479, 64
  %v1482 = vpop.permute.xlu0 %1481
  %v1484 = vadd.f32 %v1080, %v1482
  %v1485 = vtanh.pop %v1484
  %v1486 = vsub.f32 1.0, %v1474
  %1488 = vrot.lane.b32.xlu0 %v1485, 96
  %v1489 = vpop.permute.xlu0 %1488
  %v1491 = vmul.f32 %v1486, %v1489
  %1493 = vrot.lane.b32.xlu0 %v1426, 32
  %v1494 = vpop.permute.xlu0 %1493
  %v1496 = vmul.f32 %v1474, %v1494
  %v1497 = vadd.f32 %v1491, %v1496
  %1499 = vrot.lane.b32.xlu0 %v1497, 96
  %v1500 = vpop.permute.xlu0 %1499
  %v1502 = vsel %vm651, %v1500, 0.0
  %s1503 = scalar_lea.vmem %s0, 12
  %v1504 = vld [vmem:[%s1503] sm:$0xf]
  %v1505 = vunpack.c.l.bf16 %v1504
  %v1506 = vpack.c.bf16 %v1502, %v1502
  %1507 = vmatprep.subr.bf16.mxu0 0
  %1508 = vmatpush1.bf16.msra.mxu0 %v85
  %1509 = vmatprep.subr.bf16.mxu0 0
  %1510 = vmatpush1.bf16.msra.mxu0 %v86
  %1511 = vmatprep.subr.bf16.mxu0 0
  %1512 = vmatpush1.bf16.msra.mxu0 %v87
  %1513 = vmatprep.subr.bf16.mxu0 0
  %1514 = vmatpush1.bf16.msra.mxu0 %v88
  %1515 = vmatprep.subr.bf16.mxu0 0
  %1516 = vmatpush1.bf16.msra.mxu0 %v89
  %1517 = vmatprep.subr.bf16.mxu0 0
  %1518 = vmatpush1.bf16.msra.mxu0 %v90
  %1519 = vmatprep.subr.bf16.mxu0 0
  %1520 = vmatpush1.bf16.msra.mxu0 %v91
  %1521 = vmatprep.subr.bf16.mxu0 0
  %1522 = vmatpush1.bf16.msra.mxu0 %v92
  %1523 = vmatprep.subr.bf16.mxu0 0
  %1524 = vmatpush1.bf16.msra.mxu0 0
  %1525 = vmatprep.subr.bf16.mxu0 0
  %1526 = vmatpush1.bf16.msra.mxu0 0
  %1527 = vmatprep.subr.bf16.mxu0 0
  %1528 = vmatpush1.bf16.msra.mxu0 0
  %1529 = vmatprep.subr.bf16.mxu0 0
  %1530 = vmatpush1.bf16.msra.mxu0 0
  %1531 = vmatprep.subr.bf16.mxu0 0
  %1532 = vmatpush1.bf16.msra.mxu0 0
  %1533 = vmatprep.subr.bf16.mxu0 0
  %1534 = vmatpush1.bf16.msra.mxu0 0
  %1535 = vmatprep.subr.bf16.mxu0 0
  %1536 = vmatpush1.bf16.msra.mxu0 0
  %1537 = vmatprep.subr.bf16.mxu0 0
  %1538 = vmatpush1.bf16.msra.mxu0 0
  %1539 = vmatprep.mubr.bf16.mxu0 0
  %1540 = vmatmul.mubr.bf16.gmra.mrb[0].mxu0 %v1506
  %v1541 = vpop.f32.mrb[0].mxu0
  %v1542 = vadd.f32 %v52, %v1541
  %v1543 = vpop.f32.mrb[0].mxu0
  %v1544 = vpop.f32.mrb[0].mxu0
  %v1545 = vpop.f32.mrb[0].mxu0
  %1546 = vdwg.mxu0
  %v1547 = vtanh.pop %v1542
  %v1548 = vpack.c.bf16 %v1547, %v1547
  %1549 = vmatprep.subr.bf16.mxu0 0
  %1550 = vmatpush1.bf16.msra.mxu0 %v192
  %1551 = vmatprep.subr.bf16.mxu0 0
  %1552 = vmatpush1.bf16.msra.mxu0 %v193
  %1553 = vmatprep.subr.bf16.mxu0 0
  %1554 = vmatpush1.bf16.msra.mxu0 %v194
  %1555 = vmatprep.subr.bf16.mxu0 0
  %1556 = vmatpush1.bf16.msra.mxu0 %v195
  %1557 = vmatprep.subr.bf16.mxu0 0
  %1558 = vmatpush1.bf16.msra.mxu0 %v196
  %1559 = vmatprep.subr.bf16.mxu0 0
  %1560 = vmatpush1.bf16.msra.mxu0 %v197
  %1561 = vmatprep.subr.bf16.mxu0 0
  %1562 = vmatpush1.bf16.msra.mxu0 %v198
  %1563 = vmatprep.subr.bf16.mxu0 0
  %1564 = vmatpush1.bf16.msra.mxu0 %v199
  %1565 = vmatprep.subr.bf16.mxu0 0
  %1566 = vmatpush1.bf16.msra.mxu0 0
  %1567 = vmatprep.subr.bf16.mxu0 0
  %1568 = vmatpush1.bf16.msra.mxu0 0
  %1569 = vmatprep.subr.bf16.mxu0 0
  %1570 = vmatpush1.bf16.msra.mxu0 0
  %1571 = vmatprep.subr.bf16.mxu0 0
  %1572 = vmatpush1.bf16.msra.mxu0 0
  %1573 = vmatprep.subr.bf16.mxu0 0
  %1574 = vmatpush1.bf16.msra.mxu0 0
  %1575 = vmatprep.subr.bf16.mxu0 0
  %1576 = vmatpush1.bf16.msra.mxu0 0
  %1577 = vmatprep.subr.bf16.mxu0 0
  %1578 = vmatpush1.bf16.msra.mxu0 0
  %1579 = vmatprep.subr.bf16.mxu0 0
  %1580 = vmatpush1.bf16.msra.mxu0 0
  %1581 = vmatprep.mubr.bf16.mxu0 0
  %1582 = vmatmul.mubr.bf16.gmra.mrb[0].mxu0 %v1548
  %v1583 = vpop.f32.mrb[0].mxu0
  %v1584 = vadd.f32 %v159, %v1583
  %v1585 = vpop.f32.mrb[0].mxu0
  %v1586 = vpop.f32.mrb[0].mxu0
  %v1587 = vpop.f32.mrb[0].mxu0
  %1588 = vdwg.mxu0
  %v1589 = vmul.f32 %v1584, 0.33333334
  %v1590 = vadd.f32 %v1502, %v1589
  %v1591 = vpack.c.bf16 %v1590, %v1590
  %1592 = vmatprep.subr.bf16.mxu0 0
  %1593 = vmatpush1.bf16.msra.mxu0 %v85
  %1594 = vmatprep.subr.bf16.mxu0 0
  %1595 = vmatpush1.bf16.msra.mxu0 %v86
  %1596 = vmatprep.subr.bf16.mxu0 0
  %1597 = vmatpush1.bf16.msra.mxu0 %v87
  %1598 = vmatprep.subr.bf16.mxu0 0
  %1599 = vmatpush1.bf16.msra.mxu0 %v88
  %1600 = vmatprep.subr.bf16.mxu0 0
  %1601 = vmatpush1.bf16.msra.mxu0 %v89
  %1602 = vmatprep.subr.bf16.mxu0 0
  %1603 = vmatpush1.bf16.msra.mxu0 %v90
  %1604 = vmatprep.subr.bf16.mxu0 0
  %1605 = vmatpush1.bf16.msra.mxu0 %v91
  %1606 = vmatprep.subr.bf16.mxu0 0
  %1607 = vmatpush1.bf16.msra.mxu0 %v92
  %1608 = vmatprep.subr.bf16.mxu0 0
  %1609 = vmatpush1.bf16.msra.mxu0 0
  %1610 = vmatprep.subr.bf16.mxu0 0
  %1611 = vmatpush1.bf16.msra.mxu0 0
  %1612 = vmatprep.subr.bf16.mxu0 0
  %1613 = vmatpush1.bf16.msra.mxu0 0
  %1614 = vmatprep.subr.bf16.mxu0 0
  %1615 = vmatpush1.bf16.msra.mxu0 0
  %1616 = vmatprep.subr.bf16.mxu0 0
  %1617 = vmatpush1.bf16.msra.mxu0 0
  %1618 = vmatprep.subr.bf16.mxu0 0
  %1619 = vmatpush1.bf16.msra.mxu0 0
  %1620 = vmatprep.subr.bf16.mxu0 0
  %1621 = vmatpush1.bf16.msra.mxu0 0
  %1622 = vmatprep.subr.bf16.mxu0 0
  %1623 = vmatpush1.bf16.msra.mxu0 0
  %1624 = vmatprep.mubr.bf16.mxu0 0
  %1625 = vmatmul.mubr.bf16.gmra.mrb[0].mxu0 %v1591
  %v1626 = vpop.f32.mrb[0].mxu0
  %v1627 = vadd.f32 %v52, %v1626
  %v1628 = vpop.f32.mrb[0].mxu0
  %v1629 = vpop.f32.mrb[0].mxu0
  %v1630 = vpop.f32.mrb[0].mxu0
  %1631 = vdwg.mxu0
  %v1632 = vtanh.pop %v1627
  %v1633 = vpack.c.bf16 %v1632, %v1632
  %1634 = vmatprep.subr.bf16.mxu0 0
  %1635 = vmatpush1.bf16.msra.mxu0 %v192
  %1636 = vmatprep.subr.bf16.mxu0 0
  %1637 = vmatpush1.bf16.msra.mxu0 %v193
  %1638 = vmatprep.subr.bf16.mxu0 0
  %1639 = vmatpush1.bf16.msra.mxu0 %v194
  %1640 = vmatprep.subr.bf16.mxu0 0
  %1641 = vmatpush1.bf16.msra.mxu0 %v195
  %1642 = vmatprep.subr.bf16.mxu0 0
  %1643 = vmatpush1.bf16.msra.mxu0 %v196
  %1644 = vmatprep.subr.bf16.mxu0 0
  %1645 = vmatpush1.bf16.msra.mxu0 %v197
  %1646 = vmatprep.subr.bf16.mxu0 0
  %1647 = vmatpush1.bf16.msra.mxu0 %v198
  %1648 = vmatprep.subr.bf16.mxu0 0
  %1649 = vmatpush1.bf16.msra.mxu0 %v199
  %1650 = vmatprep.subr.bf16.mxu0 0
  %1651 = vmatpush1.bf16.msra.mxu0 0
  %1652 = vmatprep.subr.bf16.mxu0 0
  %1653 = vmatpush1.bf16.msra.mxu0 0
  %1654 = vmatprep.subr.bf16.mxu0 0
  %1655 = vmatpush1.bf16.msra.mxu0 0
  %1656 = vmatprep.subr.bf16.mxu0 0
  %1657 = vmatpush1.bf16.msra.mxu0 0
  %1658 = vmatprep.subr.bf16.mxu0 0
  %1659 = vmatpush1.bf16.msra.mxu0 0
  %1660 = vmatprep.subr.bf16.mxu0 0
  %1661 = vmatpush1.bf16.msra.mxu0 0
  %1662 = vmatprep.subr.bf16.mxu0 0
  %1663 = vmatpush1.bf16.msra.mxu0 0
  %1664 = vmatprep.subr.bf16.mxu0 0
  %1665 = vmatpush1.bf16.msra.mxu0 0
  %1666 = vmatprep.mubr.bf16.mxu0 0
  %1667 = vmatmul.mubr.bf16.gmra.mrb[0].mxu0 %v1633
  %v1668 = vpop.f32.mrb[0].mxu0
  %v1669 = vadd.f32 %v159, %v1668
  %v1670 = vpop.f32.mrb[0].mxu0
  %v1671 = vpop.f32.mrb[0].mxu0
  %v1672 = vpop.f32.mrb[0].mxu0
  %1673 = vdwg.mxu0
  %v1674 = vsub.f32 %v1669, %v1589
  %v1675 = vadd.f32 %v1502, %v1674
  %v1676 = vpack.c.bf16 %v1675, %v1675
  %1677 = vmatprep.subr.bf16.mxu0 0
  %1678 = vmatpush1.bf16.msra.mxu0 %v85
  %1679 = vmatprep.subr.bf16.mxu0 0
  %1680 = vmatpush1.bf16.msra.mxu0 %v86
  %1681 = vmatprep.subr.bf16.mxu0 0
  %1682 = vmatpush1.bf16.msra.mxu0 %v87
  %1683 = vmatprep.subr.bf16.mxu0 0
  %1684 = vmatpush1.bf16.msra.mxu0 %v88
  %1685 = vmatprep.subr.bf16.mxu0 0
  %1686 = vmatpush1.bf16.msra.mxu0 %v89
  %1687 = vmatprep.subr.bf16.mxu0 0
  %1688 = vmatpush1.bf16.msra.mxu0 %v90
  %1689 = vmatprep.subr.bf16.mxu0 0
  %1690 = vmatpush1.bf16.msra.mxu0 %v91
  %1691 = vmatprep.subr.bf16.mxu0 0
  %1692 = vmatpush1.bf16.msra.mxu0 %v92
  %1693 = vmatprep.subr.bf16.mxu0 0
  %1694 = vmatpush1.bf16.msra.mxu0 0
  %1695 = vmatprep.subr.bf16.mxu0 0
  %1696 = vmatpush1.bf16.msra.mxu0 0
  %1697 = vmatprep.subr.bf16.mxu0 0
  %1698 = vmatpush1.bf16.msra.mxu0 0
  %1699 = vmatprep.subr.bf16.mxu0 0
  %1700 = vmatpush1.bf16.msra.mxu0 0
  %1701 = vmatprep.subr.bf16.mxu0 0
  %1702 = vmatpush1.bf16.msra.mxu0 0
  %1703 = vmatprep.subr.bf16.mxu0 0
  %1704 = vmatpush1.bf16.msra.mxu0 0
  %1705 = vmatprep.subr.bf16.mxu0 0
  %1706 = vmatpush1.bf16.msra.mxu0 0
  %1707 = vmatprep.subr.bf16.mxu0 0
  %1708 = vmatpush1.bf16.msra.mxu0 0
  %1709 = vmatprep.mubr.bf16.mxu0 0
  %1710 = vmatmul.mubr.bf16.gmra.mrb[0].mxu0 %v1676
  %v1711 = vpop.f32.mrb[0].mxu0
  %v1712 = vadd.f32 %v52, %v1711
  %v1713 = vpop.f32.mrb[0].mxu0
  %v1714 = vpop.f32.mrb[0].mxu0
  %v1715 = vpop.f32.mrb[0].mxu0
  %1716 = vdwg.mxu0
  %v1717 = vtanh.pop %v1712
  %v1718 = vpack.c.bf16 %v1717, %v1717
  %1719 = vmatprep.subr.bf16.mxu0 0
  %1720 = vmatpush1.bf16.msra.mxu0 %v192
  %1721 = vmatprep.subr.bf16.mxu0 0
  %1722 = vmatpush1.bf16.msra.mxu0 %v193
  %1723 = vmatprep.subr.bf16.mxu0 0
  %1724 = vmatpush1.bf16.msra.mxu0 %v194
  %1725 = vmatprep.subr.bf16.mxu0 0
  %1726 = vmatpush1.bf16.msra.mxu0 %v195
  %1727 = vmatprep.subr.bf16.mxu0 0
  %1728 = vmatpush1.bf16.msra.mxu0 %v196
  %1729 = vmatprep.subr.bf16.mxu0 0
  %1730 = vmatpush1.bf16.msra.mxu0 %v197
  %1731 = vmatprep.subr.bf16.mxu0 0
  %1732 = vmatpush1.bf16.msra.mxu0 %v198
  %1733 = vmatprep.subr.bf16.mxu0 0
  %1734 = vmatpush1.bf16.msra.mxu0 %v199
  %1735 = vmatprep.subr.bf16.mxu0 0
  %1736 = vmatpush1.bf16.msra.mxu0 0
  %1737 = vmatprep.subr.bf16.mxu0 0
  %1738 = vmatpush1.bf16.msra.mxu0 0
  %1739 = vmatprep.subr.bf16.mxu0 0
  %1740 = vmatpush1.bf16.msra.mxu0 0
  %1741 = vmatprep.subr.bf16.mxu0 0
  %1742 = vmatpush1.bf16.msra.mxu0 0
  %1743 = vmatprep.subr.bf16.mxu0 0
  %1744 = vmatpush1.bf16.msra.mxu0 0
  %1745 = vmatprep.subr.bf16.mxu0 0
  %1746 = vmatpush1.bf16.msra.mxu0 0
  %1747 = vmatprep.subr.bf16.mxu0 0
  %1748 = vmatpush1.bf16.msra.mxu0 0
  %1749 = vmatprep.subr.bf16.mxu0 0
  %1750 = vmatpush1.bf16.msra.mxu0 0
  %1751 = vmatprep.mubr.bf16.mxu0 0
  %1752 = vmatmul.mubr.bf16.gmra.mrb[0].mxu0 %v1718
  %v1753 = vpop.f32.mrb[0].mxu0
  %v1754 = vadd.f32 %v159, %v1753
  %v1755 = vpop.f32.mrb[0].mxu0
  %v1756 = vpop.f32.mrb[0].mxu0
  %v1757 = vpop.f32.mrb[0].mxu0
  %1758 = vdwg.mxu0
  %v1759 = vsub.f32 %v1584, %v1669
  %v1760 = vadd.f32 %v1759, %v1754
  %v1761 = vadd.f32 %v1502, %v1760
  %v1762 = vpack.c.bf16 %v1761, %v1761
  %1763 = vmatprep.subr.bf16.mxu0 0
  %1764 = vmatpush1.bf16.msra.mxu0 %v85
  %1765 = vmatprep.subr.bf16.mxu0 0
  %1766 = vmatpush1.bf16.msra.mxu0 %v86
  %1767 = vmatprep.subr.bf16.mxu0 0
  %1768 = vmatpush1.bf16.msra.mxu0 %v87
  %1769 = vmatprep.subr.bf16.mxu0 0
  %1770 = vmatpush1.bf16.msra.mxu0 %v88
  %1771 = vmatprep.subr.bf16.mxu0 0
  %1772 = vmatpush1.bf16.msra.mxu0 %v89
  %1773 = vmatprep.subr.bf16.mxu0 0
  %1774 = vmatpush1.bf16.msra.mxu0 %v90
  %1775 = vmatprep.subr.bf16.mxu0 0
  %1776 = vmatpush1.bf16.msra.mxu0 %v91
  %1777 = vmatprep.subr.bf16.mxu0 0
  %1778 = vmatpush1.bf16.msra.mxu0 %v92
  %1779 = vmatprep.subr.bf16.mxu0 0
  %1780 = vmatpush1.bf16.msra.mxu0 0
  %1781 = vmatprep.subr.bf16.mxu0 0
  %1782 = vmatpush1.bf16.msra.mxu0 0
  %1783 = vmatprep.subr.bf16.mxu0 0
  %1784 = vmatpush1.bf16.msra.mxu0 0
  %1785 = vmatprep.subr.bf16.mxu0 0
  %1786 = vmatpush1.bf16.msra.mxu0 0
  %1787 = vmatprep.subr.bf16.mxu0 0
  %1788 = vmatpush1.bf16.msra.mxu0 0
  %1789 = vmatprep.subr.bf16.mxu0 0
  %1790 = vmatpush1.bf16.msra.mxu0 0
  %1791 = vmatprep.subr.bf16.mxu0 0
  %1792 = vmatpush1.bf16.msra.mxu0 0
  %1793 = vmatprep.subr.bf16.mxu0 0
  %1794 = vmatpush1.bf16.msra.mxu0 0
  %1795 = vmatprep.mubr.bf16.mxu0 0
  %1796 = vmatmul.mubr.bf16.gmra.mrb[0].mxu0 %v1762
  %v1797 = vpop.f32.mrb[0].mxu0
  %v1798 = vadd.f32 %v52, %v1797
  %v1799 = vpop.f32.mrb[0].mxu0
  %v1800 = vpop.f32.mrb[0].mxu0
  %v1801 = vpop.f32.mrb[0].mxu0
  %1802 = vdwg.mxu0
  %v1803 = vtanh.pop %v1798
  %v1804 = vpack.c.bf16 %v1803, %v1803
  %1805 = vmatprep.subr.bf16.mxu0 0
  %1806 = vmatpush1.bf16.msra.mxu0 %v192
  %1807 = vmatprep.subr.bf16.mxu0 0
  %1808 = vmatpush1.bf16.msra.mxu0 %v193
  %1809 = vmatprep.subr.bf16.mxu0 0
  %1810 = vmatpush1.bf16.msra.mxu0 %v194
  %1811 = vmatprep.subr.bf16.mxu0 0
  %1812 = vmatpush1.bf16.msra.mxu0 %v195
  %1813 = vmatprep.subr.bf16.mxu0 0
  %1814 = vmatpush1.bf16.msra.mxu0 %v196
  %1815 = vmatprep.subr.bf16.mxu0 0
  %1816 = vmatpush1.bf16.msra.mxu0 %v197
  %1817 = vmatprep.subr.bf16.mxu0 0
  %1818 = vmatpush1.bf16.msra.mxu0 %v198
  %1819 = vmatprep.subr.bf16.mxu0 0
  %1820 = vmatpush1.bf16.msra.mxu0 %v199
  %1821 = vmatprep.subr.bf16.mxu0 0
  %1822 = vmatpush1.bf16.msra.mxu0 0
  %1823 = vmatprep.subr.bf16.mxu0 0
  %1824 = vmatpush1.bf16.msra.mxu0 0
  %1825 = vmatprep.subr.bf16.mxu0 0
  %1826 = vmatpush1.bf16.msra.mxu0 0
  %1827 = vmatprep.subr.bf16.mxu0 0
  %1828 = vmatpush1.bf16.msra.mxu0 0
  %1829 = vmatprep.subr.bf16.mxu0 0
  %1830 = vmatpush1.bf16.msra.mxu0 0
  %1831 = vmatprep.subr.bf16.mxu0 0
  %1832 = vmatpush1.bf16.msra.mxu0 0
  %1833 = vmatprep.subr.bf16.mxu0 0
  %1834 = vmatpush1.bf16.msra.mxu0 0
  %1835 = vmatprep.subr.bf16.mxu0 0
  %1836 = vmatpush1.bf16.msra.mxu0 0
  %1837 = vmatprep.mubr.bf16.mxu0 0
  %1838 = vmatmul.mubr.bf16.gmra.mrb[0].mxu0 %v1804
  %v1839 = vpop.f32.mrb[0].mxu0
  %v1840 = vadd.f32 %v159, %v1839
  %v1841 = vpop.f32.mrb[0].mxu0
  %v1842 = vpop.f32.mrb[0].mxu0
  %v1843 = vpop.f32.mrb[0].mxu0
  %1844 = vdwg.mxu0
  %v1845 = vmul.f32 %v1669, 3.0
  %v1846 = vadd.f32 %v1584, %v1845
  %v1847 = vmul.f32 %v1754, 3.0
  %v1848 = vadd.f32 %v1846, %v1847
  %v1849 = vadd.f32 %v1848, %v1840
  %v1850 = vmul.f32 %v1849, 0.125
  %v1851 = vadd.f32 %v1502, %v1850
  %v1852 = vpack.c.bf16 %v1851, %v1851
  %1853 = vmatprep.subr.bf16.mxu0 0
  %1854 = vmatpush1.bf16.msra.mxu0 %v561
  %1855 = vmatprep.subr.bf16.mxu0 0
  %1856 = vmatpush1.bf16.msra.mxu0 %v562
  %1857 = vmatprep.subr.bf16.mxu0 0
  %1858 = vmatpush1.bf16.msra.mxu0 %v563
  %1859 = vmatprep.subr.bf16.mxu0 0
  %1860 = vmatpush1.bf16.msra.mxu0 %v564
  %1861 = vmatprep.subr.bf16.mxu0 0
  %1862 = vmatpush1.bf16.msra.mxu0 %v565
  %1863 = vmatprep.subr.bf16.mxu0 0
  %1864 = vmatpush1.bf16.msra.mxu0 %v566
  %1865 = vmatprep.subr.bf16.mxu0 0
  %1866 = vmatpush1.bf16.msra.mxu0 %v567
  %1867 = vmatprep.subr.bf16.mxu0 0
  %1868 = vmatpush1.bf16.msra.mxu0 %v568
  %1869 = vmatprep.subr.bf16.mxu0 0
  %1870 = vmatpush1.bf16.msra.mxu0 0
  %1871 = vmatprep.subr.bf16.mxu0 0
  %1872 = vmatpush1.bf16.msra.mxu0 0
  %1873 = vmatprep.subr.bf16.mxu0 0
  %1874 = vmatpush1.bf16.msra.mxu0 0
  %1875 = vmatprep.subr.bf16.mxu0 0
  %1876 = vmatpush1.bf16.msra.mxu0 0
  %1877 = vmatprep.subr.bf16.mxu0 0
  %1878 = vmatpush1.bf16.msra.mxu0 0
  %1879 = vmatprep.subr.bf16.mxu0 0
  %1880 = vmatpush1.bf16.msra.mxu0 0
  %1881 = vmatprep.subr.bf16.mxu0 0
  %1882 = vmatpush1.bf16.msra.mxu0 0
  %1883 = vmatprep.subr.bf16.mxu0 0
  %1884 = vmatpush1.bf16.msra.mxu0 0
  %1885 = vmatprep.mubr.bf16.mxu0 0
  %1886 = vmatmul.mubr.bf16.gmra.mrb[0].mxu0 %v1852
  %v1887 = vpop.f32.mrb[0].mxu0
  %v1888 = vadd.f32 %v528, %v1887
  %v1889 = vpop.f32.mrb[0].mxu0
  %v1890 = vpop.f32.mrb[0].mxu0
  %v1891 = vpop.f32.mrb[0].mxu0
  %1892 = vdwg.mxu0
  %v1893 = vadd.f32 %v1505, %v1888
  %v1894 = vxor.u32 %v1893, 2147483648
  %v1895 = vmul.f32 %v1894, 1.442695
  %v1896 = vpow.pop %v1895
  %v1897 = vadd.f32 %v1896, 1.0
  %v1898 = vrcp.pop %v1897
  %v1899 = vmul.f32 1.0, %v1898
  %1901 = vrot.lane.b32.xlu0 %v1888, 64
  %v1902 = vpop.permute.xlu0 %1901
  %v1904 = vmul.f32 %v1899, %v1902
  %1906 = vrot.lane.b32.xlu0 %v1904, 64
  %v1907 = vpop.permute.xlu0 %1906
  %v1909 = vadd.f32 %v1505, %v1907
  %v1910 = vtanh.pop %v1909
  %v1911 = vsub.f32 1.0, %v1899
  %1913 = vrot.lane.b32.xlu0 %v1910, 96
  %v1914 = vpop.permute.xlu0 %1913
  %v1916 = vmul.f32 %v1911, %v1914
  %1918 = vrot.lane.b32.xlu0 %v1851, 32
  %v1919 = vpop.permute.xlu0 %1918
  %v1921 = vmul.f32 %v1899, %v1919
  %v1922 = vadd.f32 %v1916, %v1921
  %1924 = vrot.lane.b32.xlu0 %v1922, 96
  %v1925 = vpop.permute.xlu0 %1924
  %v1927 = vsel %vm651, %v1925, 0.0
  %s1928 = scalar_lea.vmem %s0, 16
  %v1929 = vld [vmem:[%s1928] sm:$0xf]
  %v1930 = vunpack.c.l.bf16 %v1929
  %v1931 = vpack.c.bf16 %v1927, %v1927
  %1932 = vmatprep.subr.bf16.mxu0 0
  %1933 = vmatpush1.bf16.msra.mxu0 %v85
  %1934 = vmatprep.subr.bf16.mxu0 0
  %1935 = vmatpush1.bf16.msra.mxu0 %v86
  %1936 = vmatprep.subr.bf16.mxu0 0
  %1937 = vmatpush1.bf16.msra.mxu0 %v87
  %1938 = vmatprep.subr.bf16.mxu0 0
  %1939 = vmatpush1.bf16.msra.mxu0 %v88
  %1940 = vmatprep.subr.bf16.mxu0 0
  %1941 = vmatpush1.bf16.msra.mxu0 %v89
  %1942 = vmatprep.subr.bf16.mxu0 0
  %1943 = vmatpush1.bf16.msra.mxu0 %v90
  %1944 = vmatprep.subr.bf16.mxu0 0
  %1945 = vmatpush1.bf16.msra.mxu0 %v91
  %1946 = vmatprep.subr.bf16.mxu0 0
  %1947 = vmatpush1.bf16.msra.mxu0 %v92
  %1948 = vmatprep.subr.bf16.mxu0 0
  %1949 = vmatpush1.bf16.msra.mxu0 0
  %1950 = vmatprep.subr.bf16.mxu0 0
  %1951 = vmatpush1.bf16.msra.mxu0 0
  %1952 = vmatprep.subr.bf16.mxu0 0
  %1953 = vmatpush1.bf16.msra.mxu0 0
  %1954 = vmatprep.subr.bf16.mxu0 0
  %1955 = vmatpush1.bf16.msra.mxu0 0
  %1956 = vmatprep.subr.bf16.mxu0 0
  %1957 = vmatpush1.bf16.msra.mxu0 0
  %1958 = vmatprep.subr.bf16.mxu0 0
  %1959 = vmatpush1.bf16.msra.mxu0 0
  %1960 = vmatprep.subr.bf16.mxu0 0
  %1961 = vmatpush1.bf16.msra.mxu0 0
  %1962 = vmatprep.subr.bf16.mxu0 0
  %1963 = vmatpush1.bf16.msra.mxu0 0
  %1964 = vmatprep.mubr.bf16.mxu0 0
  %1965 = vmatmul.mubr.bf16.gmra.mrb[0].mxu0 %v1931
  %v1966 = vpop.f32.mrb[0].mxu0
  %v1967 = vadd.f32 %v52, %v1966
  %v1968 = vpop.f32.mrb[0].mxu0
  %v1969 = vpop.f32.mrb[0].mxu0
  %v1970 = vpop.f32.mrb[0].mxu0
  %1971 = vdwg.mxu0
  %v1972 = vtanh.pop %v1967
  %v1973 = vpack.c.bf16 %v1972, %v1972
  %1974 = vmatprep.subr.bf16.mxu0 0
  %1975 = vmatpush1.bf16.msra.mxu0 %v192
  %1976 = vmatprep.subr.bf16.mxu0 0
  %1977 = vmatpush1.bf16.msra.mxu0 %v193
  %1978 = vmatprep.subr.bf16.mxu0 0
  %1979 = vmatpush1.bf16.msra.mxu0 %v194
  %1980 = vmatprep.subr.bf16.mxu0 0
  %1981 = vmatpush1.bf16.msra.mxu0 %v195
  %1982 = vmatprep.subr.bf16.mxu0 0
  %1983 = vmatpush1.bf16.msra.mxu0 %v196
  %1984 = vmatprep.subr.bf16.mxu0 0
  %1985 = vmatpush1.bf16.msra.mxu0 %v197
  %1986 = vmatprep.subr.bf16.mxu0 0
  %1987 = vmatpush1.bf16.msra.mxu0 %v198
  %1988 = vmatprep.subr.bf16.mxu0 0
  %1989 = vmatpush1.bf16.msra.mxu0 %v199
  %1990 = vmatprep.subr.bf16.mxu0 0
  %1991 = vmatpush1.bf16.msra.mxu0 0
  %1992 = vmatprep.subr.bf16.mxu0 0
  %1993 = vmatpush1.bf16.msra.mxu0 0
  %1994 = vmatprep.subr.bf16.mxu0 0
  %1995 = vmatpush1.bf16.msra.mxu0 0
  %1996 = vmatprep.subr.bf16.mxu0 0
  %1997 = vmatpush1.bf16.msra.mxu0 0
  %1998 = vmatprep.subr.bf16.mxu0 0
  %1999 = vmatpush1.bf16.msra.mxu0 0
  %2000 = vmatprep.subr.bf16.mxu0 0
  %2001 = vmatpush1.bf16.msra.mxu0 0
  %2002 = vmatprep.subr.bf16.mxu0 0
  %2003 = vmatpush1.bf16.msra.mxu0 0
  %2004 = vmatprep.subr.bf16.mxu0 0
  %2005 = vmatpush1.bf16.msra.mxu0 0
  %2006 = vmatprep.mubr.bf16.mxu0 0
  %2007 = vmatmul.mubr.bf16.gmra.mrb[0].mxu0 %v1973
  %v2008 = vpop.f32.mrb[0].mxu0
  %v2009 = vadd.f32 %v159, %v2008
  %v2010 = vpop.f32.mrb[0].mxu0
  %v2011 = vpop.f32.mrb[0].mxu0
  %v2012 = vpop.f32.mrb[0].mxu0
  %2013 = vdwg.mxu0
  %v2014 = vmul.f32 %v2009, 0.33333334
  %v2015 = vadd.f32 %v1927, %v2014
  %v2016 = vpack.c.bf16 %v2015, %v2015
  %2017 = vmatprep.subr.bf16.mxu0 0
  %2018 = vmatpush1.bf16.msra.mxu0 %v85
  %2019 = vmatprep.subr.bf16.mxu0 0
  %2020 = vmatpush1.bf16.msra.mxu0 %v86
  %2021 = vmatprep.subr.bf16.mxu0 0
  %2022 = vmatpush1.bf16.msra.mxu0 %v87
  %2023 = vmatprep.subr.bf16.mxu0 0
  %2024 = vmatpush1.bf16.msra.mxu0 %v88
  %2025 = vmatprep.subr.bf16.mxu0 0
  %2026 = vmatpush1.bf16.msra.mxu0 %v89
  %2027 = vmatprep.subr.bf16.mxu0 0
  %2028 = vmatpush1.bf16.msra.mxu0 %v90
  %2029 = vmatprep.subr.bf16.mxu0 0
  %2030 = vmatpush1.bf16.msra.mxu0 %v91
  %2031 = vmatprep.subr.bf16.mxu0 0
  %2032 = vmatpush1.bf16.msra.mxu0 %v92
  %2033 = vmatprep.subr.bf16.mxu0 0
  %2034 = vmatpush1.bf16.msra.mxu0 0
  %2035 = vmatprep.subr.bf16.mxu0 0
  %2036 = vmatpush1.bf16.msra.mxu0 0
  %2037 = vmatprep.subr.bf16.mxu0 0
  %2038 = vmatpush1.bf16.msra.mxu0 0
  %2039 = vmatprep.subr.bf16.mxu0 0
  %2040 = vmatpush1.bf16.msra.mxu0 0
  %2041 = vmatprep.subr.bf16.mxu0 0
  %2042 = vmatpush1.bf16.msra.mxu0 0
  %2043 = vmatprep.subr.bf16.mxu0 0
  %2044 = vmatpush1.bf16.msra.mxu0 0
  %2045 = vmatprep.subr.bf16.mxu0 0
  %2046 = vmatpush1.bf16.msra.mxu0 0
  %2047 = vmatprep.subr.bf16.mxu0 0
  %2048 = vmatpush1.bf16.msra.mxu0 0
  %2049 = vmatprep.mubr.bf16.mxu0 0
  %2050 = vmatmul.mubr.bf16.gmra.mrb[0].mxu0 %v2016
  %v2051 = vpop.f32.mrb[0].mxu0
  %v2052 = vadd.f32 %v52, %v2051
  %v2053 = vpop.f32.mrb[0].mxu0
  %v2054 = vpop.f32.mrb[0].mxu0
  %v2055 = vpop.f32.mrb[0].mxu0
  %2056 = vdwg.mxu0
  %v2057 = vtanh.pop %v2052
  %v2058 = vpack.c.bf16 %v2057, %v2057
  %2059 = vmatprep.subr.bf16.mxu0 0
  %2060 = vmatpush1.bf16.msra.mxu0 %v192
  %2061 = vmatprep.subr.bf16.mxu0 0
  %2062 = vmatpush1.bf16.msra.mxu0 %v193
  %2063 = vmatprep.subr.bf16.mxu0 0
  %2064 = vmatpush1.bf16.msra.mxu0 %v194
  %2065 = vmatprep.subr.bf16.mxu0 0
  %2066 = vmatpush1.bf16.msra.mxu0 %v195
  %2067 = vmatprep.subr.bf16.mxu0 0
  %2068 = vmatpush1.bf16.msra.mxu0 %v196
  %2069 = vmatprep.subr.bf16.mxu0 0
  %2070 = vmatpush1.bf16.msra.mxu0 %v197
  %2071 = vmatprep.subr.bf16.mxu0 0
  %2072 = vmatpush1.bf16.msra.mxu0 %v198
  %2073 = vmatprep.subr.bf16.mxu0 0
  %2074 = vmatpush1.bf16.msra.mxu0 %v199
  %2075 = vmatprep.subr.bf16.mxu0 0
  %2076 = vmatpush1.bf16.msra.mxu0 0
  %2077 = vmatprep.subr.bf16.mxu0 0
  %2078 = vmatpush1.bf16.msra.mxu0 0
  %2079 = vmatprep.subr.bf16.mxu0 0
  %2080 = vmatpush1.bf16.msra.mxu0 0
  %2081 = vmatprep.subr.bf16.mxu0 0
  %2082 = vmatpush1.bf16.msra.mxu0 0
  %2083 = vmatprep.subr.bf16.mxu0 0
  %2084 = vmatpush1.bf16.msra.mxu0 0
  %2085 = vmatprep.subr.bf16.mxu0 0
  %2086 = vmatpush1.bf16.msra.mxu0 0
  %2087 = vmatprep.subr.bf16.mxu0 0
  %2088 = vmatpush1.bf16.msra.mxu0 0
  %2089 = vmatprep.subr.bf16.mxu0 0
  %2090 = vmatpush1.bf16.msra.mxu0 0
  %2091 = vmatprep.mubr.bf16.mxu0 0
  %2092 = vmatmul.mubr.bf16.gmra.mrb[0].mxu0 %v2058
  %v2093 = vpop.f32.mrb[0].mxu0
  %v2094 = vadd.f32 %v159, %v2093
  %v2095 = vpop.f32.mrb[0].mxu0
  %v2096 = vpop.f32.mrb[0].mxu0
  %v2097 = vpop.f32.mrb[0].mxu0
  %2098 = vdwg.mxu0
  %v2099 = vsub.f32 %v2094, %v2014
  %v2100 = vadd.f32 %v1927, %v2099
  %v2101 = vpack.c.bf16 %v2100, %v2100
  %2102 = vmatprep.subr.bf16.mxu0 0
  %2103 = vmatpush1.bf16.msra.mxu0 %v85
  %2104 = vmatprep.subr.bf16.mxu0 0
  %2105 = vmatpush1.bf16.msra.mxu0 %v86
  %2106 = vmatprep.subr.bf16.mxu0 0
  %2107 = vmatpush1.bf16.msra.mxu0 %v87
  %2108 = vmatprep.subr.bf16.mxu0 0
  %2109 = vmatpush1.bf16.msra.mxu0 %v88
  %2110 = vmatprep.subr.bf16.mxu0 0
  %2111 = vmatpush1.bf16.msra.mxu0 %v89
  %2112 = vmatprep.subr.bf16.mxu0 0
  %2113 = vmatpush1.bf16.msra.mxu0 %v90
  %2114 = vmatprep.subr.bf16.mxu0 0
  %2115 = vmatpush1.bf16.msra.mxu0 %v91
  %2116 = vmatprep.subr.bf16.mxu0 0
  %2117 = vmatpush1.bf16.msra.mxu0 %v92
  %2118 = vmatprep.subr.bf16.mxu0 0
  %2119 = vmatpush1.bf16.msra.mxu0 0
  %2120 = vmatprep.subr.bf16.mxu0 0
  %2121 = vmatpush1.bf16.msra.mxu0 0
  %2122 = vmatprep.subr.bf16.mxu0 0
  %2123 = vmatpush1.bf16.msra.mxu0 0
  %2124 = vmatprep.subr.bf16.mxu0 0
  %2125 = vmatpush1.bf16.msra.mxu0 0
  %2126 = vmatprep.subr.bf16.mxu0 0
  %2127 = vmatpush1.bf16.msra.mxu0 0
  %2128 = vmatprep.subr.bf16.mxu0 0
  %2129 = vmatpush1.bf16.msra.mxu0 0
  %2130 = vmatprep.subr.bf16.mxu0 0
  %2131 = vmatpush1.bf16.msra.mxu0 0
  %2132 = vmatprep.subr.bf16.mxu0 0
  %2133 = vmatpush1.bf16.msra.mxu0 0
  %2134 = vmatprep.mubr.bf16.mxu0 0
  %2135 = vmatmul.mubr.bf16.gmra.mrb[0].mxu0 %v2101
  %v2136 = vpop.f32.mrb[0].mxu0
  %v2137 = vadd.f32 %v52, %v2136
  %v2138 = vpop.f32.mrb[0].mxu0
  %v2139 = vpop.f32.mrb[0].mxu0
  %v2140 = vpop.f32.mrb[0].mxu0
  %2141 = vdwg.mxu0
  %v2142 = vtanh.pop %v2137
  %v2143 = vpack.c.bf16 %v2142, %v2142
  %2144 = vmatprep.subr.bf16.mxu0 0
  %2145 = vmatpush1.bf16.msra.mxu0 %v192
  %2146 = vmatprep.subr.bf16.mxu0 0
  %2147 = vmatpush1.bf16.msra.mxu0 %v193
  %2148 = vmatprep.subr.bf16.mxu0 0
  %2149 = vmatpush1.bf16.msra.mxu0 %v194
  %2150 = vmatprep.subr.bf16.mxu0 0
  %2151 = vmatpush1.bf16.msra.mxu0 %v195
  %2152 = vmatprep.subr.bf16.mxu0 0
  %2153 = vmatpush1.bf16.msra.mxu0 %v196
  %2154 = vmatprep.subr.bf16.mxu0 0
  %2155 = vmatpush1.bf16.msra.mxu0 %v197
  %2156 = vmatprep.subr.bf16.mxu0 0
  %2157 = vmatpush1.bf16.msra.mxu0 %v198
  %2158 = vmatprep.subr.bf16.mxu0 0
  %2159 = vmatpush1.bf16.msra.mxu0 %v199
  %2160 = vmatprep.subr.bf16.mxu0 0
  %2161 = vmatpush1.bf16.msra.mxu0 0
  %2162 = vmatprep.subr.bf16.mxu0 0
  %2163 = vmatpush1.bf16.msra.mxu0 0
  %2164 = vmatprep.subr.bf16.mxu0 0
  %2165 = vmatpush1.bf16.msra.mxu0 0
  %2166 = vmatprep.subr.bf16.mxu0 0
  %2167 = vmatpush1.bf16.msra.mxu0 0
  %2168 = vmatprep.subr.bf16.mxu0 0
  %2169 = vmatpush1.bf16.msra.mxu0 0
  %2170 = vmatprep.subr.bf16.mxu0 0
  %2171 = vmatpush1.bf16.msra.mxu0 0
  %2172 = vmatprep.subr.bf16.mxu0 0
  %2173 = vmatpush1.bf16.msra.mxu0 0
  %2174 = vmatprep.subr.bf16.mxu0 0
  %2175 = vmatpush1.bf16.msra.mxu0 0
  %2176 = vmatprep.mubr.bf16.mxu0 0
  %2177 = vmatmul.mubr.bf16.gmra.mrb[0].mxu0 %v2143
  %v2178 = vpop.f32.mrb[0].mxu0
  %v2179 = vadd.f32 %v159, %v2178
  %v2180 = vpop.f32.mrb[0].mxu0
  %v2181 = vpop.f32.mrb[0].mxu0
  %v2182 = vpop.f32.mrb[0].mxu0
  %2183 = vdwg.mxu0
  %v2184 = vsub.f32 %v2009, %v2094
  %v2185 = vadd.f32 %v2184, %v2179
  %v2186 = vadd.f32 %v1927, %v2185
  %v2187 = vpack.c.bf16 %v2186, %v2186
  %2188 = vmatprep.subr.bf16.mxu0 0
  %2189 = vmatpush1.bf16.msra.mxu0 %v85
  %2190 = vmatprep.subr.bf16.mxu0 0
  %2191 = vmatpush1.bf16.msra.mxu0 %v86
  %2192 = vmatprep.subr.bf16.mxu0 0
  %2193 = vmatpush1.bf16.msra.mxu0 %v87
  %2194 = vmatprep.subr.bf16.mxu0 0
  %2195 = vmatpush1.bf16.msra.mxu0 %v88
  %2196 = vmatprep.subr.bf16.mxu0 0
  %2197 = vmatpush1.bf16.msra.mxu0 %v89
  %2198 = vmatprep.subr.bf16.mxu0 0
  %2199 = vmatpush1.bf16.msra.mxu0 %v90
  %2200 = vmatprep.subr.bf16.mxu0 0
  %2201 = vmatpush1.bf16.msra.mxu0 %v91
  %2202 = vmatprep.subr.bf16.mxu0 0
  %2203 = vmatpush1.bf16.msra.mxu0 %v92
  %2204 = vmatprep.subr.bf16.mxu0 0
  %2205 = vmatpush1.bf16.msra.mxu0 0
  %2206 = vmatprep.subr.bf16.mxu0 0
  %2207 = vmatpush1.bf16.msra.mxu0 0
  %2208 = vmatprep.subr.bf16.mxu0 0
  %2209 = vmatpush1.bf16.msra.mxu0 0
  %2210 = vmatprep.subr.bf16.mxu0 0
  %2211 = vmatpush1.bf16.msra.mxu0 0
  %2212 = vmatprep.subr.bf16.mxu0 0
  %2213 = vmatpush1.bf16.msra.mxu0 0
  %2214 = vmatprep.subr.bf16.mxu0 0
  %2215 = vmatpush1.bf16.msra.mxu0 0
  %2216 = vmatprep.subr.bf16.mxu0 0
  %2217 = vmatpush1.bf16.msra.mxu0 0
  %2218 = vmatprep.subr.bf16.mxu0 0
  %2219 = vmatpush1.bf16.msra.mxu0 0
  %2220 = vmatprep.mubr.bf16.mxu0 0
  %2221 = vmatmul.mubr.bf16.gmra.mrb[0].mxu0 %v2187
  %v2222 = vpop.f32.mrb[0].mxu0
  %v2223 = vadd.f32 %v52, %v2222
  %v2224 = vpop.f32.mrb[0].mxu0
  %v2225 = vpop.f32.mrb[0].mxu0
  %v2226 = vpop.f32.mrb[0].mxu0
  %2227 = vdwg.mxu0
  %v2228 = vtanh.pop %v2223
  %v2229 = vpack.c.bf16 %v2228, %v2228
  %2230 = vmatprep.subr.bf16.mxu0 0
  %2231 = vmatpush1.bf16.msra.mxu0 %v192
  %2232 = vmatprep.subr.bf16.mxu0 0
  %2233 = vmatpush1.bf16.msra.mxu0 %v193
  %2234 = vmatprep.subr.bf16.mxu0 0
  %2235 = vmatpush1.bf16.msra.mxu0 %v194
  %2236 = vmatprep.subr.bf16.mxu0 0
  %2237 = vmatpush1.bf16.msra.mxu0 %v195
  %2238 = vmatprep.subr.bf16.mxu0 0
  %2239 = vmatpush1.bf16.msra.mxu0 %v196
  %2240 = vmatprep.subr.bf16.mxu0 0
  %2241 = vmatpush1.bf16.msra.mxu0 %v197
  %2242 = vmatprep.subr.bf16.mxu0 0
  %2243 = vmatpush1.bf16.msra.mxu0 %v198
  %2244 = vmatprep.subr.bf16.mxu0 0
  %2245 = vmatpush1.bf16.msra.mxu0 %v199
  %2246 = vmatprep.subr.bf16.mxu0 0
  %2247 = vmatpush1.bf16.msra.mxu0 0
  %2248 = vmatprep.subr.bf16.mxu0 0
  %2249 = vmatpush1.bf16.msra.mxu0 0
  %2250 = vmatprep.subr.bf16.mxu0 0
  %2251 = vmatpush1.bf16.msra.mxu0 0
  %2252 = vmatprep.subr.bf16.mxu0 0
  %2253 = vmatpush1.bf16.msra.mxu0 0
  %2254 = vmatprep.subr.bf16.mxu0 0
  %2255 = vmatpush1.bf16.msra.mxu0 0
  %2256 = vmatprep.subr.bf16.mxu0 0
  %2257 = vmatpush1.bf16.msra.mxu0 0
  %2258 = vmatprep.subr.bf16.mxu0 0
  %2259 = vmatpush1.bf16.msra.mxu0 0
  %2260 = vmatprep.subr.bf16.mxu0 0
  %2261 = vmatpush1.bf16.msra.mxu0 0
  %2262 = vmatprep.mubr.bf16.mxu0 0
  %2263 = vmatmul.mubr.bf16.gmra.mrb[0].mxu0 %v2229
  %v2264 = vpop.f32.mrb[0].mxu0
  %v2265 = vadd.f32 %v159, %v2264
  %v2266 = vpop.f32.mrb[0].mxu0
  %v2267 = vpop.f32.mrb[0].mxu0
  %v2268 = vpop.f32.mrb[0].mxu0
  %2269 = vdwg.mxu0
  %v2270 = vmul.f32 %v2094, 3.0
  %v2271 = vadd.f32 %v2009, %v2270
  %v2272 = vmul.f32 %v2179, 3.0
  %v2273 = vadd.f32 %v2271, %v2272
  %v2274 = vadd.f32 %v2273, %v2265
  %v2275 = vmul.f32 %v2274, 0.125
  %v2276 = vadd.f32 %v1927, %v2275
  %v2277 = vpack.c.bf16 %v2276, %v2276
  %2278 = vmatprep.subr.bf16.mxu0 0
  %2279 = vmatpush1.bf16.msra.mxu0 %v561
  %2280 = vmatprep.subr.bf16.mxu0 0
  %2281 = vmatpush1.bf16.msra.mxu0 %v562
  %2282 = vmatprep.subr.bf16.mxu0 0
  %2283 = vmatpush1.bf16.msra.mxu0 %v563
  %2284 = vmatprep.subr.bf16.mxu0 0
  %2285 = vmatpush1.bf16.msra.mxu0 %v564
  %2286 = vmatprep.subr.bf16.mxu0 0
  %2287 = vmatpush1.bf16.msra.mxu0 %v565
  %2288 = vmatprep.subr.bf16.mxu0 0
  %2289 = vmatpush1.bf16.msra.mxu0 %v566
  %2290 = vmatprep.subr.bf16.mxu0 0
  %2291 = vmatpush1.bf16.msra.mxu0 %v567
  %2292 = vmatprep.subr.bf16.mxu0 0
  %2293 = vmatpush1.bf16.msra.mxu0 %v568
  %2294 = vmatprep.subr.bf16.mxu0 0
  %2295 = vmatpush1.bf16.msra.mxu0 0
  %2296 = vmatprep.subr.bf16.mxu0 0
  %2297 = vmatpush1.bf16.msra.mxu0 0
  %2298 = vmatprep.subr.bf16.mxu0 0
  %2299 = vmatpush1.bf16.msra.mxu0 0
  %2300 = vmatprep.subr.bf16.mxu0 0
  %2301 = vmatpush1.bf16.msra.mxu0 0
  %2302 = vmatprep.subr.bf16.mxu0 0
  %2303 = vmatpush1.bf16.msra.mxu0 0
  %2304 = vmatprep.subr.bf16.mxu0 0
  %2305 = vmatpush1.bf16.msra.mxu0 0
  %2306 = vmatprep.subr.bf16.mxu0 0
  %2307 = vmatpush1.bf16.msra.mxu0 0
  %2308 = vmatprep.subr.bf16.mxu0 0
  %2309 = vmatpush1.bf16.msra.mxu0 0
  %2310 = vmatprep.mubr.bf16.mxu0 0
  %2311 = vmatmul.mubr.bf16.gmra.mrb[0].mxu0 %v2277
  %v2312 = vpop.f32.mrb[0].mxu0
  %v2313 = vadd.f32 %v528, %v2312
  %v2314 = vpop.f32.mrb[0].mxu0
  %v2315 = vpop.f32.mrb[0].mxu0
  %v2316 = vpop.f32.mrb[0].mxu0
  %2317 = vdwg.mxu0
  %v2318 = vadd.f32 %v1930, %v2313
  %v2319 = vxor.u32 %v2318, 2147483648
  %v2320 = vmul.f32 %v2319, 1.442695
  %v2321 = vpow.pop %v2320
  %v2322 = vadd.f32 %v2321, 1.0
  %v2323 = vrcp.pop %v2322
  %v2324 = vmul.f32 1.0, %v2323
  %2326 = vrot.lane.b32.xlu0 %v2313, 64
  %v2327 = vpop.permute.xlu0 %2326
  %v2329 = vmul.f32 %v2324, %v2327
  %2331 = vrot.lane.b32.xlu0 %v2329, 64
  %v2332 = vpop.permute.xlu0 %2331
  %v2334 = vadd.f32 %v1930, %v2332
  %v2335 = vtanh.pop %v2334
  %v2336 = vsub.f32 1.0, %v2324
  %2338 = vrot.lane.b32.xlu0 %v2335, 96
  %v2339 = vpop.permute.xlu0 %2338
  %v2341 = vmul.f32 %v2336, %v2339
  %2343 = vrot.lane.b32.xlu0 %v2276, 32
  %v2344 = vpop.permute.xlu0 %2343
  %v2346 = vmul.f32 %v2324, %v2344
  %v2347 = vadd.f32 %v2341, %v2346
  %2349 = vrot.lane.b32.xlu0 %v2347, 96
  %v2350 = vpop.permute.xlu0 %2349
  %v2352 = vsel %vm651, %v2350, 0.0
  %s2353 = scalar_lea.vmem %s0, 20
  %v2354 = vld [vmem:[%s2353] sm:$0xf]
  %v2355 = vunpack.c.l.bf16 %v2354
  %v2356 = vpack.c.bf16 %v2352, %v2352
  %2357 = vmatprep.subr.bf16.mxu0 0
  %2358 = vmatpush1.bf16.msra.mxu0 %v85
  %2359 = vmatprep.subr.bf16.mxu0 0
  %2360 = vmatpush1.bf16.msra.mxu0 %v86
  %2361 = vmatprep.subr.bf16.mxu0 0
  %2362 = vmatpush1.bf16.msra.mxu0 %v87
  %2363 = vmatprep.subr.bf16.mxu0 0
  %2364 = vmatpush1.bf16.msra.mxu0 %v88
  %2365 = vmatprep.subr.bf16.mxu0 0
  %2366 = vmatpush1.bf16.msra.mxu0 %v89
  %2367 = vmatprep.subr.bf16.mxu0 0
  %2368 = vmatpush1.bf16.msra.mxu0 %v90
  %2369 = vmatprep.subr.bf16.mxu0 0
  %2370 = vmatpush1.bf16.msra.mxu0 %v91
  %2371 = vmatprep.subr.bf16.mxu0 0
  %2372 = vmatpush1.bf16.msra.mxu0 %v92
  %2373 = vmatprep.subr.bf16.mxu0 0
  %2374 = vmatpush1.bf16.msra.mxu0 0
  %2375 = vmatprep.subr.bf16.mxu0 0
  %2376 = vmatpush1.bf16.msra.mxu0 0
  %2377 = vmatprep.subr.bf16.mxu0 0
  %2378 = vmatpush1.bf16.msra.mxu0 0
  %2379 = vmatprep.subr.bf16.mxu0 0
  %2380 = vmatpush1.bf16.msra.mxu0 0
  %2381 = vmatprep.subr.bf16.mxu0 0
  %2382 = vmatpush1.bf16.msra.mxu0 0
  %2383 = vmatprep.subr.bf16.mxu0 0
  %2384 = vmatpush1.bf16.msra.mxu0 0
  %2385 = vmatprep.subr.bf16.mxu0 0
  %2386 = vmatpush1.bf16.msra.mxu0 0
  %2387 = vmatprep.subr.bf16.mxu0 0
  %2388 = vmatpush1.bf16.msra.mxu0 0
  %2389 = vmatprep.mubr.bf16.mxu0 0
  %2390 = vmatmul.mubr.bf16.gmra.mrb[0].mxu0 %v2356
  %v2391 = vpop.f32.mrb[0].mxu0
  %v2392 = vadd.f32 %v52, %v2391
  %v2393 = vpop.f32.mrb[0].mxu0
  %v2394 = vpop.f32.mrb[0].mxu0
  %v2395 = vpop.f32.mrb[0].mxu0
  %2396 = vdwg.mxu0
  %v2397 = vtanh.pop %v2392
  %v2398 = vpack.c.bf16 %v2397, %v2397
  %2399 = vmatprep.subr.bf16.mxu0 0
  %2400 = vmatpush1.bf16.msra.mxu0 %v192
  %2401 = vmatprep.subr.bf16.mxu0 0
  %2402 = vmatpush1.bf16.msra.mxu0 %v193
  %2403 = vmatprep.subr.bf16.mxu0 0
  %2404 = vmatpush1.bf16.msra.mxu0 %v194
  %2405 = vmatprep.subr.bf16.mxu0 0
  %2406 = vmatpush1.bf16.msra.mxu0 %v195
  %2407 = vmatprep.subr.bf16.mxu0 0
  %2408 = vmatpush1.bf16.msra.mxu0 %v196
  %2409 = vmatprep.subr.bf16.mxu0 0
  %2410 = vmatpush1.bf16.msra.mxu0 %v197
  %2411 = vmatprep.subr.bf16.mxu0 0
  %2412 = vmatpush1.bf16.msra.mxu0 %v198
  %2413 = vmatprep.subr.bf16.mxu0 0
  %2414 = vmatpush1.bf16.msra.mxu0 %v199
  %2415 = vmatprep.subr.bf16.mxu0 0
  %2416 = vmatpush1.bf16.msra.mxu0 0
  %2417 = vmatprep.subr.bf16.mxu0 0
  %2418 = vmatpush1.bf16.msra.mxu0 0
  %2419 = vmatprep.subr.bf16.mxu0 0
  %2420 = vmatpush1.bf16.msra.mxu0 0
  %2421 = vmatprep.subr.bf16.mxu0 0
  %2422 = vmatpush1.bf16.msra.mxu0 0
  %2423 = vmatprep.subr.bf16.mxu0 0
  %2424 = vmatpush1.bf16.msra.mxu0 0
  %2425 = vmatprep.subr.bf16.mxu0 0
  %2426 = vmatpush1.bf16.msra.mxu0 0
  %2427 = vmatprep.subr.bf16.mxu0 0
  %2428 = vmatpush1.bf16.msra.mxu0 0
  %2429 = vmatprep.subr.bf16.mxu0 0
  %2430 = vmatpush1.bf16.msra.mxu0 0
  %2431 = vmatprep.mubr.bf16.mxu0 0
  %2432 = vmatmul.mubr.bf16.gmra.mrb[0].mxu0 %v2398
  %v2433 = vpop.f32.mrb[0].mxu0
  %v2434 = vadd.f32 %v159, %v2433
  %v2435 = vpop.f32.mrb[0].mxu0
  %v2436 = vpop.f32.mrb[0].mxu0
  %v2437 = vpop.f32.mrb[0].mxu0
  %2438 = vdwg.mxu0
  %v2439 = vmul.f32 %v2434, 0.33333334
  %v2440 = vadd.f32 %v2352, %v2439
  %v2441 = vpack.c.bf16 %v2440, %v2440
  %2442 = vmatprep.subr.bf16.mxu0 0
  %2443 = vmatpush1.bf16.msra.mxu0 %v85
  %2444 = vmatprep.subr.bf16.mxu0 0
  %2445 = vmatpush1.bf16.msra.mxu0 %v86
  %2446 = vmatprep.subr.bf16.mxu0 0
  %2447 = vmatpush1.bf16.msra.mxu0 %v87
  %2448 = vmatprep.subr.bf16.mxu0 0
  %2449 = vmatpush1.bf16.msra.mxu0 %v88
  %2450 = vmatprep.subr.bf16.mxu0 0
  %2451 = vmatpush1.bf16.msra.mxu0 %v89
  %2452 = vmatprep.subr.bf16.mxu0 0
  %2453 = vmatpush1.bf16.msra.mxu0 %v90
  %2454 = vmatprep.subr.bf16.mxu0 0
  %2455 = vmatpush1.bf16.msra.mxu0 %v91
  %2456 = vmatprep.subr.bf16.mxu0 0
  %2457 = vmatpush1.bf16.msra.mxu0 %v92
  %2458 = vmatprep.subr.bf16.mxu0 0
  %2459 = vmatpush1.bf16.msra.mxu0 0
  %2460 = vmatprep.subr.bf16.mxu0 0
  %2461 = vmatpush1.bf16.msra.mxu0 0
  %2462 = vmatprep.subr.bf16.mxu0 0
  %2463 = vmatpush1.bf16.msra.mxu0 0
  %2464 = vmatprep.subr.bf16.mxu0 0
  %2465 = vmatpush1.bf16.msra.mxu0 0
  %2466 = vmatprep.subr.bf16.mxu0 0
  %2467 = vmatpush1.bf16.msra.mxu0 0
  %2468 = vmatprep.subr.bf16.mxu0 0
  %2469 = vmatpush1.bf16.msra.mxu0 0
  %2470 = vmatprep.subr.bf16.mxu0 0
  %2471 = vmatpush1.bf16.msra.mxu0 0
  %2472 = vmatprep.subr.bf16.mxu0 0
  %2473 = vmatpush1.bf16.msra.mxu0 0
  %2474 = vmatprep.mubr.bf16.mxu0 0
  %2475 = vmatmul.mubr.bf16.gmra.mrb[0].mxu0 %v2441
  %v2476 = vpop.f32.mrb[0].mxu0
  %v2477 = vadd.f32 %v52, %v2476
  %v2478 = vpop.f32.mrb[0].mxu0
  %v2479 = vpop.f32.mrb[0].mxu0
  %v2480 = vpop.f32.mrb[0].mxu0
  %2481 = vdwg.mxu0
  %v2482 = vtanh.pop %v2477
  %v2483 = vpack.c.bf16 %v2482, %v2482
  %2484 = vmatprep.subr.bf16.mxu0 0
  %2485 = vmatpush1.bf16.msra.mxu0 %v192
  %2486 = vmatprep.subr.bf16.mxu0 0
  %2487 = vmatpush1.bf16.msra.mxu0 %v193
  %2488 = vmatprep.subr.bf16.mxu0 0
  %2489 = vmatpush1.bf16.msra.mxu0 %v194
  %2490 = vmatprep.subr.bf16.mxu0 0
  %2491 = vmatpush1.bf16.msra.mxu0 %v195
  %2492 = vmatprep.subr.bf16.mxu0 0
  %2493 = vmatpush1.bf16.msra.mxu0 %v196
  %2494 = vmatprep.subr.bf16.mxu0 0
  %2495 = vmatpush1.bf16.msra.mxu0 %v197
  %2496 = vmatprep.subr.bf16.mxu0 0
  %2497 = vmatpush1.bf16.msra.mxu0 %v198
  %2498 = vmatprep.subr.bf16.mxu0 0
  %2499 = vmatpush1.bf16.msra.mxu0 %v199
  %2500 = vmatprep.subr.bf16.mxu0 0
  %2501 = vmatpush1.bf16.msra.mxu0 0
  %2502 = vmatprep.subr.bf16.mxu0 0
  %2503 = vmatpush1.bf16.msra.mxu0 0
  %2504 = vmatprep.subr.bf16.mxu0 0
  %2505 = vmatpush1.bf16.msra.mxu0 0
  %2506 = vmatprep.subr.bf16.mxu0 0
  %2507 = vmatpush1.bf16.msra.mxu0 0
  %2508 = vmatprep.subr.bf16.mxu0 0
  %2509 = vmatpush1.bf16.msra.mxu0 0
  %2510 = vmatprep.subr.bf16.mxu0 0
  %2511 = vmatpush1.bf16.msra.mxu0 0
  %2512 = vmatprep.subr.bf16.mxu0 0
  %2513 = vmatpush1.bf16.msra.mxu0 0
  %2514 = vmatprep.subr.bf16.mxu0 0
  %2515 = vmatpush1.bf16.msra.mxu0 0
  %2516 = vmatprep.mubr.bf16.mxu0 0
  %2517 = vmatmul.mubr.bf16.gmra.mrb[0].mxu0 %v2483
  %v2518 = vpop.f32.mrb[0].mxu0
  %v2519 = vadd.f32 %v159, %v2518
  %v2520 = vpop.f32.mrb[0].mxu0
  %v2521 = vpop.f32.mrb[0].mxu0
  %v2522 = vpop.f32.mrb[0].mxu0
  %2523 = vdwg.mxu0
  %v2524 = vsub.f32 %v2519, %v2439
  %v2525 = vadd.f32 %v2352, %v2524
  %v2526 = vpack.c.bf16 %v2525, %v2525
  %2527 = vmatprep.subr.bf16.mxu0 0
  %2528 = vmatpush1.bf16.msra.mxu0 %v85
  %2529 = vmatprep.subr.bf16.mxu0 0
  %2530 = vmatpush1.bf16.msra.mxu0 %v86
  %2531 = vmatprep.subr.bf16.mxu0 0
  %2532 = vmatpush1.bf16.msra.mxu0 %v87
  %2533 = vmatprep.subr.bf16.mxu0 0
  %2534 = vmatpush1.bf16.msra.mxu0 %v88
  %2535 = vmatprep.subr.bf16.mxu0 0
  %2536 = vmatpush1.bf16.msra.mxu0 %v89
  %2537 = vmatprep.subr.bf16.mxu0 0
  %2538 = vmatpush1.bf16.msra.mxu0 %v90
  %2539 = vmatprep.subr.bf16.mxu0 0
  %2540 = vmatpush1.bf16.msra.mxu0 %v91
  %2541 = vmatprep.subr.bf16.mxu0 0
  %2542 = vmatpush1.bf16.msra.mxu0 %v92
  %2543 = vmatprep.subr.bf16.mxu0 0
  %2544 = vmatpush1.bf16.msra.mxu0 0
  %2545 = vmatprep.subr.bf16.mxu0 0
  %2546 = vmatpush1.bf16.msra.mxu0 0
  %2547 = vmatprep.subr.bf16.mxu0 0
  %2548 = vmatpush1.bf16.msra.mxu0 0
  %2549 = vmatprep.subr.bf16.mxu0 0
  %2550 = vmatpush1.bf16.msra.mxu0 0
  %2551 = vmatprep.subr.bf16.mxu0 0
  %2552 = vmatpush1.bf16.msra.mxu0 0
  %2553 = vmatprep.subr.bf16.mxu0 0
  %2554 = vmatpush1.bf16.msra.mxu0 0
  %2555 = vmatprep.subr.bf16.mxu0 0
  %2556 = vmatpush1.bf16.msra.mxu0 0
  %2557 = vmatprep.subr.bf16.mxu0 0
  %2558 = vmatpush1.bf16.msra.mxu0 0
  %2559 = vmatprep.mubr.bf16.mxu0 0
  %2560 = vmatmul.mubr.bf16.gmra.mrb[0].mxu0 %v2526
  %v2561 = vpop.f32.mrb[0].mxu0
  %v2562 = vadd.f32 %v52, %v2561
  %v2563 = vpop.f32.mrb[0].mxu0
  %v2564 = vpop.f32.mrb[0].mxu0
  %v2565 = vpop.f32.mrb[0].mxu0
  %2566 = vdwg.mxu0
  %v2567 = vtanh.pop %v2562
  %v2568 = vpack.c.bf16 %v2567, %v2567
  %2569 = vmatprep.subr.bf16.mxu0 0
  %2570 = vmatpush1.bf16.msra.mxu0 %v192
  %2571 = vmatprep.subr.bf16.mxu0 0
  %2572 = vmatpush1.bf16.msra.mxu0 %v193
  %2573 = vmatprep.subr.bf16.mxu0 0
  %2574 = vmatpush1.bf16.msra.mxu0 %v194
  %2575 = vmatprep.subr.bf16.mxu0 0
  %2576 = vmatpush1.bf16.msra.mxu0 %v195
  %2577 = vmatprep.subr.bf16.mxu0 0
  %2578 = vmatpush1.bf16.msra.mxu0 %v196
  %2579 = vmatprep.subr.bf16.mxu0 0
  %2580 = vmatpush1.bf16.msra.mxu0 %v197
  %2581 = vmatprep.subr.bf16.mxu0 0
  %2582 = vmatpush1.bf16.msra.mxu0 %v198
  %2583 = vmatprep.subr.bf16.mxu0 0
  %2584 = vmatpush1.bf16.msra.mxu0 %v199
  %2585 = vmatprep.subr.bf16.mxu0 0
  %2586 = vmatpush1.bf16.msra.mxu0 0
  %2587 = vmatprep.subr.bf16.mxu0 0
  %2588 = vmatpush1.bf16.msra.mxu0 0
  %2589 = vmatprep.subr.bf16.mxu0 0
  %2590 = vmatpush1.bf16.msra.mxu0 0
  %2591 = vmatprep.subr.bf16.mxu0 0
  %2592 = vmatpush1.bf16.msra.mxu0 0
  %2593 = vmatprep.subr.bf16.mxu0 0
  %2594 = vmatpush1.bf16.msra.mxu0 0
  %2595 = vmatprep.subr.bf16.mxu0 0
  %2596 = vmatpush1.bf16.msra.mxu0 0
  %2597 = vmatprep.subr.bf16.mxu0 0
  %2598 = vmatpush1.bf16.msra.mxu0 0
  %2599 = vmatprep.subr.bf16.mxu0 0
  %2600 = vmatpush1.bf16.msra.mxu0 0
  %2601 = vmatprep.mubr.bf16.mxu0 0
  %2602 = vmatmul.mubr.bf16.gmra.mrb[0].mxu0 %v2568
  %v2603 = vpop.f32.mrb[0].mxu0
  %v2604 = vadd.f32 %v159, %v2603
  %v2605 = vpop.f32.mrb[0].mxu0
  %v2606 = vpop.f32.mrb[0].mxu0
  %v2607 = vpop.f32.mrb[0].mxu0
  %2608 = vdwg.mxu0
  %v2609 = vsub.f32 %v2434, %v2519
  %v2610 = vadd.f32 %v2609, %v2604
  %v2611 = vadd.f32 %v2352, %v2610
  %v2612 = vpack.c.bf16 %v2611, %v2611
  %2613 = vmatprep.subr.bf16.mxu0 0
  %2614 = vmatpush1.bf16.msra.mxu0 %v85
  %2615 = vmatprep.subr.bf16.mxu0 0
  %2616 = vmatpush1.bf16.msra.mxu0 %v86
  %2617 = vmatprep.subr.bf16.mxu0 0
  %2618 = vmatpush1.bf16.msra.mxu0 %v87
  %2619 = vmatprep.subr.bf16.mxu0 0
  %2620 = vmatpush1.bf16.msra.mxu0 %v88
  %2621 = vmatprep.subr.bf16.mxu0 0
  %2622 = vmatpush1.bf16.msra.mxu0 %v89
  %2623 = vmatprep.subr.bf16.mxu0 0
  %2624 = vmatpush1.bf16.msra.mxu0 %v90
  %2625 = vmatprep.subr.bf16.mxu0 0
  %2626 = vmatpush1.bf16.msra.mxu0 %v91
  %2627 = vmatprep.subr.bf16.mxu0 0
  %2628 = vmatpush1.bf16.msra.mxu0 %v92
  %2629 = vmatprep.subr.bf16.mxu0 0
  %2630 = vmatpush1.bf16.msra.mxu0 0
  %2631 = vmatprep.subr.bf16.mxu0 0
  %2632 = vmatpush1.bf16.msra.mxu0 0
  %2633 = vmatprep.subr.bf16.mxu0 0
  %2634 = vmatpush1.bf16.msra.mxu0 0
  %2635 = vmatprep.subr.bf16.mxu0 0
  %2636 = vmatpush1.bf16.msra.mxu0 0
  %2637 = vmatprep.subr.bf16.mxu0 0
  %2638 = vmatpush1.bf16.msra.mxu0 0
  %2639 = vmatprep.subr.bf16.mxu0 0
  %2640 = vmatpush1.bf16.msra.mxu0 0
  %2641 = vmatprep.subr.bf16.mxu0 0
  %2642 = vmatpush1.bf16.msra.mxu0 0
  %2643 = vmatprep.subr.bf16.mxu0 0
  %2644 = vmatpush1.bf16.msra.mxu0 0
  %2645 = vmatprep.mubr.bf16.mxu0 0
  %2646 = vmatmul.mubr.bf16.gmra.mrb[0].mxu0 %v2612
  %v2647 = vpop.f32.mrb[0].mxu0
  %v2648 = vadd.f32 %v52, %v2647
  %v2649 = vpop.f32.mrb[0].mxu0
  %v2650 = vpop.f32.mrb[0].mxu0
  %v2651 = vpop.f32.mrb[0].mxu0
  %2652 = vdwg.mxu0
  %v2653 = vtanh.pop %v2648
  %v2654 = vpack.c.bf16 %v2653, %v2653
  %2655 = vmatprep.subr.bf16.mxu0 0
  %2656 = vmatpush1.bf16.msra.mxu0 %v192
  %2657 = vmatprep.subr.bf16.mxu0 0
  %2658 = vmatpush1.bf16.msra.mxu0 %v193
  %2659 = vmatprep.subr.bf16.mxu0 0
  %2660 = vmatpush1.bf16.msra.mxu0 %v194
  %2661 = vmatprep.subr.bf16.mxu0 0
  %2662 = vmatpush1.bf16.msra.mxu0 %v195
  %2663 = vmatprep.subr.bf16.mxu0 0
  %2664 = vmatpush1.bf16.msra.mxu0 %v196
  %2665 = vmatprep.subr.bf16.mxu0 0
  %2666 = vmatpush1.bf16.msra.mxu0 %v197
  %2667 = vmatprep.subr.bf16.mxu0 0
  %2668 = vmatpush1.bf16.msra.mxu0 %v198
  %2669 = vmatprep.subr.bf16.mxu0 0
  %2670 = vmatpush1.bf16.msra.mxu0 %v199
  %2671 = vmatprep.subr.bf16.mxu0 0
  %2672 = vmatpush1.bf16.msra.mxu0 0
  %2673 = vmatprep.subr.bf16.mxu0 0
  %2674 = vmatpush1.bf16.msra.mxu0 0
  %2675 = vmatprep.subr.bf16.mxu0 0
  %2676 = vmatpush1.bf16.msra.mxu0 0
  %2677 = vmatprep.subr.bf16.mxu0 0
  %2678 = vmatpush1.bf16.msra.mxu0 0
  %2679 = vmatprep.subr.bf16.mxu0 0
  %2680 = vmatpush1.bf16.msra.mxu0 0
  %2681 = vmatprep.subr.bf16.mxu0 0
  %2682 = vmatpush1.bf16.msra.mxu0 0
  %2683 = vmatprep.subr.bf16.mxu0 0
  %2684 = vmatpush1.bf16.msra.mxu0 0
  %2685 = vmatprep.subr.bf16.mxu0 0
  %2686 = vmatpush1.bf16.msra.mxu0 0
  %2687 = vmatprep.mubr.bf16.mxu0 0
  %2688 = vmatmul.mubr.bf16.gmra.mrb[0].mxu0 %v2654
  %v2689 = vpop.f32.mrb[0].mxu0
  %v2690 = vadd.f32 %v159, %v2689
  %v2691 = vpop.f32.mrb[0].mxu0
  %v2692 = vpop.f32.mrb[0].mxu0
  %v2693 = vpop.f32.mrb[0].mxu0
  %2694 = vdwg.mxu0
  %v2695 = vmul.f32 %v2519, 3.0
  %v2696 = vadd.f32 %v2434, %v2695
  %v2697 = vmul.f32 %v2604, 3.0
  %v2698 = vadd.f32 %v2696, %v2697
  %v2699 = vadd.f32 %v2698, %v2690
  %v2700 = vmul.f32 %v2699, 0.125
  %v2701 = vadd.f32 %v2352, %v2700
  %v2702 = vpack.c.bf16 %v2701, %v2701
  %2703 = vmatprep.subr.bf16.mxu0 0
  %2704 = vmatpush1.bf16.msra.mxu0 %v561
  %2705 = vmatprep.subr.bf16.mxu0 0
  %2706 = vmatpush1.bf16.msra.mxu0 %v562
  %2707 = vmatprep.subr.bf16.mxu0 0
  %2708 = vmatpush1.bf16.msra.mxu0 %v563
  %2709 = vmatprep.subr.bf16.mxu0 0
  %2710 = vmatpush1.bf16.msra.mxu0 %v564
  %2711 = vmatprep.subr.bf16.mxu0 0
  %2712 = vmatpush1.bf16.msra.mxu0 %v565
  %2713 = vmatprep.subr.bf16.mxu0 0
  %2714 = vmatpush1.bf16.msra.mxu0 %v566
  %2715 = vmatprep.subr.bf16.mxu0 0
  %2716 = vmatpush1.bf16.msra.mxu0 %v567
  %2717 = vmatprep.subr.bf16.mxu0 0
  %2718 = vmatpush1.bf16.msra.mxu0 %v568
  %2719 = vmatprep.subr.bf16.mxu0 0
  %2720 = vmatpush1.bf16.msra.mxu0 0
  %2721 = vmatprep.subr.bf16.mxu0 0
  %2722 = vmatpush1.bf16.msra.mxu0 0
  %2723 = vmatprep.subr.bf16.mxu0 0
  %2724 = vmatpush1.bf16.msra.mxu0 0
  %2725 = vmatprep.subr.bf16.mxu0 0
  %2726 = vmatpush1.bf16.msra.mxu0 0
  %2727 = vmatprep.subr.bf16.mxu0 0
  %2728 = vmatpush1.bf16.msra.mxu0 0
  %2729 = vmatprep.subr.bf16.mxu0 0
  %2730 = vmatpush1.bf16.msra.mxu0 0
  %2731 = vmatprep.subr.bf16.mxu0 0
  %2732 = vmatpush1.bf16.msra.mxu0 0
  %2733 = vmatprep.subr.bf16.mxu0 0
  %2734 = vmatpush1.bf16.msra.mxu0 0
  %2735 = vmatprep.mubr.bf16.mxu0 0
  %2736 = vmatmul.mubr.bf16.gmra.mrb[0].mxu0 %v2702
  %v2737 = vpop.f32.mrb[0].mxu0
  %v2738 = vadd.f32 %v528, %v2737
  %v2739 = vpop.f32.mrb[0].mxu0
  %v2740 = vpop.f32.mrb[0].mxu0
  %v2741 = vpop.f32.mrb[0].mxu0
  %2742 = vdwg.mxu0
  %v2743 = vadd.f32 %v2355, %v2738
  %v2744 = vxor.u32 %v2743, 2147483648
  %v2745 = vmul.f32 %v2744, 1.442695
  %v2746 = vpow.pop %v2745
  %v2747 = vadd.f32 %v2746, 1.0
  %v2748 = vrcp.pop %v2747
  %v2749 = vmul.f32 1.0, %v2748
  %2751 = vrot.lane.b32.xlu0 %v2738, 64
  %v2752 = vpop.permute.xlu0 %2751
  %v2754 = vmul.f32 %v2749, %v2752
  %2756 = vrot.lane.b32.xlu0 %v2754, 64
  %v2757 = vpop.permute.xlu0 %2756
  %v2759 = vadd.f32 %v2355, %v2757
  %v2760 = vtanh.pop %v2759
  %v2761 = vsub.f32 1.0, %v2749
  %2763 = vrot.lane.b32.xlu0 %v2760, 96
  %v2764 = vpop.permute.xlu0 %2763
  %v2766 = vmul.f32 %v2761, %v2764
  %2768 = vrot.lane.b32.xlu0 %v2701, 32
  %v2769 = vpop.permute.xlu0 %2768
  %v2771 = vmul.f32 %v2749, %v2769
  %v2772 = vadd.f32 %v2766, %v2771
  %2774 = vrot.lane.b32.xlu0 %v2772, 96
  %v2775 = vpop.permute.xlu0 %2774
  %v2777 = vsel %vm651, %v2775, 0.0
  %s2778 = scalar_lea.vmem %s0, 24
  %v2779 = vld [vmem:[%s2778] sm:$0xf]
  %v2780 = vunpack.c.l.bf16 %v2779
  %v2781 = vpack.c.bf16 %v2777, %v2777
  %2782 = vmatprep.subr.bf16.mxu0 0
  %2783 = vmatpush1.bf16.msra.mxu0 %v85
  %2784 = vmatprep.subr.bf16.mxu0 0
  %2785 = vmatpush1.bf16.msra.mxu0 %v86
  %2786 = vmatprep.subr.bf16.mxu0 0
  %2787 = vmatpush1.bf16.msra.mxu0 %v87
  %2788 = vmatprep.subr.bf16.mxu0 0
  %2789 = vmatpush1.bf16.msra.mxu0 %v88
  %2790 = vmatprep.subr.bf16.mxu0 0
  %2791 = vmatpush1.bf16.msra.mxu0 %v89
  %2792 = vmatprep.subr.bf16.mxu0 0
  %2793 = vmatpush1.bf16.msra.mxu0 %v90
  %2794 = vmatprep.subr.bf16.mxu0 0
  %2795 = vmatpush1.bf16.msra.mxu0 %v91
  %2796 = vmatprep.subr.bf16.mxu0 0
  %2797 = vmatpush1.bf16.msra.mxu0 %v92
  %2798 = vmatprep.subr.bf16.mxu0 0
  %2799 = vmatpush1.bf16.msra.mxu0 0
  %2800 = vmatprep.subr.bf16.mxu0 0
  %2801 = vmatpush1.bf16.msra.mxu0 0
  %2802 = vmatprep.subr.bf16.mxu0 0
  %2803 = vmatpush1.bf16.msra.mxu0 0
  %2804 = vmatprep.subr.bf16.mxu0 0
  %2805 = vmatpush1.bf16.msra.mxu0 0
  %2806 = vmatprep.subr.bf16.mxu0 0
  %2807 = vmatpush1.bf16.msra.mxu0 0
  %2808 = vmatprep.subr.bf16.mxu0 0
  %2809 = vmatpush1.bf16.msra.mxu0 0
  %2810 = vmatprep.subr.bf16.mxu0 0
  %2811 = vmatpush1.bf16.msra.mxu0 0
  %2812 = vmatprep.subr.bf16.mxu0 0
  %2813 = vmatpush1.bf16.msra.mxu0 0
  %2814 = vmatprep.mubr.bf16.mxu0 0
  %2815 = vmatmul.mubr.bf16.gmra.mrb[0].mxu0 %v2781
  %v2816 = vpop.f32.mrb[0].mxu0
  %v2817 = vadd.f32 %v52, %v2816
  %v2818 = vpop.f32.mrb[0].mxu0
  %v2819 = vpop.f32.mrb[0].mxu0
  %v2820 = vpop.f32.mrb[0].mxu0
  %2821 = vdwg.mxu0
  %v2822 = vtanh.pop %v2817
  %v2823 = vpack.c.bf16 %v2822, %v2822
  %2824 = vmatprep.subr.bf16.mxu0 0
  %2825 = vmatpush1.bf16.msra.mxu0 %v192
  %2826 = vmatprep.subr.bf16.mxu0 0
  %2827 = vmatpush1.bf16.msra.mxu0 %v193
  %2828 = vmatprep.subr.bf16.mxu0 0
  %2829 = vmatpush1.bf16.msra.mxu0 %v194
  %2830 = vmatprep.subr.bf16.mxu0 0
  %2831 = vmatpush1.bf16.msra.mxu0 %v195
  %2832 = vmatprep.subr.bf16.mxu0 0
  %2833 = vmatpush1.bf16.msra.mxu0 %v196
  %2834 = vmatprep.subr.bf16.mxu0 0
  %2835 = vmatpush1.bf16.msra.mxu0 %v197
  %2836 = vmatprep.subr.bf16.mxu0 0
  %2837 = vmatpush1.bf16.msra.mxu0 %v198
  %2838 = vmatprep.subr.bf16.mxu0 0
  %2839 = vmatpush1.bf16.msra.mxu0 %v199
  %2840 = vmatprep.subr.bf16.mxu0 0
  %2841 = vmatpush1.bf16.msra.mxu0 0
  %2842 = vmatprep.subr.bf16.mxu0 0
  %2843 = vmatpush1.bf16.msra.mxu0 0
  %2844 = vmatprep.subr.bf16.mxu0 0
  %2845 = vmatpush1.bf16.msra.mxu0 0
  %2846 = vmatprep.subr.bf16.mxu0 0
  %2847 = vmatpush1.bf16.msra.mxu0 0
  %2848 = vmatprep.subr.bf16.mxu0 0
  %2849 = vmatpush1.bf16.msra.mxu0 0
  %2850 = vmatprep.subr.bf16.mxu0 0
  %2851 = vmatpush1.bf16.msra.mxu0 0
  %2852 = vmatprep.subr.bf16.mxu0 0
  %2853 = vmatpush1.bf16.msra.mxu0 0
  %2854 = vmatprep.subr.bf16.mxu0 0
  %2855 = vmatpush1.bf16.msra.mxu0 0
  %2856 = vmatprep.mubr.bf16.mxu0 0
  %2857 = vmatmul.mubr.bf16.gmra.mrb[0].mxu0 %v2823
  %v2858 = vpop.f32.mrb[0].mxu0
  %v2859 = vadd.f32 %v159, %v2858
  %v2860 = vpop.f32.mrb[0].mxu0
  %v2861 = vpop.f32.mrb[0].mxu0
  %v2862 = vpop.f32.mrb[0].mxu0
  %2863 = vdwg.mxu0
  %v2864 = vmul.f32 %v2859, 0.33333334
  %v2865 = vadd.f32 %v2777, %v2864
  %v2866 = vpack.c.bf16 %v2865, %v2865
  %2867 = vmatprep.subr.bf16.mxu0 0
  %2868 = vmatpush1.bf16.msra.mxu0 %v85
  %2869 = vmatprep.subr.bf16.mxu0 0
  %2870 = vmatpush1.bf16.msra.mxu0 %v86
  %2871 = vmatprep.subr.bf16.mxu0 0
  %2872 = vmatpush1.bf16.msra.mxu0 %v87
  %2873 = vmatprep.subr.bf16.mxu0 0
  %2874 = vmatpush1.bf16.msra.mxu0 %v88
  %2875 = vmatprep.subr.bf16.mxu0 0
  %2876 = vmatpush1.bf16.msra.mxu0 %v89
  %2877 = vmatprep.subr.bf16.mxu0 0
  %2878 = vmatpush1.bf16.msra.mxu0 %v90
  %2879 = vmatprep.subr.bf16.mxu0 0
  %2880 = vmatpush1.bf16.msra.mxu0 %v91
  %2881 = vmatprep.subr.bf16.mxu0 0
  %2882 = vmatpush1.bf16.msra.mxu0 %v92
  %2883 = vmatprep.subr.bf16.mxu0 0
  %2884 = vmatpush1.bf16.msra.mxu0 0
  %2885 = vmatprep.subr.bf16.mxu0 0
  %2886 = vmatpush1.bf16.msra.mxu0 0
  %2887 = vmatprep.subr.bf16.mxu0 0
  %2888 = vmatpush1.bf16.msra.mxu0 0
  %2889 = vmatprep.subr.bf16.mxu0 0
  %2890 = vmatpush1.bf16.msra.mxu0 0
  %2891 = vmatprep.subr.bf16.mxu0 0
  %2892 = vmatpush1.bf16.msra.mxu0 0
  %2893 = vmatprep.subr.bf16.mxu0 0
  %2894 = vmatpush1.bf16.msra.mxu0 0
  %2895 = vmatprep.subr.bf16.mxu0 0
  %2896 = vmatpush1.bf16.msra.mxu0 0
  %2897 = vmatprep.subr.bf16.mxu0 0
  %2898 = vmatpush1.bf16.msra.mxu0 0
  %2899 = vmatprep.mubr.bf16.mxu0 0
  %2900 = vmatmul.mubr.bf16.gmra.mrb[0].mxu0 %v2866
  %v2901 = vpop.f32.mrb[0].mxu0
  %v2902 = vadd.f32 %v52, %v2901
  %v2903 = vpop.f32.mrb[0].mxu0
  %v2904 = vpop.f32.mrb[0].mxu0
  %v2905 = vpop.f32.mrb[0].mxu0
  %2906 = vdwg.mxu0
  %v2907 = vtanh.pop %v2902
  %v2908 = vpack.c.bf16 %v2907, %v2907
  %2909 = vmatprep.subr.bf16.mxu0 0
  %2910 = vmatpush1.bf16.msra.mxu0 %v192
  %2911 = vmatprep.subr.bf16.mxu0 0
  %2912 = vmatpush1.bf16.msra.mxu0 %v193
  %2913 = vmatprep.subr.bf16.mxu0 0
  %2914 = vmatpush1.bf16.msra.mxu0 %v194
  %2915 = vmatprep.subr.bf16.mxu0 0
  %2916 = vmatpush1.bf16.msra.mxu0 %v195
  %2917 = vmatprep.subr.bf16.mxu0 0
  %2918 = vmatpush1.bf16.msra.mxu0 %v196
  %2919 = vmatprep.subr.bf16.mxu0 0
  %2920 = vmatpush1.bf16.msra.mxu0 %v197
  %2921 = vmatprep.subr.bf16.mxu0 0
  %2922 = vmatpush1.bf16.msra.mxu0 %v198
  %2923 = vmatprep.subr.bf16.mxu0 0
  %2924 = vmatpush1.bf16.msra.mxu0 %v199
  %2925 = vmatprep.subr.bf16.mxu0 0
  %2926 = vmatpush1.bf16.msra.mxu0 0
  %2927 = vmatprep.subr.bf16.mxu0 0
  %2928 = vmatpush1.bf16.msra.mxu0 0
  %2929 = vmatprep.subr.bf16.mxu0 0
  %2930 = vmatpush1.bf16.msra.mxu0 0
  %2931 = vmatprep.subr.bf16.mxu0 0
  %2932 = vmatpush1.bf16.msra.mxu0 0
  %2933 = vmatprep.subr.bf16.mxu0 0
  %2934 = vmatpush1.bf16.msra.mxu0 0
  %2935 = vmatprep.subr.bf16.mxu0 0
  %2936 = vmatpush1.bf16.msra.mxu0 0
  %2937 = vmatprep.subr.bf16.mxu0 0
  %2938 = vmatpush1.bf16.msra.mxu0 0
  %2939 = vmatprep.subr.bf16.mxu0 0
  %2940 = vmatpush1.bf16.msra.mxu0 0
  %2941 = vmatprep.mubr.bf16.mxu0 0
  %2942 = vmatmul.mubr.bf16.gmra.mrb[0].mxu0 %v2908
  %v2943 = vpop.f32.mrb[0].mxu0
  %v2944 = vadd.f32 %v159, %v2943
  %v2945 = vpop.f32.mrb[0].mxu0
  %v2946 = vpop.f32.mrb[0].mxu0
  %v2947 = vpop.f32.mrb[0].mxu0
  %2948 = vdwg.mxu0
  %v2949 = vsub.f32 %v2944, %v2864
  %v2950 = vadd.f32 %v2777, %v2949
  %v2951 = vpack.c.bf16 %v2950, %v2950
  %2952 = vmatprep.subr.bf16.mxu0 0
  %2953 = vmatpush1.bf16.msra.mxu0 %v85
  %2954 = vmatprep.subr.bf16.mxu0 0
  %2955 = vmatpush1.bf16.msra.mxu0 %v86
  %2956 = vmatprep.subr.bf16.mxu0 0
  %2957 = vmatpush1.bf16.msra.mxu0 %v87
  %2958 = vmatprep.subr.bf16.mxu0 0
  %2959 = vmatpush1.bf16.msra.mxu0 %v88
  %2960 = vmatprep.subr.bf16.mxu0 0
  %2961 = vmatpush1.bf16.msra.mxu0 %v89
  %2962 = vmatprep.subr.bf16.mxu0 0
  %2963 = vmatpush1.bf16.msra.mxu0 %v90
  %2964 = vmatprep.subr.bf16.mxu0 0
  %2965 = vmatpush1.bf16.msra.mxu0 %v91
  %2966 = vmatprep.subr.bf16.mxu0 0
  %2967 = vmatpush1.bf16.msra.mxu0 %v92
  %2968 = vmatprep.subr.bf16.mxu0 0
  %2969 = vmatpush1.bf16.msra.mxu0 0
  %2970 = vmatprep.subr.bf16.mxu0 0
  %2971 = vmatpush1.bf16.msra.mxu0 0
  %2972 = vmatprep.subr.bf16.mxu0 0
  %2973 = vmatpush1.bf16.msra.mxu0 0
  %2974 = vmatprep.subr.bf16.mxu0 0
  %2975 = vmatpush1.bf16.msra.mxu0 0
  %2976 = vmatprep.subr.bf16.mxu0 0
  %2977 = vmatpush1.bf16.msra.mxu0 0
  %2978 = vmatprep.subr.bf16.mxu0 0
  %2979 = vmatpush1.bf16.msra.mxu0 0
  %2980 = vmatprep.subr.bf16.mxu0 0
  %2981 = vmatpush1.bf16.msra.mxu0 0
  %2982 = vmatprep.subr.bf16.mxu0 0
  %2983 = vmatpush1.bf16.msra.mxu0 0
  %2984 = vmatprep.mubr.bf16.mxu0 0
  %2985 = vmatmul.mubr.bf16.gmra.mrb[0].mxu0 %v2951
  %v2986 = vpop.f32.mrb[0].mxu0
  %v2987 = vadd.f32 %v52, %v2986
  %v2988 = vpop.f32.mrb[0].mxu0
  %v2989 = vpop.f32.mrb[0].mxu0
  %v2990 = vpop.f32.mrb[0].mxu0
  %2991 = vdwg.mxu0
  %v2992 = vtanh.pop %v2987
  %v2993 = vpack.c.bf16 %v2992, %v2992
  %2994 = vmatprep.subr.bf16.mxu0 0
  %2995 = vmatpush1.bf16.msra.mxu0 %v192
  %2996 = vmatprep.subr.bf16.mxu0 0
  %2997 = vmatpush1.bf16.msra.mxu0 %v193
  %2998 = vmatprep.subr.bf16.mxu0 0
  %2999 = vmatpush1.bf16.msra.mxu0 %v194
  %3000 = vmatprep.subr.bf16.mxu0 0
  %3001 = vmatpush1.bf16.msra.mxu0 %v195
  %3002 = vmatprep.subr.bf16.mxu0 0
  %3003 = vmatpush1.bf16.msra.mxu0 %v196
  %3004 = vmatprep.subr.bf16.mxu0 0
  %3005 = vmatpush1.bf16.msra.mxu0 %v197
  %3006 = vmatprep.subr.bf16.mxu0 0
  %3007 = vmatpush1.bf16.msra.mxu0 %v198
  %3008 = vmatprep.subr.bf16.mxu0 0
  %3009 = vmatpush1.bf16.msra.mxu0 %v199
  %3010 = vmatprep.subr.bf16.mxu0 0
  %3011 = vmatpush1.bf16.msra.mxu0 0
  %3012 = vmatprep.subr.bf16.mxu0 0
  %3013 = vmatpush1.bf16.msra.mxu0 0
  %3014 = vmatprep.subr.bf16.mxu0 0
  %3015 = vmatpush1.bf16.msra.mxu0 0
  %3016 = vmatprep.subr.bf16.mxu0 0
  %3017 = vmatpush1.bf16.msra.mxu0 0
  %3018 = vmatprep.subr.bf16.mxu0 0
  %3019 = vmatpush1.bf16.msra.mxu0 0
  %3020 = vmatprep.subr.bf16.mxu0 0
  %3021 = vmatpush1.bf16.msra.mxu0 0
  %3022 = vmatprep.subr.bf16.mxu0 0
  %3023 = vmatpush1.bf16.msra.mxu0 0
  %3024 = vmatprep.subr.bf16.mxu0 0
  %3025 = vmatpush1.bf16.msra.mxu0 0
  %3026 = vmatprep.mubr.bf16.mxu0 0
  %3027 = vmatmul.mubr.bf16.gmra.mrb[0].mxu0 %v2993
  %v3028 = vpop.f32.mrb[0].mxu0
  %v3029 = vadd.f32 %v159, %v3028
  %v3030 = vpop.f32.mrb[0].mxu0
  %v3031 = vpop.f32.mrb[0].mxu0
  %v3032 = vpop.f32.mrb[0].mxu0
  %3033 = vdwg.mxu0
  %v3034 = vsub.f32 %v2859, %v2944
  %v3035 = vadd.f32 %v3034, %v3029
  %v3036 = vadd.f32 %v2777, %v3035
  %v3037 = vpack.c.bf16 %v3036, %v3036
  %3038 = vmatprep.subr.bf16.mxu0 0
  %3039 = vmatpush1.bf16.msra.mxu0 %v85
  %3040 = vmatprep.subr.bf16.mxu0 0
  %3041 = vmatpush1.bf16.msra.mxu0 %v86
  %3042 = vmatprep.subr.bf16.mxu0 0
  %3043 = vmatpush1.bf16.msra.mxu0 %v87
  %3044 = vmatprep.subr.bf16.mxu0 0
  %3045 = vmatpush1.bf16.msra.mxu0 %v88
  %3046 = vmatprep.subr.bf16.mxu0 0
  %3047 = vmatpush1.bf16.msra.mxu0 %v89
  %3048 = vmatprep.subr.bf16.mxu0 0
  %3049 = vmatpush1.bf16.msra.mxu0 %v90
  %3050 = vmatprep.subr.bf16.mxu0 0
  %3051 = vmatpush1.bf16.msra.mxu0 %v91
  %3052 = vmatprep.subr.bf16.mxu0 0
  %3053 = vmatpush1.bf16.msra.mxu0 %v92
  %3054 = vmatprep.subr.bf16.mxu0 0
  %3055 = vmatpush1.bf16.msra.mxu0 0
  %3056 = vmatprep.subr.bf16.mxu0 0
  %3057 = vmatpush1.bf16.msra.mxu0 0
  %3058 = vmatprep.subr.bf16.mxu0 0
  %3059 = vmatpush1.bf16.msra.mxu0 0
  %3060 = vmatprep.subr.bf16.mxu0 0
  %3061 = vmatpush1.bf16.msra.mxu0 0
  %3062 = vmatprep.subr.bf16.mxu0 0
  %3063 = vmatpush1.bf16.msra.mxu0 0
  %3064 = vmatprep.subr.bf16.mxu0 0
  %3065 = vmatpush1.bf16.msra.mxu0 0
  %3066 = vmatprep.subr.bf16.mxu0 0
  %3067 = vmatpush1.bf16.msra.mxu0 0
  %3068 = vmatprep.subr.bf16.mxu0 0
  %3069 = vmatpush1.bf16.msra.mxu0 0
  %3070 = vmatprep.mubr.bf16.mxu0 0
  %3071 = vmatmul.mubr.bf16.gmra.mrb[0].mxu0 %v3037
  %v3072 = vpop.f32.mrb[0].mxu0
  %v3073 = vadd.f32 %v52, %v3072
  %v3074 = vpop.f32.mrb[0].mxu0
  %v3075 = vpop.f32.mrb[0].mxu0
  %v3076 = vpop.f32.mrb[0].mxu0
  %3077 = vdwg.mxu0
  %v3078 = vtanh.pop %v3073
  %v3079 = vpack.c.bf16 %v3078, %v3078
  %3080 = vmatprep.subr.bf16.mxu0 0
  %3081 = vmatpush1.bf16.msra.mxu0 %v192
  %3082 = vmatprep.subr.bf16.mxu0 0
  %3083 = vmatpush1.bf16.msra.mxu0 %v193
  %3084 = vmatprep.subr.bf16.mxu0 0
  %3085 = vmatpush1.bf16.msra.mxu0 %v194
  %3086 = vmatprep.subr.bf16.mxu0 0
  %3087 = vmatpush1.bf16.msra.mxu0 %v195
  %3088 = vmatprep.subr.bf16.mxu0 0
  %3089 = vmatpush1.bf16.msra.mxu0 %v196
  %3090 = vmatprep.subr.bf16.mxu0 0
  %3091 = vmatpush1.bf16.msra.mxu0 %v197
  %3092 = vmatprep.subr.bf16.mxu0 0
  %3093 = vmatpush1.bf16.msra.mxu0 %v198
  %3094 = vmatprep.subr.bf16.mxu0 0
  %3095 = vmatpush1.bf16.msra.mxu0 %v199
  %3096 = vmatprep.subr.bf16.mxu0 0
  %3097 = vmatpush1.bf16.msra.mxu0 0
  %3098 = vmatprep.subr.bf16.mxu0 0
  %3099 = vmatpush1.bf16.msra.mxu0 0
  %3100 = vmatprep.subr.bf16.mxu0 0
  %3101 = vmatpush1.bf16.msra.mxu0 0
  %3102 = vmatprep.subr.bf16.mxu0 0
  %3103 = vmatpush1.bf16.msra.mxu0 0
  %3104 = vmatprep.subr.bf16.mxu0 0
  %3105 = vmatpush1.bf16.msra.mxu0 0
  %3106 = vmatprep.subr.bf16.mxu0 0
  %3107 = vmatpush1.bf16.msra.mxu0 0
  %3108 = vmatprep.subr.bf16.mxu0 0
  %3109 = vmatpush1.bf16.msra.mxu0 0
  %3110 = vmatprep.subr.bf16.mxu0 0
  %3111 = vmatpush1.bf16.msra.mxu0 0
  %3112 = vmatprep.mubr.bf16.mxu0 0
  %3113 = vmatmul.mubr.bf16.gmra.mrb[0].mxu0 %v3079
  %v3114 = vpop.f32.mrb[0].mxu0
  %v3115 = vadd.f32 %v159, %v3114
  %v3116 = vpop.f32.mrb[0].mxu0
  %v3117 = vpop.f32.mrb[0].mxu0
  %v3118 = vpop.f32.mrb[0].mxu0
  %3119 = vdwg.mxu0
  %v3120 = vmul.f32 %v2944, 3.0
  %v3121 = vadd.f32 %v2859, %v3120
  %v3122 = vmul.f32 %v3029, 3.0
  %v3123 = vadd.f32 %v3121, %v3122
  %v3124 = vadd.f32 %v3123, %v3115
  %v3125 = vmul.f32 %v3124, 0.125
  %v3126 = vadd.f32 %v2777, %v3125
  %v3127 = vpack.c.bf16 %v3126, %v3126
  %3128 = vmatprep.subr.bf16.mxu0 0
  %3129 = vmatpush1.bf16.msra.mxu0 %v561
  %3130 = vmatprep.subr.bf16.mxu0 0
  %3131 = vmatpush1.bf16.msra.mxu0 %v562
  %3132 = vmatprep.subr.bf16.mxu0 0
  %3133 = vmatpush1.bf16.msra.mxu0 %v563
  %3134 = vmatprep.subr.bf16.mxu0 0
  %3135 = vmatpush1.bf16.msra.mxu0 %v564
  %3136 = vmatprep.subr.bf16.mxu0 0
  %3137 = vmatpush1.bf16.msra.mxu0 %v565
  %3138 = vmatprep.subr.bf16.mxu0 0
  %3139 = vmatpush1.bf16.msra.mxu0 %v566
  %3140 = vmatprep.subr.bf16.mxu0 0
  %3141 = vmatpush1.bf16.msra.mxu0 %v567
  %3142 = vmatprep.subr.bf16.mxu0 0
  %3143 = vmatpush1.bf16.msra.mxu0 %v568
  %3144 = vmatprep.subr.bf16.mxu0 0
  %3145 = vmatpush1.bf16.msra.mxu0 0
  %3146 = vmatprep.subr.bf16.mxu0 0
  %3147 = vmatpush1.bf16.msra.mxu0 0
  %3148 = vmatprep.subr.bf16.mxu0 0
  %3149 = vmatpush1.bf16.msra.mxu0 0
  %3150 = vmatprep.subr.bf16.mxu0 0
  %3151 = vmatpush1.bf16.msra.mxu0 0
  %3152 = vmatprep.subr.bf16.mxu0 0
  %3153 = vmatpush1.bf16.msra.mxu0 0
  %3154 = vmatprep.subr.bf16.mxu0 0
  %3155 = vmatpush1.bf16.msra.mxu0 0
  %3156 = vmatprep.subr.bf16.mxu0 0
  %3157 = vmatpush1.bf16.msra.mxu0 0
  %3158 = vmatprep.subr.bf16.mxu0 0
  %3159 = vmatpush1.bf16.msra.mxu0 0
  %3160 = vmatprep.mubr.bf16.mxu0 0
  %3161 = vmatmul.mubr.bf16.gmra.mrb[0].mxu0 %v3127
  %v3162 = vpop.f32.mrb[0].mxu0
  %v3163 = vadd.f32 %v528, %v3162
  %v3164 = vpop.f32.mrb[0].mxu0
  %v3165 = vpop.f32.mrb[0].mxu0
  %v3166 = vpop.f32.mrb[0].mxu0
  %3167 = vdwg.mxu0
  %v3168 = vadd.f32 %v2780, %v3163
  %v3169 = vxor.u32 %v3168, 2147483648
  %v3170 = vmul.f32 %v3169, 1.442695
  %v3171 = vpow.pop %v3170
  %v3172 = vadd.f32 %v3171, 1.0
  %v3173 = vrcp.pop %v3172
  %v3174 = vmul.f32 1.0, %v3173
  %3176 = vrot.lane.b32.xlu0 %v3163, 64
  %v3177 = vpop.permute.xlu0 %3176
  %v3179 = vmul.f32 %v3174, %v3177
  %3181 = vrot.lane.b32.xlu0 %v3179, 64
  %v3182 = vpop.permute.xlu0 %3181
  %v3184 = vadd.f32 %v2780, %v3182
  %v3185 = vtanh.pop %v3184
  %v3186 = vsub.f32 1.0, %v3174
  %3188 = vrot.lane.b32.xlu0 %v3185, 96
  %v3189 = vpop.permute.xlu0 %3188
  %v3191 = vmul.f32 %v3186, %v3189
  %3193 = vrot.lane.b32.xlu0 %v3126, 32
  %v3194 = vpop.permute.xlu0 %3193
  %v3196 = vmul.f32 %v3174, %v3194
  %v3197 = vadd.f32 %v3191, %v3196
  %3199 = vrot.lane.b32.xlu0 %v3197, 96
  %v3200 = vpop.permute.xlu0 %3199
  %v3202 = vsel %vm651, %v3200, 0.0
  %s3203 = scalar_lea.vmem %s0, 28
  %v3204 = vld [vmem:[%s3203] sm:$0xf]
  %v3205 = vunpack.c.l.bf16 %v3204
  %v3206 = vpack.c.bf16 %v3202, %v3202
  %3207 = vmatprep.subr.bf16.mxu0 0
  %3208 = vmatpush1.bf16.msra.mxu0 %v85
  %3209 = vmatprep.subr.bf16.mxu0 0
  %3210 = vmatpush1.bf16.msra.mxu0 %v86
  %3211 = vmatprep.subr.bf16.mxu0 0
  %3212 = vmatpush1.bf16.msra.mxu0 %v87
  %3213 = vmatprep.subr.bf16.mxu0 0
  %3214 = vmatpush1.bf16.msra.mxu0 %v88
  %3215 = vmatprep.subr.bf16.mxu0 0
  %3216 = vmatpush1.bf16.msra.mxu0 %v89
  %3217 = vmatprep.subr.bf16.mxu0 0
  %3218 = vmatpush1.bf16.msra.mxu0 %v90
  %3219 = vmatprep.subr.bf16.mxu0 0
  %3220 = vmatpush1.bf16.msra.mxu0 %v91
  %3221 = vmatprep.subr.bf16.mxu0 0
  %3222 = vmatpush1.bf16.msra.mxu0 %v92
  %3223 = vmatprep.subr.bf16.mxu0 0
  %3224 = vmatpush1.bf16.msra.mxu0 0
  %3225 = vmatprep.subr.bf16.mxu0 0
  %3226 = vmatpush1.bf16.msra.mxu0 0
  %3227 = vmatprep.subr.bf16.mxu0 0
  %3228 = vmatpush1.bf16.msra.mxu0 0
  %3229 = vmatprep.subr.bf16.mxu0 0
  %3230 = vmatpush1.bf16.msra.mxu0 0
  %3231 = vmatprep.subr.bf16.mxu0 0
  %3232 = vmatpush1.bf16.msra.mxu0 0
  %3233 = vmatprep.subr.bf16.mxu0 0
  %3234 = vmatpush1.bf16.msra.mxu0 0
  %3235 = vmatprep.subr.bf16.mxu0 0
  %3236 = vmatpush1.bf16.msra.mxu0 0
  %3237 = vmatprep.subr.bf16.mxu0 0
  %3238 = vmatpush1.bf16.msra.mxu0 0
  %3239 = vmatprep.mubr.bf16.mxu0 0
  %3240 = vmatmul.mubr.bf16.gmra.mrb[0].mxu0 %v3206
  %v3241 = vpop.f32.mrb[0].mxu0
  %v3242 = vadd.f32 %v52, %v3241
  %v3243 = vpop.f32.mrb[0].mxu0
  %v3244 = vpop.f32.mrb[0].mxu0
  %v3245 = vpop.f32.mrb[0].mxu0
  %3246 = vdwg.mxu0
  %v3247 = vtanh.pop %v3242
  %v3248 = vpack.c.bf16 %v3247, %v3247
  %3249 = vmatprep.subr.bf16.mxu0 0
  %3250 = vmatpush1.bf16.msra.mxu0 %v192
  %3251 = vmatprep.subr.bf16.mxu0 0
  %3252 = vmatpush1.bf16.msra.mxu0 %v193
  %3253 = vmatprep.subr.bf16.mxu0 0
  %3254 = vmatpush1.bf16.msra.mxu0 %v194
  %3255 = vmatprep.subr.bf16.mxu0 0
  %3256 = vmatpush1.bf16.msra.mxu0 %v195
  %3257 = vmatprep.subr.bf16.mxu0 0
  %3258 = vmatpush1.bf16.msra.mxu0 %v196
  %3259 = vmatprep.subr.bf16.mxu0 0
  %3260 = vmatpush1.bf16.msra.mxu0 %v197
  %3261 = vmatprep.subr.bf16.mxu0 0
  %3262 = vmatpush1.bf16.msra.mxu0 %v198
  %3263 = vmatprep.subr.bf16.mxu0 0
  %3264 = vmatpush1.bf16.msra.mxu0 %v199
  %3265 = vmatprep.subr.bf16.mxu0 0
  %3266 = vmatpush1.bf16.msra.mxu0 0
  %3267 = vmatprep.subr.bf16.mxu0 0
  %3268 = vmatpush1.bf16.msra.mxu0 0
  %3269 = vmatprep.subr.bf16.mxu0 0
  %3270 = vmatpush1.bf16.msra.mxu0 0
  %3271 = vmatprep.subr.bf16.mxu0 0
  %3272 = vmatpush1.bf16.msra.mxu0 0
  %3273 = vmatprep.subr.bf16.mxu0 0
  %3274 = vmatpush1.bf16.msra.mxu0 0
  %3275 = vmatprep.subr.bf16.mxu0 0
  %3276 = vmatpush1.bf16.msra.mxu0 0
  %3277 = vmatprep.subr.bf16.mxu0 0
  %3278 = vmatpush1.bf16.msra.mxu0 0
  %3279 = vmatprep.subr.bf16.mxu0 0
  %3280 = vmatpush1.bf16.msra.mxu0 0
  %3281 = vmatprep.mubr.bf16.mxu0 0
  %3282 = vmatmul.mubr.bf16.gmra.mrb[0].mxu0 %v3248
  %v3283 = vpop.f32.mrb[0].mxu0
  %v3284 = vadd.f32 %v159, %v3283
  %v3285 = vpop.f32.mrb[0].mxu0
  %v3286 = vpop.f32.mrb[0].mxu0
  %v3287 = vpop.f32.mrb[0].mxu0
  %3288 = vdwg.mxu0
  %v3289 = vmul.f32 %v3284, 0.33333334
  %v3290 = vadd.f32 %v3202, %v3289
  %v3291 = vpack.c.bf16 %v3290, %v3290
  %3292 = vmatprep.subr.bf16.mxu0 0
  %3293 = vmatpush1.bf16.msra.mxu0 %v85
  %3294 = vmatprep.subr.bf16.mxu0 0
  %3295 = vmatpush1.bf16.msra.mxu0 %v86
  %3296 = vmatprep.subr.bf16.mxu0 0
  %3297 = vmatpush1.bf16.msra.mxu0 %v87
  %3298 = vmatprep.subr.bf16.mxu0 0
  %3299 = vmatpush1.bf16.msra.mxu0 %v88
  %3300 = vmatprep.subr.bf16.mxu0 0
  %3301 = vmatpush1.bf16.msra.mxu0 %v89
  %3302 = vmatprep.subr.bf16.mxu0 0
  %3303 = vmatpush1.bf16.msra.mxu0 %v90
  %3304 = vmatprep.subr.bf16.mxu0 0
  %3305 = vmatpush1.bf16.msra.mxu0 %v91
  %3306 = vmatprep.subr.bf16.mxu0 0
  %3307 = vmatpush1.bf16.msra.mxu0 %v92
  %3308 = vmatprep.subr.bf16.mxu0 0
  %3309 = vmatpush1.bf16.msra.mxu0 0
  %3310 = vmatprep.subr.bf16.mxu0 0
  %3311 = vmatpush1.bf16.msra.mxu0 0
  %3312 = vmatprep.subr.bf16.mxu0 0
  %3313 = vmatpush1.bf16.msra.mxu0 0
  %3314 = vmatprep.subr.bf16.mxu0 0
  %3315 = vmatpush1.bf16.msra.mxu0 0
  %3316 = vmatprep.subr.bf16.mxu0 0
  %3317 = vmatpush1.bf16.msra.mxu0 0
  %3318 = vmatprep.subr.bf16.mxu0 0
  %3319 = vmatpush1.bf16.msra.mxu0 0
  %3320 = vmatprep.subr.bf16.mxu0 0
  %3321 = vmatpush1.bf16.msra.mxu0 0
  %3322 = vmatprep.subr.bf16.mxu0 0
  %3323 = vmatpush1.bf16.msra.mxu0 0
  %3324 = vmatprep.mubr.bf16.mxu0 0
  %3325 = vmatmul.mubr.bf16.gmra.mrb[0].mxu0 %v3291
  %v3326 = vpop.f32.mrb[0].mxu0
  %v3327 = vadd.f32 %v52, %v3326
  %v3328 = vpop.f32.mrb[0].mxu0
  %v3329 = vpop.f32.mrb[0].mxu0
  %v3330 = vpop.f32.mrb[0].mxu0
  %3331 = vdwg.mxu0
  %v3332 = vtanh.pop %v3327
  %v3333 = vpack.c.bf16 %v3332, %v3332
  %3334 = vmatprep.subr.bf16.mxu0 0
  %3335 = vmatpush1.bf16.msra.mxu0 %v192
  %3336 = vmatprep.subr.bf16.mxu0 0
  %3337 = vmatpush1.bf16.msra.mxu0 %v193
  %3338 = vmatprep.subr.bf16.mxu0 0
  %3339 = vmatpush1.bf16.msra.mxu0 %v194
  %3340 = vmatprep.subr.bf16.mxu0 0
  %3341 = vmatpush1.bf16.msra.mxu0 %v195
  %3342 = vmatprep.subr.bf16.mxu0 0
  %3343 = vmatpush1.bf16.msra.mxu0 %v196
  %3344 = vmatprep.subr.bf16.mxu0 0
  %3345 = vmatpush1.bf16.msra.mxu0 %v197
  %3346 = vmatprep.subr.bf16.mxu0 0
  %3347 = vmatpush1.bf16.msra.mxu0 %v198
  %3348 = vmatprep.subr.bf16.mxu0 0
  %3349 = vmatpush1.bf16.msra.mxu0 %v199
  %3350 = vmatprep.subr.bf16.mxu0 0
  %3351 = vmatpush1.bf16.msra.mxu0 0
  %3352 = vmatprep.subr.bf16.mxu0 0
  %3353 = vmatpush1.bf16.msra.mxu0 0
  %3354 = vmatprep.subr.bf16.mxu0 0
  %3355 = vmatpush1.bf16.msra.mxu0 0
  %3356 = vmatprep.subr.bf16.mxu0 0
  %3357 = vmatpush1.bf16.msra.mxu0 0
  %3358 = vmatprep.subr.bf16.mxu0 0
  %3359 = vmatpush1.bf16.msra.mxu0 0
  %3360 = vmatprep.subr.bf16.mxu0 0
  %3361 = vmatpush1.bf16.msra.mxu0 0
  %3362 = vmatprep.subr.bf16.mxu0 0
  %3363 = vmatpush1.bf16.msra.mxu0 0
  %3364 = vmatprep.subr.bf16.mxu0 0
  %3365 = vmatpush1.bf16.msra.mxu0 0
  %3366 = vmatprep.mubr.bf16.mxu0 0
  %3367 = vmatmul.mubr.bf16.gmra.mrb[0].mxu0 %v3333
  %v3368 = vpop.f32.mrb[0].mxu0
  %v3369 = vadd.f32 %v159, %v3368
  %v3370 = vpop.f32.mrb[0].mxu0
  %v3371 = vpop.f32.mrb[0].mxu0
  %v3372 = vpop.f32.mrb[0].mxu0
  %3373 = vdwg.mxu0
  %v3374 = vsub.f32 %v3369, %v3289
  %v3375 = vadd.f32 %v3202, %v3374
  %v3376 = vpack.c.bf16 %v3375, %v3375
  %3377 = vmatprep.subr.bf16.mxu0 0
  %3378 = vmatpush1.bf16.msra.mxu0 %v85
  %3379 = vmatprep.subr.bf16.mxu0 0
  %3380 = vmatpush1.bf16.msra.mxu0 %v86
  %3381 = vmatprep.subr.bf16.mxu0 0
  %3382 = vmatpush1.bf16.msra.mxu0 %v87
  %3383 = vmatprep.subr.bf16.mxu0 0
  %3384 = vmatpush1.bf16.msra.mxu0 %v88
  %3385 = vmatprep.subr.bf16.mxu0 0
  %3386 = vmatpush1.bf16.msra.mxu0 %v89
  %3387 = vmatprep.subr.bf16.mxu0 0
  %3388 = vmatpush1.bf16.msra.mxu0 %v90
  %3389 = vmatprep.subr.bf16.mxu0 0
  %3390 = vmatpush1.bf16.msra.mxu0 %v91
  %3391 = vmatprep.subr.bf16.mxu0 0
  %3392 = vmatpush1.bf16.msra.mxu0 %v92
  %3393 = vmatprep.subr.bf16.mxu0 0
  %3394 = vmatpush1.bf16.msra.mxu0 0
  %3395 = vmatprep.subr.bf16.mxu0 0
  %3396 = vmatpush1.bf16.msra.mxu0 0
  %3397 = vmatprep.subr.bf16.mxu0 0
  %3398 = vmatpush1.bf16.msra.mxu0 0
  %3399 = vmatprep.subr.bf16.mxu0 0
  %3400 = vmatpush1.bf16.msra.mxu0 0
  %3401 = vmatprep.subr.bf16.mxu0 0
  %3402 = vmatpush1.bf16.msra.mxu0 0
  %3403 = vmatprep.subr.bf16.mxu0 0
  %3404 = vmatpush1.bf16.msra.mxu0 0
  %3405 = vmatprep.subr.bf16.mxu0 0
  %3406 = vmatpush1.bf16.msra.mxu0 0
  %3407 = vmatprep.subr.bf16.mxu0 0
  %3408 = vmatpush1.bf16.msra.mxu0 0
  %3409 = vmatprep.mubr.bf16.mxu0 0
  %3410 = vmatmul.mubr.bf16.gmra.mrb[0].mxu0 %v3376
  %v3411 = vpop.f32.mrb[0].mxu0
  %v3412 = vadd.f32 %v52, %v3411
  %v3413 = vpop.f32.mrb[0].mxu0
  %v3414 = vpop.f32.mrb[0].mxu0
  %v3415 = vpop.f32.mrb[0].mxu0
  %3416 = vdwg.mxu0
  %v3417 = vtanh.pop %v3412
  %v3418 = vpack.c.bf16 %v3417, %v3417
  %3419 = vmatprep.subr.bf16.mxu0 0
  %3420 = vmatpush1.bf16.msra.mxu0 %v192
  %3421 = vmatprep.subr.bf16.mxu0 0
  %3422 = vmatpush1.bf16.msra.mxu0 %v193
  %3423 = vmatprep.subr.bf16.mxu0 0
  %3424 = vmatpush1.bf16.msra.mxu0 %v194
  %3425 = vmatprep.subr.bf16.mxu0 0
  %3426 = vmatpush1.bf16.msra.mxu0 %v195
  %3427 = vmatprep.subr.bf16.mxu0 0
  %3428 = vmatpush1.bf16.msra.mxu0 %v196
  %3429 = vmatprep.subr.bf16.mxu0 0
  %3430 = vmatpush1.bf16.msra.mxu0 %v197
  %3431 = vmatprep.subr.bf16.mxu0 0
  %3432 = vmatpush1.bf16.msra.mxu0 %v198
  %3433 = vmatprep.subr.bf16.mxu0 0
  %3434 = vmatpush1.bf16.msra.mxu0 %v199
  %3435 = vmatprep.subr.bf16.mxu0 0
  %3436 = vmatpush1.bf16.msra.mxu0 0
  %3437 = vmatprep.subr.bf16.mxu0 0
  %3438 = vmatpush1.bf16.msra.mxu0 0
  %3439 = vmatprep.subr.bf16.mxu0 0
  %3440 = vmatpush1.bf16.msra.mxu0 0
  %3441 = vmatprep.subr.bf16.mxu0 0
  %3442 = vmatpush1.bf16.msra.mxu0 0
  %3443 = vmatprep.subr.bf16.mxu0 0
  %3444 = vmatpush1.bf16.msra.mxu0 0
  %3445 = vmatprep.subr.bf16.mxu0 0
  %3446 = vmatpush1.bf16.msra.mxu0 0
  %3447 = vmatprep.subr.bf16.mxu0 0
  %3448 = vmatpush1.bf16.msra.mxu0 0
  %3449 = vmatprep.subr.bf16.mxu0 0
  %3450 = vmatpush1.bf16.msra.mxu0 0
  %3451 = vmatprep.mubr.bf16.mxu0 0
  %3452 = vmatmul.mubr.bf16.gmra.mrb[0].mxu0 %v3418
  %v3453 = vpop.f32.mrb[0].mxu0
  %v3454 = vadd.f32 %v159, %v3453
  %v3455 = vpop.f32.mrb[0].mxu0
  %v3456 = vpop.f32.mrb[0].mxu0
  %v3457 = vpop.f32.mrb[0].mxu0
  %3458 = vdwg.mxu0
  %v3459 = vsub.f32 %v3284, %v3369
  %v3460 = vadd.f32 %v3459, %v3454
  %v3461 = vadd.f32 %v3202, %v3460
  %v3462 = vpack.c.bf16 %v3461, %v3461
  %3463 = vmatprep.subr.bf16.mxu0 0
  %3464 = vmatpush1.bf16.msra.mxu0 %v85
  %3465 = vmatprep.subr.bf16.mxu0 0
  %3466 = vmatpush1.bf16.msra.mxu0 %v86
  %3467 = vmatprep.subr.bf16.mxu0 0
  %3468 = vmatpush1.bf16.msra.mxu0 %v87
  %3469 = vmatprep.subr.bf16.mxu0 0
  %3470 = vmatpush1.bf16.msra.mxu0 %v88
  %3471 = vmatprep.subr.bf16.mxu0 0
  %3472 = vmatpush1.bf16.msra.mxu0 %v89
  %3473 = vmatprep.subr.bf16.mxu0 0
  %3474 = vmatpush1.bf16.msra.mxu0 %v90
  %3475 = vmatprep.subr.bf16.mxu0 0
  %3476 = vmatpush1.bf16.msra.mxu0 %v91
  %3477 = vmatprep.subr.bf16.mxu0 0
  %3478 = vmatpush1.bf16.msra.mxu0 %v92
  %3479 = vmatprep.subr.bf16.mxu0 0
  %3480 = vmatpush1.bf16.msra.mxu0 0
  %3481 = vmatprep.subr.bf16.mxu0 0
  %3482 = vmatpush1.bf16.msra.mxu0 0
  %3483 = vmatprep.subr.bf16.mxu0 0
  %3484 = vmatpush1.bf16.msra.mxu0 0
  %3485 = vmatprep.subr.bf16.mxu0 0
  %3486 = vmatpush1.bf16.msra.mxu0 0
  %3487 = vmatprep.subr.bf16.mxu0 0
  %3488 = vmatpush1.bf16.msra.mxu0 0
  %3489 = vmatprep.subr.bf16.mxu0 0
  %3490 = vmatpush1.bf16.msra.mxu0 0
  %3491 = vmatprep.subr.bf16.mxu0 0
  %3492 = vmatpush1.bf16.msra.mxu0 0
  %3493 = vmatprep.subr.bf16.mxu0 0
  %3494 = vmatpush1.bf16.msra.mxu0 0
  %3495 = vmatprep.mubr.bf16.mxu0 0
  %3496 = vmatmul.mubr.bf16.gmra.mrb[0].mxu0 %v3462
  %v3497 = vpop.f32.mrb[0].mxu0
  %v3498 = vadd.f32 %v52, %v3497
  %v3499 = vpop.f32.mrb[0].mxu0
  %v3500 = vpop.f32.mrb[0].mxu0
  %v3501 = vpop.f32.mrb[0].mxu0
  %3502 = vdwg.mxu0
  %v3503 = vtanh.pop %v3498
  %v3504 = vpack.c.bf16 %v3503, %v3503
  %3505 = vmatprep.subr.bf16.mxu0 0
  %3506 = vmatpush1.bf16.msra.mxu0 %v192
  %3507 = vmatprep.subr.bf16.mxu0 0
  %3508 = vmatpush1.bf16.msra.mxu0 %v193
  %3509 = vmatprep.subr.bf16.mxu0 0
  %3510 = vmatpush1.bf16.msra.mxu0 %v194
  %3511 = vmatprep.subr.bf16.mxu0 0
  %3512 = vmatpush1.bf16.msra.mxu0 %v195
  %3513 = vmatprep.subr.bf16.mxu0 0
  %3514 = vmatpush1.bf16.msra.mxu0 %v196
  %3515 = vmatprep.subr.bf16.mxu0 0
  %3516 = vmatpush1.bf16.msra.mxu0 %v197
  %3517 = vmatprep.subr.bf16.mxu0 0
  %3518 = vmatpush1.bf16.msra.mxu0 %v198
  %3519 = vmatprep.subr.bf16.mxu0 0
  %3520 = vmatpush1.bf16.msra.mxu0 %v199
  %3521 = vmatprep.subr.bf16.mxu0 0
  %3522 = vmatpush1.bf16.msra.mxu0 0
  %3523 = vmatprep.subr.bf16.mxu0 0
  %3524 = vmatpush1.bf16.msra.mxu0 0
  %3525 = vmatprep.subr.bf16.mxu0 0
  %3526 = vmatpush1.bf16.msra.mxu0 0
  %3527 = vmatprep.subr.bf16.mxu0 0
  %3528 = vmatpush1.bf16.msra.mxu0 0
  %3529 = vmatprep.subr.bf16.mxu0 0
  %3530 = vmatpush1.bf16.msra.mxu0 0
  %3531 = vmatprep.subr.bf16.mxu0 0
  %3532 = vmatpush1.bf16.msra.mxu0 0
  %3533 = vmatprep.subr.bf16.mxu0 0
  %3534 = vmatpush1.bf16.msra.mxu0 0
  %3535 = vmatprep.subr.bf16.mxu0 0
  %3536 = vmatpush1.bf16.msra.mxu0 0
  %3537 = vmatprep.mubr.bf16.mxu0 0
  %3538 = vmatmul.mubr.bf16.gmra.mrb[0].mxu0 %v3504
  %v3539 = vpop.f32.mrb[0].mxu0
  %v3540 = vadd.f32 %v159, %v3539
  %v3541 = vpop.f32.mrb[0].mxu0
  %v3542 = vpop.f32.mrb[0].mxu0
  %v3543 = vpop.f32.mrb[0].mxu0
  %3544 = vdwg.mxu0
  %v3545 = vmul.f32 %v3369, 3.0
  %v3546 = vadd.f32 %v3284, %v3545
  %v3547 = vmul.f32 %v3454, 3.0
  %v3548 = vadd.f32 %v3546, %v3547
  %v3549 = vadd.f32 %v3548, %v3540
  %v3550 = vmul.f32 %v3549, 0.125
  %v3551 = vadd.f32 %v3202, %v3550
  %v3552 = vpack.c.bf16 %v3551, %v3551
  %3553 = vmatprep.subr.bf16.mxu0 0
  %3554 = vmatpush1.bf16.msra.mxu0 %v561
  %3555 = vmatprep.subr.bf16.mxu0 0
  %3556 = vmatpush1.bf16.msra.mxu0 %v562
  %3557 = vmatprep.subr.bf16.mxu0 0
  %3558 = vmatpush1.bf16.msra.mxu0 %v563
  %3559 = vmatprep.subr.bf16.mxu0 0
  %3560 = vmatpush1.bf16.msra.mxu0 %v564
  %3561 = vmatprep.subr.bf16.mxu0 0
  %3562 = vmatpush1.bf16.msra.mxu0 %v565
  %3563 = vmatprep.subr.bf16.mxu0 0
  %3564 = vmatpush1.bf16.msra.mxu0 %v566
  %3565 = vmatprep.subr.bf16.mxu0 0
  %3566 = vmatpush1.bf16.msra.mxu0 %v567
  %3567 = vmatprep.subr.bf16.mxu0 0
  %3568 = vmatpush1.bf16.msra.mxu0 %v568
  %3569 = vmatprep.subr.bf16.mxu0 0
  %3570 = vmatpush1.bf16.msra.mxu0 0
  %3571 = vmatprep.subr.bf16.mxu0 0
  %3572 = vmatpush1.bf16.msra.mxu0 0
  %3573 = vmatprep.subr.bf16.mxu0 0
  %3574 = vmatpush1.bf16.msra.mxu0 0
  %3575 = vmatprep.subr.bf16.mxu0 0
  %3576 = vmatpush1.bf16.msra.mxu0 0
  %3577 = vmatprep.subr.bf16.mxu0 0
  %3578 = vmatpush1.bf16.msra.mxu0 0
  %3579 = vmatprep.subr.bf16.mxu0 0
  %3580 = vmatpush1.bf16.msra.mxu0 0
  %3581 = vmatprep.subr.bf16.mxu0 0
  %3582 = vmatpush1.bf16.msra.mxu0 0
  %3583 = vmatprep.subr.bf16.mxu0 0
  %3584 = vmatpush1.bf16.msra.mxu0 0
  %3585 = vmatprep.mubr.bf16.mxu0 0
  %3586 = vmatmul.mubr.bf16.gmra.mrb[0].mxu0 %v3552
  %v3587 = vpop.f32.mrb[0].mxu0
  %v3588 = vadd.f32 %v528, %v3587
  %v3589 = vpop.f32.mrb[0].mxu0
  %v3590 = vpop.f32.mrb[0].mxu0
  %v3591 = vpop.f32.mrb[0].mxu0
  %3592 = vdwg.mxu0
  %v3593 = vadd.f32 %v3205, %v3588
  %v3594 = vxor.u32 %v3593, 2147483648
  %v3595 = vmul.f32 %v3594, 1.442695
  %v3596 = vpow.pop %v3595
  %v3597 = vadd.f32 %v3596, 1.0
  %v3598 = vrcp.pop %v3597
  %v3599 = vmul.f32 1.0, %v3598
  %3601 = vrot.lane.b32.xlu0 %v3588, 64
  %v3602 = vpop.permute.xlu0 %3601
  %v3604 = vmul.f32 %v3599, %v3602
  %3606 = vrot.lane.b32.xlu0 %v3604, 64
  %v3607 = vpop.permute.xlu0 %3606
  %v3609 = vadd.f32 %v3205, %v3607
  %v3610 = vtanh.pop %v3609
  %v3611 = vsub.f32 1.0, %v3599
  %3613 = vrot.lane.b32.xlu0 %v3610, 96
  %v3614 = vpop.permute.xlu0 %3613
  %v3616 = vmul.f32 %v3611, %v3614
  %3618 = vrot.lane.b32.xlu0 %v3551, 32
  %v3619 = vpop.permute.xlu0 %3618
  %v3621 = vmul.f32 %v3599, %v3619
  %v3622 = vadd.f32 %v3616, %v3621
  %3624 = vrot.lane.b32.xlu0 %v3622, 96
  %v3625 = vpop.permute.xlu0 %3624
  %v3627 = vsel %vm651, %v3625, 0.0
  %3628 = vst [vmem:[%s7] sm:$0xff] %v3627
  // Predicated region
  $region34: #{odernn_forward.1} parent=0 // pred_check
    _
  $region35: #{odernn_forward.1} parent=0 // pred_check_branch
    %3630 = sbr.rel (0) target = $region37
  $region36: #{odernn_forward.1} parent=0 // pred_region
    _
  $region37: #{odernn_forward.1} parent=0 // pred_fallthru
    _
  // Predicated region
  $region38: #{odernn_forward.1} parent=0 // pred_check
    _
  $region39: #{odernn_forward.1} parent=0 // pred_check_branch
    %3632 = sbr.rel (0) target = $region41
  $region40: #{odernn_forward.1} parent=0 // pred_region
    _
  $region41: #{odernn_forward.1} parent=0 // pred_fallthru
    _

</llo_original>
